<compile_context>
chip_gen: v6e
topology: v6e:2x2x1
jax: 0.10.0
libtpu: 0.0.40
codegen_flags: <defaults>
</compile_context>

<pallas_src>
import functools

import jax
import jax.numpy as jnp
from jax.experimental import pallas as pl
from jax.experimental.pallas import tpu as pltpu

CONV_OC = 6
KH = KW = 3
H_IN = W_IN = 28
H_CONV = W_CONV = H_IN - KH + 1           # 26
H_POOL = W_POOL = H_CONV - 1              # 25  (MaxPool2d(2, stride=1))
FLAT_IN = H_IN * W_IN                     # 784  (flat image, row stride 28)
CONV_L = (H_CONV - 1) * W_IN + W_CONV     # 726  (flat conv output length)
POOL_L = (H_POOL - 1) * W_IN + W_POOL     # 697  (flat pooled output length)
ROWMAX_L = POOL_L + W_IN                  # 725  (horizontal-max intermediate)
FC_IN = CONV_OC * H_POOL * W_POOL         # 3750
FC_OUT = 10


def _fused_annet_kernel(x_ref, cw_ref, cb_ref, fw_ref, fb_ref, o_ref, *, cdt):
    """conv3x3 -> maxpool(2,1) -> +bias -> relu -> fc, fused, on flat stride-28 rows.

    x_ref : (bt, 784)        VMEM  flattened images (row stride 28), native dtype
    cw_ref: (54,)       f32  SMEM  conv weight, index = oc*9 + dh*3 + dw
    cb_ref: (6,)        f32  SMEM  conv bias
    fw_ref: (6, 697, 10) bf16 VMEM FC weight, re-indexed to flat coords, resident
    fb_ref: (1, 10)     f32  VMEM  FC bias
    o_ref : (bt, 10)    f32  VMEM  logits
    cdt   : compute dtype for the conv/pool datapath (bf16 on v6e/v7x, f32 on v5e)
    """
    x = x_ref[...].astype(cdt)                        # single in-kernel cast
    bt = x.shape[0]

    # 9 shifted flat views of the image, hoisted out of the channel loop
    # (shared by all 6 output channels).
    taps = [x[:, dh * W_IN + dw: dh * W_IN + dw + CONV_L]      # each (bt, 726)
            for dh in range(KH) for dw in range(KW)]

    acc = jnp.zeros((bt, FC_OUT), jnp.float32)
    for oc in range(CONV_OC):
        # 3x3 conv for this channel: SMEM scalar weights * shared shifted slices.
        w = [cw_ref[oc * KH * KW + t].astype(cdt) for t in range(KH * KW)]
        conv = taps[0] * w[0]
        for t in range(1, KH * KW):
            conv = conv + taps[t] * w[t]

        # Separable MaxPool2d(2, stride 1) in flat coordinates:
        #   rowmax[q] = max(conv[q], conv[q+1])       (horizontal pair)
        #   pooled[p] = max(rowmax[p], rowmax[p+28])  (vertical pair)
        rowmax = jnp.maximum(conv[:, 0:ROWMAX_L], conv[:, 1:ROWMAX_L + 1])
        pooled = jnp.maximum(rowmax[:, 0:POOL_L], rowmax[:, W_IN:W_IN + POOL_L])

        # bias + ReLU once, on the pooled tensor
        # (relu(max(.)) == max(relu(.)); bias is constant over the window).
        pooled = jnp.maximum(pooled + cb_ref[oc].astype(cdt), 0.0)    # (bt, 697)

        # Fused FC contribution for this channel on the MXU (bf16 in, f32 acc).
        # Invalid flat columns (w in {25,26,27}) carry zero weight rows.
        acc = acc + jnp.dot(pooled.astype(jnp.bfloat16), fw_ref[oc],
                            preferred_element_type=jnp.float32)

    o_ref[...] = acc + fb_ref[...]


def prepare_params(conv_w, conv_b, fc_w, fc_b):
    """One-time, host-side re-layout of the PyTorch parameters."""
    cw = conv_w.reshape(-1).astype(jnp.float32)        # (54,)  oc*9 + dh*3 + dw
    cb = conv_b.astype(jnp.float32)                    # (6,)

    # fc_w is (10, 3750) with PyTorch feature order f = oc*625 + h*25 + w.
    # Re-index to the kernel's flat stride-28 coordinates q = h*28 + w, zeroing
    # the 3 invalid columns per row, one (697, 10) matrix per conv channel (bf16).
    w4 = jnp.transpose(
        fc_w.astype(jnp.float32).reshape(FC_OUT, CONV_OC, H_POOL, W_POOL),
        (1, 2, 3, 0))                                                # (6,25,25,10)
    w4 = jnp.pad(w4, ((0, 0), (0, 0), (0, W_IN - W_POOL), (0, 0)))   # (6,25,28,10)
    fw = w4.reshape(CONV_OC, H_POOL * W_IN, FC_OUT)[:, :POOL_L, :]   # (6,697,10)
    fw = fw.astype(jnp.bfloat16)

    fb = fc_b.reshape(1, FC_OUT).astype(jnp.float32)
    return cw, cb, fw, fb


def _conv_compute_dtype():
    """bf16 conv/pool datapath on bf16-VPU chips (v6e/v7x); f32 on v5e & older."""
    try:
        kind = jax.devices()[0].device_kind.lower()
    except Exception:  # pragma: no cover - be conservative if detection fails
        return jnp.float32
    for tag in ("v2", "v3", "v4", "v5"):
        if tag in kind:
            return jnp.float32
    return jnp.bfloat16


def _choose_bt(B: int, cap: int = 256) -> int:
    """Batch rows per grid step.

    * B <= 8: one block equal to the full batch (block dim == full array dim is
      legal), no padding, single grid step.
    * B  > 8: multiple of 8 (dense sublane packing), >= 2 grid steps so the
      parallel batch axis shards across both v7x TensorCores, capped at 256 so
      tiles stay well inside the 32 MiB scoped-VMEM budget on all generations.
    """
    if B <= 8:
        return B
    steps = max(2, pl.cdiv(B, cap))
    bt = pl.cdiv(pl.cdiv(B, steps), 8) * 8
    return min(bt, cap)


def annet_forward(x, params, *, bt=None, compute_dtype=None):
    """x: (B, 1, 28, 28); params = prepare_params(...); returns (B, 10) f32."""
    cw, cb, fw, fb = params
    B = x.shape[0]
    if bt is None:
        bt = _choose_bt(B)
    if compute_dtype is None:
        compute_dtype = _conv_compute_dtype()

    # Reshape is free metadata; dtype cast happens once inside the kernel.
    x_flat = x.reshape(B, FLAT_IN)
    pad = (-B) % bt
    if pad:  # only for batch sizes that don't tile evenly
        x_flat = jnp.pad(x_flat, ((0, pad), (0, 0)))
    Bp = B + pad

    kernel = functools.partial(_fused_annet_kernel, cdt=compute_dtype)

    out = pl.pallas_call(
        kernel,
        out_shape=jax.ShapeDtypeStruct((Bp, FC_OUT), jnp.float32),
        grid=(Bp // bt,),
        in_specs=[
            pl.BlockSpec((bt, FLAT_IN), lambda b: (b, 0)),                 # images
            pl.BlockSpec(memory_space=pltpu.MemorySpace.SMEM),             # conv w
            pl.BlockSpec(memory_space=pltpu.MemorySpace.SMEM),             # conv b
            pl.BlockSpec((CONV_OC, POOL_L, FC_OUT), lambda b: (0, 0, 0)),  # fc w (resident)
            pl.BlockSpec((1, FC_OUT), lambda b: (0, 0)),                   # fc b
        ],
        out_specs=pl.BlockSpec((bt, FC_OUT), lambda b: (b, 0)),
        compiler_params=pltpu.CompilerParams(
            dimension_semantics=("parallel",),
            vmem_limit_bytes=32 * 1024 * 1024),
    )(x_flat, cw, cb, fw, fb)

    return out[:B] if pad else out


def annet_reference(x, conv_w, conv_b, fc_w, fc_b):
    """Pure-JAX reference matching the PyTorch forward exactly (f32)."""
    B = x.shape[0]
    img = x[:, 0].astype(jnp.float32)                               # (B, 28, 28)
    chans = []
    for oc in range(CONV_OC):
        c = jnp.zeros((B, H_CONV, W_CONV), jnp.float32)
        for dh in range(KH):
            for dw in range(KW):
                c = c + conv_w[oc, 0, dh, dw] * img[:, dh:dh + H_CONV, dw:dw + W_CONV]
        chans.append(jnp.maximum(c + conv_b[oc], 0.0))
    act = jnp.stack(chans, axis=1)                                  # (B, 6, 26, 26)
    pooled = jnp.maximum(
        jnp.maximum(act[:, :, :H_POOL, :W_POOL], act[:, :, :H_POOL, 1:]),
        jnp.maximum(act[:, :, 1:, :W_POOL], act[:, :, 1:, 1:]),
    )                                                               # (B, 6, 25, 25)
    flat = pooled.reshape(B, FC_IN)
    return flat @ fc_w.T + fc_b


if __name__ == "__main__":
    key = jax.random.PRNGKey(0)
    k1, k2, k3, k4, k5 = jax.random.split(key, 5)
    B = 2
    # Input is (B, 1, 28, 28): Linear(3750, 10) implies 6 * 25 * 25 = 3750 features.
    x = jax.random.normal(k1, (B, 1, H_IN, W_IN), jnp.float32)
    conv_w = 0.1 * jax.random.normal(k2, (CONV_OC, 1, KH, KW), jnp.float32)
    conv_b = 0.1 * jax.random.normal(k3, (CONV_OC,), jnp.float32)
    fc_w = 0.01 * jax.random.normal(k4, (FC_OUT, FC_IN), jnp.float32)
    fc_b = 0.01 * jax.random.normal(k5, (FC_OUT,), jnp.float32)

    params = prepare_params(conv_w, conv_b, fc_w, fc_b)
    fwd = jax.jit(annet_forward)
    out = fwd(x, params)
    jax.block_until_ready(out)

    assert out.shape == (B, FC_OUT) and out.dtype == jnp.float32
    ref = annet_reference(x, conv_w, conv_b, fc_w, fc_b)
    # bf16 FC weights (+ bf16 conv/pool datapath on v6e/v7x) vs f32 reference
    # -> loose tolerance.
    assert jnp.allclose(out, ref, rtol=5e-2, atol=2e-2), (
        f"max abs err {float(jnp.max(jnp.abs(out - ref))):.3e}")
    print("KERNEL_OK")
</pallas_src>

<mosaic_0001>
module attributes {stable_mosaic.version = 11 : i64} {
  func.func @_fused_annet_kernel(%arg0: i32, %arg1: memref<2x784xf32, #tpu.memory_space<vmem>>, %arg2: memref<54xf32, #tpu.memory_space<smem>>, %arg3: memref<6xf32, #tpu.memory_space<smem>>, %arg4: memref<6x697x10xbf16, #tpu.memory_space<vmem>>, %arg5: memref<1x10xf32, #tpu.memory_space<vmem>>, %arg6: memref<2x10xf32, #tpu.memory_space<vmem>>) attributes {dimension_semantics = [#tpu.dimension_semantics<parallel>], iteration_bounds = array<i64: 1>, scalar_prefetch = 0 : i64, scratch_operands = 0 : i64, tpu.core_type = #tpu.core_type<tc>, window_params = [{transform_indices = @transform_0, window_bounds = array<i64: 2, 784>}, {transform_indices = @transform_1, window_bounds = array<i64: 54>}, {transform_indices = @transform_2, window_bounds = array<i64: 6>}, {pipeline_mode = #tpu.pipeline_mode<synchronous>, transform_indices = @transform_3, window_bounds = array<i64: 6, 697, 10>}, {pipeline_mode = #tpu.pipeline_mode<synchronous>, transform_indices = @transform_4, window_bounds = array<i64: 1, 10>}, {transform_indices = @transform_5, window_bounds = array<i64: 2, 10>}]} {
    %c0 = arith.constant 0 : index
    %c0_0 = arith.constant 0 : index
    %0 = vector.load %arg1[%c0, %c0_0] : memref<2x784xf32, #tpu.memory_space<vmem>>, vector<2x784xf32>
    %1 = arith.truncf %0 : vector<2x784xf32> to vector<2x784xbf16>
    %2 = vector.extract_strided_slice %1 {offsets = [0, 0], sizes = [2, 726], strides = [1, 1]} : vector<2x784xbf16> to vector<2x726xbf16>
    %3 = vector.extract_strided_slice %1 {offsets = [0, 1], sizes = [2, 726], strides = [1, 1]} : vector<2x784xbf16> to vector<2x726xbf16>
    %4 = vector.extract_strided_slice %1 {offsets = [0, 2], sizes = [2, 726], strides = [1, 1]} : vector<2x784xbf16> to vector<2x726xbf16>
    %5 = vector.extract_strided_slice %1 {offsets = [0, 28], sizes = [2, 726], strides = [1, 1]} : vector<2x784xbf16> to vector<2x726xbf16>
    %6 = vector.extract_strided_slice %1 {offsets = [0, 29], sizes = [2, 726], strides = [1, 1]} : vector<2x784xbf16> to vector<2x726xbf16>
    %7 = vector.extract_strided_slice %1 {offsets = [0, 30], sizes = [2, 726], strides = [1, 1]} : vector<2x784xbf16> to vector<2x726xbf16>
    %8 = vector.extract_strided_slice %1 {offsets = [0, 56], sizes = [2, 726], strides = [1, 1]} : vector<2x784xbf16> to vector<2x726xbf16>
    %9 = vector.extract_strided_slice %1 {offsets = [0, 57], sizes = [2, 726], strides = [1, 1]} : vector<2x784xbf16> to vector<2x726xbf16>
    %10 = vector.extract_strided_slice %1 {offsets = [0, 58], sizes = [2, 726], strides = [1, 1]} : vector<2x784xbf16> to vector<2x726xbf16>
    %cst = arith.constant 0.000000e+00 : f32
    %11 = vector.broadcast %cst : f32 to vector<2x10xf32>
    %c0_1 = arith.constant 0 : index
    %12 = memref.load %arg2[%c0_1] : memref<54xf32, #tpu.memory_space<smem>>
    %13 = arith.truncf %12 : f32 to bf16
    %c1 = arith.constant 1 : index
    %14 = memref.load %arg2[%c1] : memref<54xf32, #tpu.memory_space<smem>>
    %15 = arith.truncf %14 : f32 to bf16
    %c2 = arith.constant 2 : index
    %16 = memref.load %arg2[%c2] : memref<54xf32, #tpu.memory_space<smem>>
    %17 = arith.truncf %16 : f32 to bf16
    %c3 = arith.constant 3 : index
    %18 = memref.load %arg2[%c3] : memref<54xf32, #tpu.memory_space<smem>>
    %19 = arith.truncf %18 : f32 to bf16
    %c4 = arith.constant 4 : index
    %20 = memref.load %arg2[%c4] : memref<54xf32, #tpu.memory_space<smem>>
    %21 = arith.truncf %20 : f32 to bf16
    %c5 = arith.constant 5 : index
    %22 = memref.load %arg2[%c5] : memref<54xf32, #tpu.memory_space<smem>>
    %23 = arith.truncf %22 : f32 to bf16
    %c6 = arith.constant 6 : index
    %24 = memref.load %arg2[%c6] : memref<54xf32, #tpu.memory_space<smem>>
    %25 = arith.truncf %24 : f32 to bf16
    %c7 = arith.constant 7 : index
    %26 = memref.load %arg2[%c7] : memref<54xf32, #tpu.memory_space<smem>>
    %27 = arith.truncf %26 : f32 to bf16
    %c8 = arith.constant 8 : index
    %28 = memref.load %arg2[%c8] : memref<54xf32, #tpu.memory_space<smem>>
    %29 = arith.truncf %28 : f32 to bf16
    %30 = vector.broadcast %13 : bf16 to vector<2x726xbf16>
    %31 = arith.mulf %2, %30 : vector<2x726xbf16>
    %32 = vector.broadcast %15 : bf16 to vector<2x726xbf16>
    %33 = arith.mulf %3, %32 : vector<2x726xbf16>
    %34 = arith.addf %31, %33 : vector<2x726xbf16>
    %35 = vector.broadcast %17 : bf16 to vector<2x726xbf16>
    %36 = arith.mulf %4, %35 : vector<2x726xbf16>
    %37 = arith.addf %34, %36 : vector<2x726xbf16>
    %38 = vector.broadcast %19 : bf16 to vector<2x726xbf16>
    %39 = arith.mulf %5, %38 : vector<2x726xbf16>
    %40 = arith.addf %37, %39 : vector<2x726xbf16>
    %41 = vector.broadcast %21 : bf16 to vector<2x726xbf16>
    %42 = arith.mulf %6, %41 : vector<2x726xbf16>
    %43 = arith.addf %40, %42 : vector<2x726xbf16>
    %44 = vector.broadcast %23 : bf16 to vector<2x726xbf16>
    %45 = arith.mulf %7, %44 : vector<2x726xbf16>
    %46 = arith.addf %43, %45 : vector<2x726xbf16>
    %47 = vector.broadcast %25 : bf16 to vector<2x726xbf16>
    %48 = arith.mulf %8, %47 : vector<2x726xbf16>
    %49 = arith.addf %46, %48 : vector<2x726xbf16>
    %50 = vector.broadcast %27 : bf16 to vector<2x726xbf16>
    %51 = arith.mulf %9, %50 : vector<2x726xbf16>
    %52 = arith.addf %49, %51 : vector<2x726xbf16>
    %53 = vector.broadcast %29 : bf16 to vector<2x726xbf16>
    %54 = arith.mulf %10, %53 : vector<2x726xbf16>
    %55 = arith.addf %52, %54 : vector<2x726xbf16>
    %56 = vector.extract_strided_slice %55 {offsets = [0, 0], sizes = [2, 725], strides = [1, 1]} : vector<2x726xbf16> to vector<2x725xbf16>
    %57 = vector.extract_strided_slice %55 {offsets = [0, 1], sizes = [2, 725], strides = [1, 1]} : vector<2x726xbf16> to vector<2x725xbf16>
    %58 = arith.maximumf %56, %57 : vector<2x725xbf16>
    %59 = vector.extract_strided_slice %58 {offsets = [0, 0], sizes = [2, 697], strides = [1, 1]} : vector<2x725xbf16> to vector<2x697xbf16>
    %60 = vector.extract_strided_slice %58 {offsets = [0, 28], sizes = [2, 697], strides = [1, 1]} : vector<2x725xbf16> to vector<2x697xbf16>
    %61 = arith.maximumf %59, %60 : vector<2x697xbf16>
    %c0_2 = arith.constant 0 : index
    %62 = memref.load %arg3[%c0_2] : memref<6xf32, #tpu.memory_space<smem>>
    %63 = arith.truncf %62 : f32 to bf16
    %64 = vector.broadcast %63 : bf16 to vector<2x697xbf16>
    %65 = arith.addf %61, %64 : vector<2x697xbf16>
    %cst_3 = arith.constant 0.000000e+00 : bf16
    %66 = vector.broadcast %cst_3 : bf16 to vector<2x697xbf16>
    %67 = arith.maximumf %65, %66 : vector<2x697xbf16>
    %c0_4 = arith.constant 0 : index
    %c0_5 = arith.constant 0 : index
    %c0_6 = arith.constant 0 : index
    %68 = vector.load %arg4[%c0_4, %c0_5, %c0_6] : memref<6x697x10xbf16, #tpu.memory_space<vmem>>, vector<1x697x10xbf16>
    %69 = vector.shape_cast %68 : vector<1x697x10xbf16> to vector<697x10xbf16>
    %cst_7 = arith.constant dense<0.000000e+00> : vector<2x10xf32>
    %70 = tpu.matmul %67, %69, %cst_7 {dimension_numbers = #tpu.dot_dimension_numbers<[1], [0], [0], [1], [0, 0, 1, 1], [], []>} : vector<2x697xbf16>, vector<697x10xbf16>, vector<2x10xf32> -> vector<2x10xf32>
    %71 = arith.addf %11, %70 : vector<2x10xf32>
    %c9 = arith.constant 9 : index
    %72 = memref.load %arg2[%c9] : memref<54xf32, #tpu.memory_space<smem>>
    %73 = arith.truncf %72 : f32 to bf16
    %c10 = arith.constant 10 : index
    %74 = memref.load %arg2[%c10] : memref<54xf32, #tpu.memory_space<smem>>
    %75 = arith.truncf %74 : f32 to bf16
    %c11 = arith.constant 11 : index
    %76 = memref.load %arg2[%c11] : memref<54xf32, #tpu.memory_space<smem>>
    %77 = arith.truncf %76 : f32 to bf16
    %c12 = arith.constant 12 : index
    %78 = memref.load %arg2[%c12] : memref<54xf32, #tpu.memory_space<smem>>
    %79 = arith.truncf %78 : f32 to bf16
    %c13 = arith.constant 13 : index
    %80 = memref.load %arg2[%c13] : memref<54xf32, #tpu.memory_space<smem>>
    %81 = arith.truncf %80 : f32 to bf16
    %c14 = arith.constant 14 : index
    %82 = memref.load %arg2[%c14] : memref<54xf32, #tpu.memory_space<smem>>
    %83 = arith.truncf %82 : f32 to bf16
    %c15 = arith.constant 15 : index
    %84 = memref.load %arg2[%c15] : memref<54xf32, #tpu.memory_space<smem>>
    %85 = arith.truncf %84 : f32 to bf16
    %c16 = arith.constant 16 : index
    %86 = memref.load %arg2[%c16] : memref<54xf32, #tpu.memory_space<smem>>
    %87 = arith.truncf %86 : f32 to bf16
    %c17 = arith.constant 17 : index
    %88 = memref.load %arg2[%c17] : memref<54xf32, #tpu.memory_space<smem>>
    %89 = arith.truncf %88 : f32 to bf16
    %90 = vector.broadcast %73 : bf16 to vector<2x726xbf16>
    %91 = arith.mulf %2, %90 : vector<2x726xbf16>
    %92 = vector.broadcast %75 : bf16 to vector<2x726xbf16>
    %93 = arith.mulf %3, %92 : vector<2x726xbf16>
    %94 = arith.addf %91, %93 : vector<2x726xbf16>
    %95 = vector.broadcast %77 : bf16 to vector<2x726xbf16>
    %96 = arith.mulf %4, %95 : vector<2x726xbf16>
    %97 = arith.addf %94, %96 : vector<2x726xbf16>
    %98 = vector.broadcast %79 : bf16 to vector<2x726xbf16>
    %99 = arith.mulf %5, %98 : vector<2x726xbf16>
    %100 = arith.addf %97, %99 : vector<2x726xbf16>
    %101 = vector.broadcast %81 : bf16 to vector<2x726xbf16>
    %102 = arith.mulf %6, %101 : vector<2x726xbf16>
    %103 = arith.addf %100, %102 : vector<2x726xbf16>
    %104 = vector.broadcast %83 : bf16 to vector<2x726xbf16>
    %105 = arith.mulf %7, %104 : vector<2x726xbf16>
    %106 = arith.addf %103, %105 : vector<2x726xbf16>
    %107 = vector.broadcast %85 : bf16 to vector<2x726xbf16>
    %108 = arith.mulf %8, %107 : vector<2x726xbf16>
    %109 = arith.addf %106, %108 : vector<2x726xbf16>
    %110 = vector.broadcast %87 : bf16 to vector<2x726xbf16>
    %111 = arith.mulf %9, %110 : vector<2x726xbf16>
    %112 = arith.addf %109, %111 : vector<2x726xbf16>
    %113 = vector.broadcast %89 : bf16 to vector<2x726xbf16>
    %114 = arith.mulf %10, %113 : vector<2x726xbf16>
    %115 = arith.addf %112, %114 : vector<2x726xbf16>
    %116 = vector.extract_strided_slice %115 {offsets = [0, 0], sizes = [2, 725], strides = [1, 1]} : vector<2x726xbf16> to vector<2x725xbf16>
    %117 = vector.extract_strided_slice %115 {offsets = [0, 1], sizes = [2, 725], strides = [1, 1]} : vector<2x726xbf16> to vector<2x725xbf16>
    %118 = arith.maximumf %116, %117 : vector<2x725xbf16>
    %119 = vector.extract_strided_slice %118 {offsets = [0, 0], sizes = [2, 697], strides = [1, 1]} : vector<2x725xbf16> to vector<2x697xbf16>
    %120 = vector.extract_strided_slice %118 {offsets = [0, 28], sizes = [2, 697], strides = [1, 1]} : vector<2x725xbf16> to vector<2x697xbf16>
    %121 = arith.maximumf %119, %120 : vector<2x697xbf16>
    %c1_8 = arith.constant 1 : index
    %122 = memref.load %arg3[%c1_8] : memref<6xf32, #tpu.memory_space<smem>>
    %123 = arith.truncf %122 : f32 to bf16
    %124 = vector.broadcast %123 : bf16 to vector<2x697xbf16>
    %125 = arith.addf %121, %124 : vector<2x697xbf16>
    %cst_9 = arith.constant 0.000000e+00 : bf16
    %126 = vector.broadcast %cst_9 : bf16 to vector<2x697xbf16>
    %127 = arith.maximumf %125, %126 : vector<2x697xbf16>
    %c1_10 = arith.constant 1 : index
    %c0_11 = arith.constant 0 : index
    %c0_12 = arith.constant 0 : index
    %128 = vector.load %arg4[%c1_10, %c0_11, %c0_12] : memref<6x697x10xbf16, #tpu.memory_space<vmem>>, vector<1x697x10xbf16>
    %129 = vector.shape_cast %128 : vector<1x697x10xbf16> to vector<697x10xbf16>
    %cst_13 = arith.constant dense<0.000000e+00> : vector<2x10xf32>
    %130 = tpu.matmul %127, %129, %cst_13 {dimension_numbers = #tpu.dot_dimension_numbers<[1], [0], [0], [1], [0, 0, 1, 1], [], []>} : vector<2x697xbf16>, vector<697x10xbf16>, vector<2x10xf32> -> vector<2x10xf32>
    %131 = arith.addf %71, %130 : vector<2x10xf32>
    %c18 = arith.constant 18 : index
    %132 = memref.load %arg2[%c18] : memref<54xf32, #tpu.memory_space<smem>>
    %133 = arith.truncf %132 : f32 to bf16
    %c19 = arith.constant 19 : index
    %134 = memref.load %arg2[%c19] : memref<54xf32, #tpu.memory_space<smem>>
    %135 = arith.truncf %134 : f32 to bf16
    %c20 = arith.constant 20 : index
    %136 = memref.load %arg2[%c20] : memref<54xf32, #tpu.memory_space<smem>>
    %137 = arith.truncf %136 : f32 to bf16
    %c21 = arith.constant 21 : index
    %138 = memref.load %arg2[%c21] : memref<54xf32, #tpu.memory_space<smem>>
    %139 = arith.truncf %138 : f32 to bf16
    %c22 = arith.constant 22 : index
    %140 = memref.load %arg2[%c22] : memref<54xf32, #tpu.memory_space<smem>>
    %141 = arith.truncf %140 : f32 to bf16
    %c23 = arith.constant 23 : index
    %142 = memref.load %arg2[%c23] : memref<54xf32, #tpu.memory_space<smem>>
    %143 = arith.truncf %142 : f32 to bf16
    %c24 = arith.constant 24 : index
    %144 = memref.load %arg2[%c24] : memref<54xf32, #tpu.memory_space<smem>>
    %145 = arith.truncf %144 : f32 to bf16
    %c25 = arith.constant 25 : index
    %146 = memref.load %arg2[%c25] : memref<54xf32, #tpu.memory_space<smem>>
    %147 = arith.truncf %146 : f32 to bf16
    %c26 = arith.constant 26 : index
    %148 = memref.load %arg2[%c26] : memref<54xf32, #tpu.memory_space<smem>>
    %149 = arith.truncf %148 : f32 to bf16
    %150 = vector.broadcast %133 : bf16 to vector<2x726xbf16>
    %151 = arith.mulf %2, %150 : vector<2x726xbf16>
    %152 = vector.broadcast %135 : bf16 to vector<2x726xbf16>
    %153 = arith.mulf %3, %152 : vector<2x726xbf16>
    %154 = arith.addf %151, %153 : vector<2x726xbf16>
    %155 = vector.broadcast %137 : bf16 to vector<2x726xbf16>
    %156 = arith.mulf %4, %155 : vector<2x726xbf16>
    %157 = arith.addf %154, %156 : vector<2x726xbf16>
    %158 = vector.broadcast %139 : bf16 to vector<2x726xbf16>
    %159 = arith.mulf %5, %158 : vector<2x726xbf16>
    %160 = arith.addf %157, %159 : vector<2x726xbf16>
    %161 = vector.broadcast %141 : bf16 to vector<2x726xbf16>
    %162 = arith.mulf %6, %161 : vector<2x726xbf16>
    %163 = arith.addf %160, %162 : vector<2x726xbf16>
    %164 = vector.broadcast %143 : bf16 to vector<2x726xbf16>
    %165 = arith.mulf %7, %164 : vector<2x726xbf16>
    %166 = arith.addf %163, %165 : vector<2x726xbf16>
    %167 = vector.broadcast %145 : bf16 to vector<2x726xbf16>
    %168 = arith.mulf %8, %167 : vector<2x726xbf16>
    %169 = arith.addf %166, %168 : vector<2x726xbf16>
    %170 = vector.broadcast %147 : bf16 to vector<2x726xbf16>
    %171 = arith.mulf %9, %170 : vector<2x726xbf16>
    %172 = arith.addf %169, %171 : vector<2x726xbf16>
    %173 = vector.broadcast %149 : bf16 to vector<2x726xbf16>
    %174 = arith.mulf %10, %173 : vector<2x726xbf16>
    %175 = arith.addf %172, %174 : vector<2x726xbf16>
    %176 = vector.extract_strided_slice %175 {offsets = [0, 0], sizes = [2, 725], strides = [1, 1]} : vector<2x726xbf16> to vector<2x725xbf16>
    %177 = vector.extract_strided_slice %175 {offsets = [0, 1], sizes = [2, 725], strides = [1, 1]} : vector<2x726xbf16> to vector<2x725xbf16>
    %178 = arith.maximumf %176, %177 : vector<2x725xbf16>
    %179 = vector.extract_strided_slice %178 {offsets = [0, 0], sizes = [2, 697], strides = [1, 1]} : vector<2x725xbf16> to vector<2x697xbf16>
    %180 = vector.extract_strided_slice %178 {offsets = [0, 28], sizes = [2, 697], strides = [1, 1]} : vector<2x725xbf16> to vector<2x697xbf16>
    %181 = arith.maximumf %179, %180 : vector<2x697xbf16>
    %c2_14 = arith.constant 2 : index
    %182 = memref.load %arg3[%c2_14] : memref<6xf32, #tpu.memory_space<smem>>
    %183 = arith.truncf %182 : f32 to bf16
    %184 = vector.broadcast %183 : bf16 to vector<2x697xbf16>
    %185 = arith.addf %181, %184 : vector<2x697xbf16>
    %cst_15 = arith.constant 0.000000e+00 : bf16
    %186 = vector.broadcast %cst_15 : bf16 to vector<2x697xbf16>
    %187 = arith.maximumf %185, %186 : vector<2x697xbf16>
    %c2_16 = arith.constant 2 : index
    %c0_17 = arith.constant 0 : index
    %c0_18 = arith.constant 0 : index
    %188 = vector.load %arg4[%c2_16, %c0_17, %c0_18] : memref<6x697x10xbf16, #tpu.memory_space<vmem>>, vector<1x697x10xbf16>
    %189 = vector.shape_cast %188 : vector<1x697x10xbf16> to vector<697x10xbf16>
    %cst_19 = arith.constant dense<0.000000e+00> : vector<2x10xf32>
    %190 = tpu.matmul %187, %189, %cst_19 {dimension_numbers = #tpu.dot_dimension_numbers<[1], [0], [0], [1], [0, 0, 1, 1], [], []>} : vector<2x697xbf16>, vector<697x10xbf16>, vector<2x10xf32> -> vector<2x10xf32>
    %191 = arith.addf %131, %190 : vector<2x10xf32>
    %c27 = arith.constant 27 : index
    %192 = memref.load %arg2[%c27] : memref<54xf32, #tpu.memory_space<smem>>
    %193 = arith.truncf %192 : f32 to bf16
    %c28 = arith.constant 28 : index
    %194 = memref.load %arg2[%c28] : memref<54xf32, #tpu.memory_space<smem>>
    %195 = arith.truncf %194 : f32 to bf16
    %c29 = arith.constant 29 : index
    %196 = memref.load %arg2[%c29] : memref<54xf32, #tpu.memory_space<smem>>
    %197 = arith.truncf %196 : f32 to bf16
    %c30 = arith.constant 30 : index
    %198 = memref.load %arg2[%c30] : memref<54xf32, #tpu.memory_space<smem>>
    %199 = arith.truncf %198 : f32 to bf16
    %c31 = arith.constant 31 : index
    %200 = memref.load %arg2[%c31] : memref<54xf32, #tpu.memory_space<smem>>
    %201 = arith.truncf %200 : f32 to bf16
    %c32 = arith.constant 32 : index
    %202 = memref.load %arg2[%c32] : memref<54xf32, #tpu.memory_space<smem>>
    %203 = arith.truncf %202 : f32 to bf16
    %c33 = arith.constant 33 : index
    %204 = memref.load %arg2[%c33] : memref<54xf32, #tpu.memory_space<smem>>
    %205 = arith.truncf %204 : f32 to bf16
    %c34 = arith.constant 34 : index
    %206 = memref.load %arg2[%c34] : memref<54xf32, #tpu.memory_space<smem>>
    %207 = arith.truncf %206 : f32 to bf16
    %c35 = arith.constant 35 : index
    %208 = memref.load %arg2[%c35] : memref<54xf32, #tpu.memory_space<smem>>
    %209 = arith.truncf %208 : f32 to bf16
    %210 = vector.broadcast %193 : bf16 to vector<2x726xbf16>
    %211 = arith.mulf %2, %210 : vector<2x726xbf16>
    %212 = vector.broadcast %195 : bf16 to vector<2x726xbf16>
    %213 = arith.mulf %3, %212 : vector<2x726xbf16>
    %214 = arith.addf %211, %213 : vector<2x726xbf16>
    %215 = vector.broadcast %197 : bf16 to vector<2x726xbf16>
    %216 = arith.mulf %4, %215 : vector<2x726xbf16>
    %217 = arith.addf %214, %216 : vector<2x726xbf16>
    %218 = vector.broadcast %199 : bf16 to vector<2x726xbf16>
    %219 = arith.mulf %5, %218 : vector<2x726xbf16>
    %220 = arith.addf %217, %219 : vector<2x726xbf16>
    %221 = vector.broadcast %201 : bf16 to vector<2x726xbf16>
    %222 = arith.mulf %6, %221 : vector<2x726xbf16>
    %223 = arith.addf %220, %222 : vector<2x726xbf16>
    %224 = vector.broadcast %203 : bf16 to vector<2x726xbf16>
    %225 = arith.mulf %7, %224 : vector<2x726xbf16>
    %226 = arith.addf %223, %225 : vector<2x726xbf16>
    %227 = vector.broadcast %205 : bf16 to vector<2x726xbf16>
    %228 = arith.mulf %8, %227 : vector<2x726xbf16>
    %229 = arith.addf %226, %228 : vector<2x726xbf16>
    %230 = vector.broadcast %207 : bf16 to vector<2x726xbf16>
    %231 = arith.mulf %9, %230 : vector<2x726xbf16>
    %232 = arith.addf %229, %231 : vector<2x726xbf16>
    %233 = vector.broadcast %209 : bf16 to vector<2x726xbf16>
    %234 = arith.mulf %10, %233 : vector<2x726xbf16>
    %235 = arith.addf %232, %234 : vector<2x726xbf16>
    %236 = vector.extract_strided_slice %235 {offsets = [0, 0], sizes = [2, 725], strides = [1, 1]} : vector<2x726xbf16> to vector<2x725xbf16>
    %237 = vector.extract_strided_slice %235 {offsets = [0, 1], sizes = [2, 725], strides = [1, 1]} : vector<2x726xbf16> to vector<2x725xbf16>
    %238 = arith.maximumf %236, %237 : vector<2x725xbf16>
    %239 = vector.extract_strided_slice %238 {offsets = [0, 0], sizes = [2, 697], strides = [1, 1]} : vector<2x725xbf16> to vector<2x697xbf16>
    %240 = vector.extract_strided_slice %238 {offsets = [0, 28], sizes = [2, 697], strides = [1, 1]} : vector<2x725xbf16> to vector<2x697xbf16>
    %241 = arith.maximumf %239, %240 : vector<2x697xbf16>
    %c3_20 = arith.constant 3 : index
    %242 = memref.load %arg3[%c3_20] : memref<6xf32, #tpu.memory_space<smem>>
    %243 = arith.truncf %242 : f32 to bf16
    %244 = vector.broadcast %243 : bf16 to vector<2x697xbf16>
    %245 = arith.addf %241, %244 : vector<2x697xbf16>
    %cst_21 = arith.constant 0.000000e+00 : bf16
    %246 = vector.broadcast %cst_21 : bf16 to vector<2x697xbf16>
    %247 = arith.maximumf %245, %246 : vector<2x697xbf16>
    %c3_22 = arith.constant 3 : index
    %c0_23 = arith.constant 0 : index
    %c0_24 = arith.constant 0 : index
    %248 = vector.load %arg4[%c3_22, %c0_23, %c0_24] : memref<6x697x10xbf16, #tpu.memory_space<vmem>>, vector<1x697x10xbf16>
    %249 = vector.shape_cast %248 : vector<1x697x10xbf16> to vector<697x10xbf16>
    %cst_25 = arith.constant dense<0.000000e+00> : vector<2x10xf32>
    %250 = tpu.matmul %247, %249, %cst_25 {dimension_numbers = #tpu.dot_dimension_numbers<[1], [0], [0], [1], [0, 0, 1, 1], [], []>} : vector<2x697xbf16>, vector<697x10xbf16>, vector<2x10xf32> -> vector<2x10xf32>
    %251 = arith.addf %191, %250 : vector<2x10xf32>
    %c36 = arith.constant 36 : index
    %252 = memref.load %arg2[%c36] : memref<54xf32, #tpu.memory_space<smem>>
    %253 = arith.truncf %252 : f32 to bf16
    %c37 = arith.constant 37 : index
    %254 = memref.load %arg2[%c37] : memref<54xf32, #tpu.memory_space<smem>>
    %255 = arith.truncf %254 : f32 to bf16
    %c38 = arith.constant 38 : index
    %256 = memref.load %arg2[%c38] : memref<54xf32, #tpu.memory_space<smem>>
    %257 = arith.truncf %256 : f32 to bf16
    %c39 = arith.constant 39 : index
    %258 = memref.load %arg2[%c39] : memref<54xf32, #tpu.memory_space<smem>>
    %259 = arith.truncf %258 : f32 to bf16
    %c40 = arith.constant 40 : index
    %260 = memref.load %arg2[%c40] : memref<54xf32, #tpu.memory_space<smem>>
    %261 = arith.truncf %260 : f32 to bf16
    %c41 = arith.constant 41 : index
    %262 = memref.load %arg2[%c41] : memref<54xf32, #tpu.memory_space<smem>>
    %263 = arith.truncf %262 : f32 to bf16
    %c42 = arith.constant 42 : index
    %264 = memref.load %arg2[%c42] : memref<54xf32, #tpu.memory_space<smem>>
    %265 = arith.truncf %264 : f32 to bf16
    %c43 = arith.constant 43 : index
    %266 = memref.load %arg2[%c43] : memref<54xf32, #tpu.memory_space<smem>>
    %267 = arith.truncf %266 : f32 to bf16
    %c44 = arith.constant 44 : index
    %268 = memref.load %arg2[%c44] : memref<54xf32, #tpu.memory_space<smem>>
    %269 = arith.truncf %268 : f32 to bf16
    %270 = vector.broadcast %253 : bf16 to vector<2x726xbf16>
    %271 = arith.mulf %2, %270 : vector<2x726xbf16>
    %272 = vector.broadcast %255 : bf16 to vector<2x726xbf16>
    %273 = arith.mulf %3, %272 : vector<2x726xbf16>
    %274 = arith.addf %271, %273 : vector<2x726xbf16>
    %275 = vector.broadcast %257 : bf16 to vector<2x726xbf16>
    %276 = arith.mulf %4, %275 : vector<2x726xbf16>
    %277 = arith.addf %274, %276 : vector<2x726xbf16>
    %278 = vector.broadcast %259 : bf16 to vector<2x726xbf16>
    %279 = arith.mulf %5, %278 : vector<2x726xbf16>
    %280 = arith.addf %277, %279 : vector<2x726xbf16>
    %281 = vector.broadcast %261 : bf16 to vector<2x726xbf16>
    %282 = arith.mulf %6, %281 : vector<2x726xbf16>
    %283 = arith.addf %280, %282 : vector<2x726xbf16>
    %284 = vector.broadcast %263 : bf16 to vector<2x726xbf16>
    %285 = arith.mulf %7, %284 : vector<2x726xbf16>
    %286 = arith.addf %283, %285 : vector<2x726xbf16>
    %287 = vector.broadcast %265 : bf16 to vector<2x726xbf16>
    %288 = arith.mulf %8, %287 : vector<2x726xbf16>
    %289 = arith.addf %286, %288 : vector<2x726xbf16>
    %290 = vector.broadcast %267 : bf16 to vector<2x726xbf16>
    %291 = arith.mulf %9, %290 : vector<2x726xbf16>
    %292 = arith.addf %289, %291 : vector<2x726xbf16>
    %293 = vector.broadcast %269 : bf16 to vector<2x726xbf16>
    %294 = arith.mulf %10, %293 : vector<2x726xbf16>
    %295 = arith.addf %292, %294 : vector<2x726xbf16>
    %296 = vector.extract_strided_slice %295 {offsets = [0, 0], sizes = [2, 725], strides = [1, 1]} : vector<2x726xbf16> to vector<2x725xbf16>
    %297 = vector.extract_strided_slice %295 {offsets = [0, 1], sizes = [2, 725], strides = [1, 1]} : vector<2x726xbf16> to vector<2x725xbf16>
    %298 = arith.maximumf %296, %297 : vector<2x725xbf16>
    %299 = vector.extract_strided_slice %298 {offsets = [0, 0], sizes = [2, 697], strides = [1, 1]} : vector<2x725xbf16> to vector<2x697xbf16>
    %300 = vector.extract_strided_slice %298 {offsets = [0, 28], sizes = [2, 697], strides = [1, 1]} : vector<2x725xbf16> to vector<2x697xbf16>
    %301 = arith.maximumf %299, %300 : vector<2x697xbf16>
    %c4_26 = arith.constant 4 : index
    %302 = memref.load %arg3[%c4_26] : memref<6xf32, #tpu.memory_space<smem>>
    %303 = arith.truncf %302 : f32 to bf16
    %304 = vector.broadcast %303 : bf16 to vector<2x697xbf16>
    %305 = arith.addf %301, %304 : vector<2x697xbf16>
    %cst_27 = arith.constant 0.000000e+00 : bf16
    %306 = vector.broadcast %cst_27 : bf16 to vector<2x697xbf16>
    %307 = arith.maximumf %305, %306 : vector<2x697xbf16>
    %c4_28 = arith.constant 4 : index
    %c0_29 = arith.constant 0 : index
    %c0_30 = arith.constant 0 : index
    %308 = vector.load %arg4[%c4_28, %c0_29, %c0_30] : memref<6x697x10xbf16, #tpu.memory_space<vmem>>, vector<1x697x10xbf16>
    %309 = vector.shape_cast %308 : vector<1x697x10xbf16> to vector<697x10xbf16>
    %cst_31 = arith.constant dense<0.000000e+00> : vector<2x10xf32>
    %310 = tpu.matmul %307, %309, %cst_31 {dimension_numbers = #tpu.dot_dimension_numbers<[1], [0], [0], [1], [0, 0, 1, 1], [], []>} : vector<2x697xbf16>, vector<697x10xbf16>, vector<2x10xf32> -> vector<2x10xf32>
    %311 = arith.addf %251, %310 : vector<2x10xf32>
    %c45 = arith.constant 45 : index
    %312 = memref.load %arg2[%c45] : memref<54xf32, #tpu.memory_space<smem>>
    %313 = arith.truncf %312 : f32 to bf16
    %c46 = arith.constant 46 : index
    %314 = memref.load %arg2[%c46] : memref<54xf32, #tpu.memory_space<smem>>
    %315 = arith.truncf %314 : f32 to bf16
    %c47 = arith.constant 47 : index
    %316 = memref.load %arg2[%c47] : memref<54xf32, #tpu.memory_space<smem>>
    %317 = arith.truncf %316 : f32 to bf16
    %c48 = arith.constant 48 : index
    %318 = memref.load %arg2[%c48] : memref<54xf32, #tpu.memory_space<smem>>
    %319 = arith.truncf %318 : f32 to bf16
    %c49 = arith.constant 49 : index
    %320 = memref.load %arg2[%c49] : memref<54xf32, #tpu.memory_space<smem>>
    %321 = arith.truncf %320 : f32 to bf16
    %c50 = arith.constant 50 : index
    %322 = memref.load %arg2[%c50] : memref<54xf32, #tpu.memory_space<smem>>
    %323 = arith.truncf %322 : f32 to bf16
    %c51 = arith.constant 51 : index
    %324 = memref.load %arg2[%c51] : memref<54xf32, #tpu.memory_space<smem>>
    %325 = arith.truncf %324 : f32 to bf16
    %c52 = arith.constant 52 : index
    %326 = memref.load %arg2[%c52] : memref<54xf32, #tpu.memory_space<smem>>
    %327 = arith.truncf %326 : f32 to bf16
    %c53 = arith.constant 53 : index
    %328 = memref.load %arg2[%c53] : memref<54xf32, #tpu.memory_space<smem>>
    %329 = arith.truncf %328 : f32 to bf16
    %330 = vector.broadcast %313 : bf16 to vector<2x726xbf16>
    %331 = arith.mulf %2, %330 : vector<2x726xbf16>
    %332 = vector.broadcast %315 : bf16 to vector<2x726xbf16>
    %333 = arith.mulf %3, %332 : vector<2x726xbf16>
    %334 = arith.addf %331, %333 : vector<2x726xbf16>
    %335 = vector.broadcast %317 : bf16 to vector<2x726xbf16>
    %336 = arith.mulf %4, %335 : vector<2x726xbf16>
    %337 = arith.addf %334, %336 : vector<2x726xbf16>
    %338 = vector.broadcast %319 : bf16 to vector<2x726xbf16>
    %339 = arith.mulf %5, %338 : vector<2x726xbf16>
    %340 = arith.addf %337, %339 : vector<2x726xbf16>
    %341 = vector.broadcast %321 : bf16 to vector<2x726xbf16>
    %342 = arith.mulf %6, %341 : vector<2x726xbf16>
    %343 = arith.addf %340, %342 : vector<2x726xbf16>
    %344 = vector.broadcast %323 : bf16 to vector<2x726xbf16>
    %345 = arith.mulf %7, %344 : vector<2x726xbf16>
    %346 = arith.addf %343, %345 : vector<2x726xbf16>
    %347 = vector.broadcast %325 : bf16 to vector<2x726xbf16>
    %348 = arith.mulf %8, %347 : vector<2x726xbf16>
    %349 = arith.addf %346, %348 : vector<2x726xbf16>
    %350 = vector.broadcast %327 : bf16 to vector<2x726xbf16>
    %351 = arith.mulf %9, %350 : vector<2x726xbf16>
    %352 = arith.addf %349, %351 : vector<2x726xbf16>
    %353 = vector.broadcast %329 : bf16 to vector<2x726xbf16>
    %354 = arith.mulf %10, %353 : vector<2x726xbf16>
    %355 = arith.addf %352, %354 : vector<2x726xbf16>
    %356 = vector.extract_strided_slice %355 {offsets = [0, 0], sizes = [2, 725], strides = [1, 1]} : vector<2x726xbf16> to vector<2x725xbf16>
    %357 = vector.extract_strided_slice %355 {offsets = [0, 1], sizes = [2, 725], strides = [1, 1]} : vector<2x726xbf16> to vector<2x725xbf16>
    %358 = arith.maximumf %356, %357 : vector<2x725xbf16>
    %359 = vector.extract_strided_slice %358 {offsets = [0, 0], sizes = [2, 697], strides = [1, 1]} : vector<2x725xbf16> to vector<2x697xbf16>
    %360 = vector.extract_strided_slice %358 {offsets = [0, 28], sizes = [2, 697], strides = [1, 1]} : vector<2x725xbf16> to vector<2x697xbf16>
    %361 = arith.maximumf %359, %360 : vector<2x697xbf16>
    %c5_32 = arith.constant 5 : index
    %362 = memref.load %arg3[%c5_32] : memref<6xf32, #tpu.memory_space<smem>>
    %363 = arith.truncf %362 : f32 to bf16
    %364 = vector.broadcast %363 : bf16 to vector<2x697xbf16>
    %365 = arith.addf %361, %364 : vector<2x697xbf16>
    %cst_33 = arith.constant 0.000000e+00 : bf16
    %366 = vector.broadcast %cst_33 : bf16 to vector<2x697xbf16>
    %367 = arith.maximumf %365, %366 : vector<2x697xbf16>
    %c5_34 = arith.constant 5 : index
    %c0_35 = arith.constant 0 : index
    %c0_36 = arith.constant 0 : index
    %368 = vector.load %arg4[%c5_34, %c0_35, %c0_36] : memref<6x697x10xbf16, #tpu.memory_space<vmem>>, vector<1x697x10xbf16>
    %369 = vector.shape_cast %368 : vector<1x697x10xbf16> to vector<697x10xbf16>
    %cst_37 = arith.constant dense<0.000000e+00> : vector<2x10xf32>
    %370 = tpu.matmul %367, %369, %cst_37 {dimension_numbers = #tpu.dot_dimension_numbers<[1], [0], [0], [1], [0, 0, 1, 1], [], []>} : vector<2x697xbf16>, vector<697x10xbf16>, vector<2x10xf32> -> vector<2x10xf32>
    %371 = arith.addf %311, %370 : vector<2x10xf32>
    %c0_38 = arith.constant 0 : index
    %c0_39 = arith.constant 0 : index
    %372 = vector.load %arg5[%c0_38, %c0_39] : memref<1x10xf32, #tpu.memory_space<vmem>>, vector<1x10xf32>
    %373 = vector.broadcast %372 : vector<1x10xf32> to vector<2x10xf32>
    %374 = arith.addf %371, %373 : vector<2x10xf32>
    %c0_40 = arith.constant 0 : index
    %c0_41 = arith.constant 0 : index
    %375 = vector.load %arg6[%c0_40, %c0_41] : memref<2x10xf32, #tpu.memory_space<vmem>>, vector<2x10xf32>
    tpu.vector_store %arg6[%c0_40, %c0_41], %374 {strides = array<i32>} : memref<2x10xf32, #tpu.memory_space<vmem>>, vector<2x10xf32>,
    return
  }
  func.func @transform_0(%arg0: i32) -> (i32, i32) {
    %c0_i32 = arith.constant 0 : i32
    %c0_i32_0 = arith.constant 0 : i32
    return %arg0, %c0_i32 : i32, i32
  }
  func.func @transform_1(%arg0: i32) -> i32 {
    %c0_i32 = arith.constant 0 : i32
    %c0_i32_0 = arith.constant 0 : i32
    return %c0_i32 : i32
  }
  func.func @transform_2(%arg0: i32) -> i32 {
    %c0_i32 = arith.constant 0 : i32
    %c0_i32_0 = arith.constant 0 : i32
    return %c0_i32 : i32
  }
  func.func @transform_3(%arg0: i32) -> (i32, i32, i32) {
    %c0_i32 = arith.constant 0 : i32
    %c0_i32_0 = arith.constant 0 : i32
    %c0_i32_1 = arith.constant 0 : i32
    %c0_i32_2 = arith.constant 0 : i32
    return %c0_i32, %c0_i32_0, %c0_i32_1 : i32, i32, i32
  }
  func.func @transform_4(%arg0: i32) -> (i32, i32) {
    %c0_i32 = arith.constant 0 : i32
    %c0_i32_0 = arith.constant 0 : i32
    %c0_i32_1 = arith.constant 0 : i32
    return %c0_i32, %c0_i32_0 : i32, i32
  }
  func.func @transform_5(%arg0: i32) -> (i32, i32) {
    %c0_i32 = arith.constant 0 : i32
    %c0_i32_0 = arith.constant 0 : i32
    return %arg0, %c0_i32 : i32, i32
  }
}

</mosaic_0001>

<llo_original>
// kernel: annet_forward.1
$region0: #{annet_forward.1}
  #allocation0 [shape = 'u32[]', space=smem, size = 0x4, offset = 0x4, fixed_abs, tag = 'smem constant byte address 0x4 - core index']
  #allocation1 [shape = 'u32[144,128]{1,0:T(1,128)}', space=vmem, size = 0x12000, scoped, tag = 'internal scratch']
  %s0 = inlined_call_operand.vmem [shape: f32[2,784], index: 0, kind: input, shape index: {}]
  %s1 = inlined_call_operand.vmem [shape: f32[54], index: 1, kind: input, shape index: {}]
  %s2 = inlined_call_operand.vmem [shape: f32[6], index: 2, kind: input, shape index: {}]
  %s3 = inlined_call_operand.vmem [shape: bf16[6,697,10], index: 3, kind: input, shape index: {}]
  %s4 = inlined_call_operand.vmem [shape: f32[1,10], index: 4, kind: input, shape index: {}]
  %s5 = inlined_call_operand.hbm [shape: f32[2,10], index: 5, kind: output, shape index: {}]
  %s6 = sld [smem:[#allocation0]]
  $region38: #{annet_forward.1} parent=0
    _
  %s8 = ssub.s32 1, %s6
  %s9 = scalar_select 0, %s8, %s6
  $region1: #{annet_forward.1} parent=0
    #allocation2 [shape = 'u8[512]{0}', space=smem, size = 0x200, scoped, tag = 'input window, operand 1, single buffered']
    #allocation3 [shape = 's32[1]{0}', space=sflag, size = 0x4, scoped, tag = 'scoped memory for annet_forward.1']
    #allocation4 [shape = 's32[1]{0}', space=sflag, size = 0x4, scoped, tag = 'scoped memory for annet_forward.1']
    #allocation5 [shape = 'u8[512]{0}', space=smem, size = 0x200, scoped, tag = 'input window, operand 2, single buffered']
    #allocation6 [shape = 's32[1]{0}', space=sflag, size = 0x4, scoped, tag = 'scoped memory for annet_forward.1']
    #allocation7 [shape = 'u8[1024]{0}', space=vmem, size = 0x400, scoped, tag = 'output window, operand 0, single buffered']
    %10 = vsyncpa [#allocation4], 0
    %11 = vsyncpa [#allocation6], 0
    %12 = vsyncpa [#allocation3], 0
    // Predicated region
    $region2: #{annet_forward.1} parent=1 // pred_check
      _
    $region3: #{annet_forward.1} parent=1 // pred_check_branch
      %14 = sbr.rel (0) target = $region5
    $region4: #{annet_forward.1} parent=1 // pred_region
      _
    $region5: #{annet_forward.1} parent=1 // pred_fallthru
      _
    // Predicated region
    $region6: #{annet_forward.1} parent=1 // pred_check
      _
    $region7: #{annet_forward.1} parent=1 // pred_check_branch
      %16 = sbr.rel (0) target = $region9
    $region8: #{annet_forward.1} parent=1 // pred_region
      %s18 = ssub.s32 16, 16
      %19 = vsyncadd [#allocation4], %s18
      %s21 = sshll.u32 %s1, 4
      %s22 = int_to_ptr.vmem [resolvable:$true] %s21
      %24 = dma.vmem_to_smem %s22, 16, [#allocation2], [#allocation4]
    $region9: #{annet_forward.1} parent=1 // pred_fallthru
      _
    // Predicated region
    $region10: #{annet_forward.1} parent=1 // pred_check
      _
    $region11: #{annet_forward.1} parent=1 // pred_check_branch
      %26 = sbr.rel (0) target = $region13
    $region12: #{annet_forward.1} parent=1 // pred_region
      %s28 = ssub.s32 16, 16
      %29 = vsyncadd [#allocation6], %s28
      %s31 = sshll.u32 %s2, 4
      %s32 = int_to_ptr.vmem [resolvable:$true] %s31
      %34 = dma.vmem_to_smem %s32, 16, [#allocation5], [#allocation6]
    $region13: #{annet_forward.1} parent=1 // pred_fallthru
      _
    // Predicated region
    $region14: #{annet_forward.1} parent=1 // pred_check
      _
    $region15: #{annet_forward.1} parent=1 // pred_check_branch
      %36 = sbr.rel (0) target = $region17
    $region16: #{annet_forward.1} parent=1 // pred_region
      _
    $region17: #{annet_forward.1} parent=1 // pred_fallthru
      _
    // Predicated region
    $region18: #{annet_forward.1} parent=1 // pred_check
      _
    $region19: #{annet_forward.1} parent=1 // pred_check_branch
      %38 = sbr.rel (0) target = $region21
    $region20: #{annet_forward.1} parent=1 // pred_region
      _
    $region21: #{annet_forward.1} parent=1 // pred_fallthru
      _
    // Predicated region
    $region22: #{annet_forward.1} parent=1 // pred_check
      _
    $region23: #{annet_forward.1} parent=1 // pred_check_branch
      %40 = sbr.rel (0) target = $region25
    $region24: #{annet_forward.1} parent=1 // pred_region
      %41 = dma.done [#allocation4], 16
    $region25: #{annet_forward.1} parent=1 // pred_fallthru
      _
    // Predicated region
    $region26: #{annet_forward.1} parent=1 // pred_check
      _
    $region27: #{annet_forward.1} parent=1 // pred_check_branch
      %43 = sbr.rel (0) target = $region29
    $region28: #{annet_forward.1} parent=1 // pred_region
      %44 = dma.done [#allocation6], 16
    $region29: #{annet_forward.1} parent=1 // pred_fallthru
      _
    %45 = sfence
    %v47 = vld [vmem:[%s0] sm:$0xff]
    %v48 = vld [vmem:[%s0 + $0x8] sm:$0x3f]
    %v51 = vcombine.high %v47, %v47
    %v53 = vunpack.c.l.s4 1983009808
    %v54 = vunpack.c.0.s8 %v53
    %v55 = vlaneseq
    %v56 = vshrl.u32 %v55, 7
    %v57 = vsub.s32 %v54, %v56
    %v58 = vrot.slane %v47, %v57
    %v60 = vunpack.c.l.s4 1983009808
    %v61 = vunpack.c.0.s8 %v60
    %v62 = vlaneseq
    %v63 = vshrl.u32 %v62, 7
    %v64 = vsub.s32 %v61, %v63
    %v65 = vrot.slane %v51, %v64
    %v66 = vcombine.high %v58, %v58
    %v67 = vcombine.high %v65, %v65
    %v68 = vcombine.high %v48, %v48
    %v70 = vunpack.c.l.s4 1983009808
    %v71 = vunpack.c.0.s8 %v70
    %v72 = vlaneseq
    %v73 = vshrl.u32 %v72, 7
    %v74 = vsub.s32 %v71, %v73
    %v75 = vrot.slane %v48, %v74
    %v77 = vunpack.c.l.s4 1983009808
    %v78 = vunpack.c.0.s8 %v77
    %v79 = vlaneseq
    %v80 = vshrl.u32 %v79, 7
    %v81 = vsub.s32 %v78, %v80
    %v82 = vrot.slane %v68, %v81
    %v83 = vcombine.high %v75, %v75
    %v91 = vpack.c.bf16 %v58, %v58
    %v92 = vpack.c.bf16 %v66, %v66
    %v93 = vpack.c.bf16 %v65, %v65
    %v94 = vpack.c.bf16 %v67, %v67
    %v95 = vpack.c.bf16 %v75, %v75
    %v96 = vpack.c.bf16 %v83, %v83
    %v97 = vpack.c.bf16 %v82, %v82
    %s98 = sld [smem:[#allocation2]]
    %p100 = scmp.ne.f32.partialorder %s98, %s98
    %s101 = sshrl.u32 %s98, 16
    %s102 = sand.u32 %s101, 1
    %s103 = sadd.s32 32767, %s102
    %s104 = sadd.s32 %s98, %s103
    %s105 = sand.u32 %s104, 4294901760
    %s106 = scalar_select %p100, 2143289344, %s105
    %s108 = sshrl.u32 %s106, 16
    %s109 = sld [smem:[#allocation2 + $0x1]]
    %p111 = scmp.ne.f32.partialorder %s109, %s109
    %s112 = sshrl.u32 %s109, 16
    %s113 = sand.u32 %s112, 1
    %s114 = sadd.s32 32767, %s113
    %s115 = sadd.s32 %s109, %s114
    %s116 = sand.u32 %s115, 4294901760
    %s117 = scalar_select %p111, 2143289344, %s116
    %s119 = sshrl.u32 %s117, 16
    %s120 = sld [smem:[#allocation2 + $0x2]]
    %p122 = scmp.ne.f32.partialorder %s120, %s120
    %s123 = sshrl.u32 %s120, 16
    %s124 = sand.u32 %s123, 1
    %s125 = sadd.s32 32767, %s124
    %s126 = sadd.s32 %s120, %s125
    %s127 = sand.u32 %s126, 4294901760
    %s128 = scalar_select %p122, 2143289344, %s127
    %s130 = sshrl.u32 %s128, 16
    %s131 = sld [smem:[#allocation2 + $0x3]]
    %p133 = scmp.ne.f32.partialorder %s131, %s131
    %s134 = sshrl.u32 %s131, 16
    %s135 = sand.u32 %s134, 1
    %s136 = sadd.s32 32767, %s135
    %s137 = sadd.s32 %s131, %s136
    %s138 = sand.u32 %s137, 4294901760
    %s139 = scalar_select %p133, 2143289344, %s138
    %s141 = sshrl.u32 %s139, 16
    %s142 = sld [smem:[#allocation2 + $0x4]]
    %p144 = scmp.ne.f32.partialorder %s142, %s142
    %s145 = sshrl.u32 %s142, 16
    %s146 = sand.u32 %s145, 1
    %s147 = sadd.s32 32767, %s146
    %s148 = sadd.s32 %s142, %s147
    %s149 = sand.u32 %s148, 4294901760
    %s150 = scalar_select %p144, 2143289344, %s149
    %s152 = sshrl.u32 %s150, 16
    %s153 = sld [smem:[#allocation2 + $0x5]]
    %p155 = scmp.ne.f32.partialorder %s153, %s153
    %s156 = sshrl.u32 %s153, 16
    %s157 = sand.u32 %s156, 1
    %s158 = sadd.s32 32767, %s157
    %s159 = sadd.s32 %s153, %s158
    %s160 = sand.u32 %s159, 4294901760
    %s161 = scalar_select %p155, 2143289344, %s160
    %s163 = sshrl.u32 %s161, 16
    %s164 = sld [smem:[#allocation2 + $0x6]]
    %p166 = scmp.ne.f32.partialorder %s164, %s164
    %s167 = sshrl.u32 %s164, 16
    %s168 = sand.u32 %s167, 1
    %s169 = sadd.s32 32767, %s168
    %s170 = sadd.s32 %s164, %s169
    %s171 = sand.u32 %s170, 4294901760
    %s172 = scalar_select %p166, 2143289344, %s171
    %s174 = sshrl.u32 %s172, 16
    %s175 = sld [smem:[#allocation2 + $0x7]]
    %p177 = scmp.ne.f32.partialorder %s175, %s175
    %s178 = sshrl.u32 %s175, 16
    %s179 = sand.u32 %s178, 1
    %s180 = sadd.s32 32767, %s179
    %s181 = sadd.s32 %s175, %s180
    %s182 = sand.u32 %s181, 4294901760
    %s183 = scalar_select %p177, 2143289344, %s182
    %s185 = sshrl.u32 %s183, 16
    %s186 = sld [smem:[#allocation2 + $0x8]]
    %p188 = scmp.ne.f32.partialorder %s186, %s186
    %s189 = sshrl.u32 %s186, 16
    %s190 = sand.u32 %s189, 1
    %s191 = sadd.s32 32767, %s190
    %s192 = sadd.s32 %s186, %s191
    %s193 = sand.u32 %s192, 4294901760
    %s194 = scalar_select %p188, 2143289344, %s193
    %s196 = sshrl.u32 %s194, 16
    %s197 = sshll.u32 %s108, 16
    %s198 = sor.u32 %s108, %s197
    %v199 = vstv %s198
    %v201 = vmul.bf16 %v91, %v199
    %v202 = vmul.bf16 %v92, %v199
    %v203 = vmul.bf16 %v93, %v199
    %v204 = vmul.bf16 %v94, %v199
    %v205 = vmul.bf16 %v95, %v199
    %v206 = vmul.bf16 %v96, %v199
    %s207 = sshll.u32 %s119, 16
    %s208 = sor.u32 %s119, %s207
    %v209 = vstv %s208
    %v211 = vmul.bf16 %v91, %v209
    %v212 = vmul.bf16 %v92, %v209
    %v213 = vmul.bf16 %v93, %v209
    %v214 = vmul.bf16 %v94, %v209
    %v215 = vmul.bf16 %v95, %v209
    %v216 = vmul.bf16 %v96, %v209
    %223 = vrot.lane.b32.xlu0 %v211, 127
    %v224 = vpop.permute.xlu0 %223
    %225 = vrot.lane.b32.xlu0 %v212, 127
    %v226 = vpop.permute.xlu0 %225
    %227 = vrot.lane.b32.xlu0 %v213, 127
    %v228 = vpop.permute.xlu0 %227
    %229 = vrot.lane.b32.xlu0 %v214, 127
    %v230 = vpop.permute.xlu0 %229
    %231 = vrot.lane.b32.xlu0 %v215, 127
    %v232 = vpop.permute.xlu0 %231
    %233 = vrot.lane.b32.xlu0 %v216, 127
    %v234 = vpop.permute.xlu0 %233
    %vm235 = vcmask 1039360
    %v236 = vsel %vm235, %v224, %v226
    %v237 = vsel %vm235, %v226, %v228
    %v238 = vsel %vm235, %v228, %v230
    %v239 = vsel %vm235, %v230, %v232
    %v240 = vsel %vm235, %v232, %v234
    %v247 = vadd.bf16 %v201, %v236
    %v248 = vadd.bf16 %v202, %v237
    %v249 = vadd.bf16 %v203, %v238
    %v250 = vadd.bf16 %v204, %v239
    %v251 = vadd.bf16 %v205, %v240
    %v252 = vadd.bf16 %v206, %v234
    %s253 = sshll.u32 %s130, 16
    %s254 = sor.u32 %s130, %s253
    %v255 = vstv %s254
    %v257 = vmul.bf16 %v91, %v255
    %v258 = vmul.bf16 %v92, %v255
    %v259 = vmul.bf16 %v93, %v255
    %v260 = vmul.bf16 %v94, %v255
    %v261 = vmul.bf16 %v95, %v255
    %v262 = vmul.bf16 %v96, %v255
    %269 = vrot.lane.b32.xlu0 %v257, 126
    %v270 = vpop.permute.xlu0 %269
    %271 = vrot.lane.b32.xlu0 %v258, 126
    %v272 = vpop.permute.xlu0 %271
    %273 = vrot.lane.b32.xlu0 %v259, 126
    %v274 = vpop.permute.xlu0 %273
    %275 = vrot.lane.b32.xlu0 %v260, 126
    %v276 = vpop.permute.xlu0 %275
    %277 = vrot.lane.b32.xlu0 %v261, 126
    %v278 = vpop.permute.xlu0 %277
    %279 = vrot.lane.b32.xlu0 %v262, 126
    %v280 = vpop.permute.xlu0 %279
    %vm281 = vcmask 1031168
    %v282 = vsel %vm281, %v270, %v272
    %v283 = vsel %vm281, %v272, %v274
    %v284 = vsel %vm281, %v274, %v276
    %v285 = vsel %vm281, %v276, %v278
    %v286 = vsel %vm281, %v278, %v280
    %v293 = vadd.bf16 %v247, %v282
    %v294 = vadd.bf16 %v248, %v283
    %v295 = vadd.bf16 %v249, %v284
    %v296 = vadd.bf16 %v250, %v285
    %v297 = vadd.bf16 %v251, %v286
    %v298 = vadd.bf16 %v252, %v280
    %s299 = sshll.u32 %s141, 16
    %s300 = sor.u32 %s141, %s299
    %v301 = vstv %s300
    %v303 = vmul.bf16 %v91, %v301
    %v304 = vmul.bf16 %v92, %v301
    %v305 = vmul.bf16 %v93, %v301
    %v306 = vmul.bf16 %v94, %v301
    %v307 = vmul.bf16 %v95, %v301
    %v308 = vmul.bf16 %v96, %v301
    %315 = vrot.lane.b32.xlu0 %v303, 100
    %v316 = vpop.permute.xlu0 %315
    %317 = vrot.lane.b32.xlu0 %v304, 100
    %v318 = vpop.permute.xlu0 %317
    %319 = vrot.lane.b32.xlu0 %v305, 100
    %v320 = vpop.permute.xlu0 %319
    %321 = vrot.lane.b32.xlu0 %v306, 100
    %v322 = vpop.permute.xlu0 %321
    %323 = vrot.lane.b32.xlu0 %v307, 100
    %v324 = vpop.permute.xlu0 %323
    %325 = vrot.lane.b32.xlu0 %v308, 100
    %v326 = vpop.permute.xlu0 %325
    %vm327 = vcmask 818176
    %v328 = vsel %vm327, %v316, %v318
    %v329 = vsel %vm327, %v318, %v320
    %v330 = vsel %vm327, %v320, %v322
    %v331 = vsel %vm327, %v322, %v324
    %v332 = vsel %vm327, %v324, %v326
    %v339 = vadd.bf16 %v293, %v328
    %v340 = vadd.bf16 %v294, %v329
    %v341 = vadd.bf16 %v295, %v330
    %v342 = vadd.bf16 %v296, %v331
    %v343 = vadd.bf16 %v297, %v332
    %v344 = vadd.bf16 %v298, %v326
    %s345 = sshll.u32 %s152, 16
    %s346 = sor.u32 %s152, %s345
    %v347 = vstv %s346
    %v349 = vmul.bf16 %v91, %v347
    %v350 = vmul.bf16 %v92, %v347
    %v351 = vmul.bf16 %v93, %v347
    %v352 = vmul.bf16 %v94, %v347
    %v353 = vmul.bf16 %v95, %v347
    %v354 = vmul.bf16 %v96, %v347
    %361 = vrot.lane.b32.xlu0 %v349, 99
    %v362 = vpop.permute.xlu0 %361
    %363 = vrot.lane.b32.xlu0 %v350, 99
    %v364 = vpop.permute.xlu0 %363
    %365 = vrot.lane.b32.xlu0 %v351, 99
    %v366 = vpop.permute.xlu0 %365
    %367 = vrot.lane.b32.xlu0 %v352, 99
    %v368 = vpop.permute.xlu0 %367
    %369 = vrot.lane.b32.xlu0 %v353, 99
    %v370 = vpop.permute.xlu0 %369
    %371 = vrot.lane.b32.xlu0 %v354, 99
    %v372 = vpop.permute.xlu0 %371
    %vm373 = vcmask 809984
    %v374 = vsel %vm373, %v362, %v364
    %v375 = vsel %vm373, %v364, %v366
    %v376 = vsel %vm373, %v366, %v368
    %v377 = vsel %vm373, %v368, %v370
    %v378 = vsel %vm373, %v370, %v372
    %v385 = vadd.bf16 %v339, %v374
    %v386 = vadd.bf16 %v340, %v375
    %v387 = vadd.bf16 %v341, %v376
    %v388 = vadd.bf16 %v342, %v377
    %v389 = vadd.bf16 %v343, %v378
    %v390 = vadd.bf16 %v344, %v372
    %s391 = sshll.u32 %s163, 16
    %s392 = sor.u32 %s163, %s391
    %v393 = vstv %s392
    %v395 = vmul.bf16 %v91, %v393
    %v396 = vmul.bf16 %v92, %v393
    %v397 = vmul.bf16 %v93, %v393
    %v398 = vmul.bf16 %v94, %v393
    %v399 = vmul.bf16 %v95, %v393
    %v400 = vmul.bf16 %v96, %v393
    %407 = vrot.lane.b32.xlu0 %v395, 98
    %v408 = vpop.permute.xlu0 %407
    %409 = vrot.lane.b32.xlu0 %v396, 98
    %v410 = vpop.permute.xlu0 %409
    %411 = vrot.lane.b32.xlu0 %v397, 98
    %v412 = vpop.permute.xlu0 %411
    %413 = vrot.lane.b32.xlu0 %v398, 98
    %v414 = vpop.permute.xlu0 %413
    %415 = vrot.lane.b32.xlu0 %v399, 98
    %v416 = vpop.permute.xlu0 %415
    %417 = vrot.lane.b32.xlu0 %v400, 98
    %v418 = vpop.permute.xlu0 %417
    %vm419 = vcmask 801792
    %v420 = vsel %vm419, %v408, %v410
    %v421 = vsel %vm419, %v410, %v412
    %v422 = vsel %vm419, %v412, %v414
    %v423 = vsel %vm419, %v414, %v416
    %v424 = vsel %vm419, %v416, %v418
    %v431 = vadd.bf16 %v385, %v420
    %v432 = vadd.bf16 %v386, %v421
    %v433 = vadd.bf16 %v387, %v422
    %v434 = vadd.bf16 %v388, %v423
    %v435 = vadd.bf16 %v389, %v424
    %v436 = vadd.bf16 %v390, %v418
    %s437 = sshll.u32 %s174, 16
    %s438 = sor.u32 %s174, %s437
    %v439 = vstv %s438
    %v441 = vmul.bf16 %v91, %v439
    %v442 = vmul.bf16 %v92, %v439
    %v443 = vmul.bf16 %v93, %v439
    %v444 = vmul.bf16 %v94, %v439
    %v445 = vmul.bf16 %v95, %v439
    %v446 = vmul.bf16 %v96, %v439
    %v447 = vmul.bf16 %v97, %v439
    %455 = vrot.lane.b32.xlu0 %v441, 72
    %v456 = vpop.permute.xlu0 %455
    %457 = vrot.lane.b32.xlu0 %v442, 72
    %v458 = vpop.permute.xlu0 %457
    %459 = vrot.lane.b32.xlu0 %v443, 72
    %v460 = vpop.permute.xlu0 %459
    %461 = vrot.lane.b32.xlu0 %v444, 72
    %v462 = vpop.permute.xlu0 %461
    %463 = vrot.lane.b32.xlu0 %v445, 72
    %v464 = vpop.permute.xlu0 %463
    %465 = vrot.lane.b32.xlu0 %v446, 72
    %v466 = vpop.permute.xlu0 %465
    %467 = vrot.lane.b32.xlu0 %v447, 72
    %v468 = vpop.permute.xlu0 %467
    %vm469 = vcmask 588800
    %v470 = vsel %vm469, %v456, %v458
    %v471 = vsel %vm469, %v458, %v460
    %v472 = vsel %vm469, %v460, %v462
    %v473 = vsel %vm469, %v462, %v464
    %v474 = vsel %vm469, %v464, %v466
    %v475 = vsel %vm469, %v466, %v468
    %v482 = vadd.bf16 %v431, %v470
    %v483 = vadd.bf16 %v432, %v471
    %v484 = vadd.bf16 %v433, %v472
    %v485 = vadd.bf16 %v434, %v473
    %v486 = vadd.bf16 %v435, %v474
    %v487 = vadd.bf16 %v436, %v475
    %s488 = sshll.u32 %s185, 16
    %s489 = sor.u32 %s185, %s488
    %v490 = vstv %s489
    %v492 = vmul.bf16 %v91, %v490
    %v493 = vmul.bf16 %v92, %v490
    %v494 = vmul.bf16 %v93, %v490
    %v495 = vmul.bf16 %v94, %v490
    %v496 = vmul.bf16 %v95, %v490
    %v497 = vmul.bf16 %v96, %v490
    %v498 = vmul.bf16 %v97, %v490
    %506 = vrot.lane.b32.xlu0 %v492, 71
    %v507 = vpop.permute.xlu0 %506
    %508 = vrot.lane.b32.xlu0 %v493, 71
    %v509 = vpop.permute.xlu0 %508
    %510 = vrot.lane.b32.xlu0 %v494, 71
    %v511 = vpop.permute.xlu0 %510
    %512 = vrot.lane.b32.xlu0 %v495, 71
    %v513 = vpop.permute.xlu0 %512
    %514 = vrot.lane.b32.xlu0 %v496, 71
    %v515 = vpop.permute.xlu0 %514
    %516 = vrot.lane.b32.xlu0 %v497, 71
    %v517 = vpop.permute.xlu0 %516
    %518 = vrot.lane.b32.xlu0 %v498, 71
    %v519 = vpop.permute.xlu0 %518
    %vm520 = vcmask 580608
    %v521 = vsel %vm520, %v507, %v509
    %v522 = vsel %vm520, %v509, %v511
    %v523 = vsel %vm520, %v511, %v513
    %v524 = vsel %vm520, %v513, %v515
    %v525 = vsel %vm520, %v515, %v517
    %v526 = vsel %vm520, %v517, %v519
    %v533 = vadd.bf16 %v482, %v521
    %v534 = vadd.bf16 %v483, %v522
    %v535 = vadd.bf16 %v484, %v523
    %v536 = vadd.bf16 %v485, %v524
    %v537 = vadd.bf16 %v486, %v525
    %v538 = vadd.bf16 %v487, %v526
    %s539 = sshll.u32 %s196, 16
    %s540 = sor.u32 %s196, %s539
    %v541 = vstv %s540
    %v543 = vmul.bf16 %v91, %v541
    %v544 = vmul.bf16 %v92, %v541
    %v545 = vmul.bf16 %v93, %v541
    %v546 = vmul.bf16 %v94, %v541
    %v547 = vmul.bf16 %v95, %v541
    %v548 = vmul.bf16 %v96, %v541
    %v549 = vmul.bf16 %v97, %v541
    %557 = vrot.lane.b32.xlu0 %v543, 70
    %v558 = vpop.permute.xlu0 %557
    %559 = vrot.lane.b32.xlu0 %v544, 70
    %v560 = vpop.permute.xlu0 %559
    %561 = vrot.lane.b32.xlu0 %v545, 70
    %v562 = vpop.permute.xlu0 %561
    %563 = vrot.lane.b32.xlu0 %v546, 70
    %v564 = vpop.permute.xlu0 %563
    %565 = vrot.lane.b32.xlu0 %v547, 70
    %v566 = vpop.permute.xlu0 %565
    %567 = vrot.lane.b32.xlu0 %v548, 70
    %v568 = vpop.permute.xlu0 %567
    %569 = vrot.lane.b32.xlu0 %v549, 70
    %v570 = vpop.permute.xlu0 %569
    %vm571 = vcmask 572416
    %v572 = vsel %vm571, %v558, %v560
    %v573 = vsel %vm571, %v560, %v562
    %v574 = vsel %vm571, %v562, %v564
    %v575 = vsel %vm571, %v564, %v566
    %v576 = vsel %vm571, %v566, %v568
    %v577 = vsel %vm571, %v568, %v570
    %v584 = vadd.bf16 %v533, %v572
    %v585 = vadd.bf16 %v534, %v573
    %v586 = vadd.bf16 %v535, %v574
    %v587 = vadd.bf16 %v536, %v575
    %v588 = vadd.bf16 %v537, %v576
    %v589 = vadd.bf16 %v538, %v577
    %596 = vrot.lane.b32.xlu0 %v584, 127
    %v597 = vpop.permute.xlu0 %596
    %598 = vrot.lane.b32.xlu0 %v585, 127
    %v599 = vpop.permute.xlu0 %598
    %600 = vrot.lane.b32.xlu0 %v586, 127
    %v601 = vpop.permute.xlu0 %600
    %602 = vrot.lane.b32.xlu0 %v587, 127
    %v603 = vpop.permute.xlu0 %602
    %604 = vrot.lane.b32.xlu0 %v588, 127
    %v605 = vpop.permute.xlu0 %604
    %606 = vrot.lane.b32.xlu0 %v589, 127
    %v607 = vpop.permute.xlu0 %606
    %v608 = vsel %vm235, %v597, %v599
    %v609 = vsel %vm235, %v599, %v601
    %v610 = vsel %vm235, %v601, %v603
    %v611 = vsel %vm235, %v603, %v605
    %v612 = vsel %vm235, %v605, %v607
    %v619 = vmax.bf16 %v584, %v608
    %v620 = vmax.bf16 %v585, %v609
    %v621 = vmax.bf16 %v586, %v610
    %v622 = vmax.bf16 %v587, %v611
    %v623 = vmax.bf16 %v588, %v612
    %v624 = vmax.bf16 %v589, %v607
    %631 = vrot.lane.b32.xlu0 %v619, 100
    %v632 = vpop.permute.xlu0 %631
    %633 = vrot.lane.b32.xlu0 %v620, 100
    %v634 = vpop.permute.xlu0 %633
    %635 = vrot.lane.b32.xlu0 %v621, 100
    %v636 = vpop.permute.xlu0 %635
    %637 = vrot.lane.b32.xlu0 %v622, 100
    %v638 = vpop.permute.xlu0 %637
    %639 = vrot.lane.b32.xlu0 %v623, 100
    %v640 = vpop.permute.xlu0 %639
    %641 = vrot.lane.b32.xlu0 %v624, 100
    %v642 = vpop.permute.xlu0 %641
    %v643 = vsel %vm327, %v632, %v634
    %v644 = vsel %vm327, %v634, %v636
    %v645 = vsel %vm327, %v636, %v638
    %v646 = vsel %vm327, %v638, %v640
    %v647 = vsel %vm327, %v640, %v642
    %v654 = vmax.bf16 %v619, %v643
    %v655 = vmax.bf16 %v620, %v644
    %v656 = vmax.bf16 %v621, %v645
    %v657 = vmax.bf16 %v622, %v646
    %v658 = vmax.bf16 %v623, %v647
    %v659 = vmax.bf16 %v624, %v642
    %s660 = sld [smem:[#allocation5]]
    %p662 = scmp.ne.f32.partialorder %s660, %s660
    %s663 = sshrl.u32 %s660, 16
    %s664 = sand.u32 %s663, 1
    %s665 = sadd.s32 32767, %s664
    %s666 = sadd.s32 %s660, %s665
    %s667 = sand.u32 %s666, 4294901760
    %s668 = scalar_select %p662, 2143289344, %s667
    %s670 = sshrl.u32 %s668, 16
    %s671 = sshll.u32 %s670, 16
    %s672 = sor.u32 %s670, %s671
    %v673 = vstv %s672
    %v675 = vadd.bf16 %v654, %v673
    %v676 = vadd.bf16 %v655, %v673
    %v677 = vadd.bf16 %v656, %v673
    %v678 = vadd.bf16 %v657, %v673
    %v679 = vadd.bf16 %v658, %v673
    %v680 = vadd.bf16 %v659, %v673
    %v681 = vmax.bf16 %v675, 0
    %v682 = vmax.bf16 %v676, 0
    %v683 = vmax.bf16 %v677, 0
    %v684 = vmax.bf16 %v678, 0
    %v685 = vmax.bf16 %v679, 0
    %v686 = vmax.bf16 %v680, 0
    %v687 = vld [vmem:[%s3] sm:$0xf]
    %v688 = vld [vmem:[%s3 + $0x4] sm:$0xf]
    %v689 = vld [vmem:[%s3 + $0x8] sm:$0xf]
    %v690 = vld [vmem:[%s3 + $0xc] sm:$0xf]
    %v691 = vld [vmem:[%s3 + $0x10] sm:$0xf]
    %v692 = vld [vmem:[%s3 + $0x14] sm:$0xf]
    %v693 = vld [vmem:[%s3 + $0x18] sm:$0xf]
    %v694 = vld [vmem:[%s3 + $0x1c] sm:$0xf]
    %v695 = vld [vmem:[%s3 + $0x20] sm:$0xf]
    %v696 = vld [vmem:[%s3 + $0x24] sm:$0xf]
    %v697 = vld [vmem:[%s3 + $0x28] sm:$0xf]
    %v698 = vld [vmem:[%s3 + $0x2c] sm:$0xf]
    %v699 = vld [vmem:[%s3 + $0x30] sm:$0xf]
    %v700 = vld [vmem:[%s3 + $0x34] sm:$0xf]
    %v701 = vld [vmem:[%s3 + $0x38] sm:$0xf]
    %v702 = vld [vmem:[%s3 + $0x3c] sm:$0xf]
    %v703 = vld [vmem:[%s3 + $0x40] sm:$0xf]
    %v704 = vld [vmem:[%s3 + $0x44] sm:$0xf]
    %v705 = vld [vmem:[%s3 + $0x48] sm:$0xf]
    %v706 = vld [vmem:[%s3 + $0x4c] sm:$0xf]
    %v707 = vld [vmem:[%s3 + $0x50] sm:$0xf]
    %v708 = vld [vmem:[%s3 + $0x54] sm:$0xf]
    %v709 = vld [vmem:[%s3 + $0x58] sm:$0xf]
    %v710 = vld [vmem:[%s3 + $0x5c] sm:$0xf]
    %v711 = vld [vmem:[%s3 + $0x60] sm:$0xf]
    %v712 = vld [vmem:[%s3 + $0x64] sm:$0xf]
    %v713 = vld [vmem:[%s3 + $0x68] sm:$0xf]
    %v714 = vld [vmem:[%s3 + $0x6c] sm:$0xf]
    %v715 = vld [vmem:[%s3 + $0x70] sm:$0xf]
    %v716 = vld [vmem:[%s3 + $0x74] sm:$0xf]
    %v717 = vld [vmem:[%s3 + $0x78] sm:$0xf]
    %v718 = vld [vmem:[%s3 + $0x7c] sm:$0xf]
    %v719 = vld [vmem:[%s3 + $0x80] sm:$0xf]
    %v720 = vld [vmem:[%s3 + $0x84] sm:$0xf]
    %v721 = vld [vmem:[%s3 + $0x88] sm:$0xf]
    %v722 = vld [vmem:[%s3 + $0x8c] sm:$0xf]
    %v723 = vld [vmem:[%s3 + $0x90] sm:$0xf]
    %v724 = vld [vmem:[%s3 + $0x94] sm:$0xf]
    %v725 = vld [vmem:[%s3 + $0x98] sm:$0xf]
    %v726 = vld [vmem:[%s3 + $0x9c] sm:$0xf]
    %v727 = vld [vmem:[%s3 + $0xa0] sm:$0xf]
    %v728 = vld [vmem:[%s3 + $0xa4] sm:$0xf]
    %v729 = vld [vmem:[%s3 + $0xa8] sm:$0xf]
    %v730 = vld [vmem:[%s3 + $0xac] sm:$0xf]
    %v731 = vld [vmem:[%s3 + $0xb0] sm:$0xf]
    %v732 = vld [vmem:[%s3 + $0xb4] sm:$0xf]
    %v733 = vld [vmem:[%s3 + $0xb8] sm:$0xf]
    %v734 = vld [vmem:[%s3 + $0xbc] sm:$0xf]
    %v735 = vld [vmem:[%s3 + $0xc0] sm:$0xf]
    %v736 = vld [vmem:[%s3 + $0xc4] sm:$0xf]
    %v737 = vld [vmem:[%s3 + $0xc8] sm:$0xf]
    %v738 = vld [vmem:[%s3 + $0xcc] sm:$0xf]
    %v739 = vld [vmem:[%s3 + $0xd0] sm:$0xf]
    %v740 = vld [vmem:[%s3 + $0xd4] sm:$0xf]
    %v741 = vld [vmem:[%s3 + $0xd8] sm:$0xf]
    %v742 = vld [vmem:[%s3 + $0xdc] sm:$0xf]
    %v743 = vld [vmem:[%s3 + $0xe0] sm:$0xf]
    %v744 = vld [vmem:[%s3 + $0xe4] sm:$0xf]
    %v745 = vld [vmem:[%s3 + $0xe8] sm:$0xf]
    %v746 = vld [vmem:[%s3 + $0xec] sm:$0xf]
    %v747 = vld [vmem:[%s3 + $0xf0] sm:$0xf]
    %v748 = vld [vmem:[%s3 + $0xf4] sm:$0xf]
    %v749 = vld [vmem:[%s3 + $0xf8] sm:$0xf]
    %v750 = vld [vmem:[%s3 + $0xfc] sm:$0xf]
    %v751 = vld [vmem:[%s3 + $0x100] sm:$0xf]
    %v752 = vld [vmem:[%s3 + $0x104] sm:$0xf]
    %v753 = vld [vmem:[%s3 + $0x108] sm:$0xf]
    %v754 = vld [vmem:[%s3 + $0x10c] sm:$0xf]
    %v755 = vld [vmem:[%s3 + $0x110] sm:$0xf]
    %v756 = vld [vmem:[%s3 + $0x114] sm:$0xf]
    %v757 = vld [vmem:[%s3 + $0x118] sm:$0xf]
    %v758 = vld [vmem:[%s3 + $0x11c] sm:$0xf]
    %v759 = vld [vmem:[%s3 + $0x120] sm:$0xf]
    %v760 = vld [vmem:[%s3 + $0x124] sm:$0xf]
    %v761 = vld [vmem:[%s3 + $0x128] sm:$0xf]
    %v762 = vld [vmem:[%s3 + $0x12c] sm:$0xf]
    %v763 = vld [vmem:[%s3 + $0x130] sm:$0xf]
    %v764 = vld [vmem:[%s3 + $0x134] sm:$0xf]
    %v765 = vld [vmem:[%s3 + $0x138] sm:$0xf]
    %v766 = vld [vmem:[%s3 + $0x13c] sm:$0xf]
    %v767 = vld [vmem:[%s3 + $0x140] sm:$0xf]
    %v768 = vld [vmem:[%s3 + $0x144] sm:$0xf]
    %v769 = vld [vmem:[%s3 + $0x148] sm:$0xf]
    %v770 = vld [vmem:[%s3 + $0x14c] sm:$0xf]
    %v771 = vld [vmem:[%s3 + $0x150] sm:$0xf]
    %v772 = vld [vmem:[%s3 + $0x154] sm:$0xf]
    %v773 = vld [vmem:[%s3 + $0x158] sm:$0xf]
    %v774 = vld [vmem:[%s3 + $0x15c] sm:$0x1]
    %s775 = sld [smem:[#allocation2 + $0x9]]
    %p777 = scmp.ne.f32.partialorder %s775, %s775
    %s778 = sshrl.u32 %s775, 16
    %s779 = sand.u32 %s778, 1
    %s780 = sadd.s32 32767, %s779
    %s781 = sadd.s32 %s775, %s780
    %s782 = sand.u32 %s781, 4294901760
    %s783 = scalar_select %p777, 2143289344, %s782
    %s785 = sshrl.u32 %s783, 16
    %s786 = sld [smem:[#allocation2 + $0xa]]
    %p788 = scmp.ne.f32.partialorder %s786, %s786
    %s789 = sshrl.u32 %s786, 16
    %s790 = sand.u32 %s789, 1
    %s791 = sadd.s32 32767, %s790
    %s792 = sadd.s32 %s786, %s791
    %s793 = sand.u32 %s792, 4294901760
    %s794 = scalar_select %p788, 2143289344, %s793
    %s796 = sshrl.u32 %s794, 16
    %s797 = sld [smem:[#allocation2 + $0xb]]
    %p799 = scmp.ne.f32.partialorder %s797, %s797
    %s800 = sshrl.u32 %s797, 16
    %s801 = sand.u32 %s800, 1
    %s802 = sadd.s32 32767, %s801
    %s803 = sadd.s32 %s797, %s802
    %s804 = sand.u32 %s803, 4294901760
    %s805 = scalar_select %p799, 2143289344, %s804
    %s807 = sshrl.u32 %s805, 16
    %s808 = sld [smem:[#allocation2 + $0xc]]
    %p810 = scmp.ne.f32.partialorder %s808, %s808
    %s811 = sshrl.u32 %s808, 16
    %s812 = sand.u32 %s811, 1
    %s813 = sadd.s32 32767, %s812
    %s814 = sadd.s32 %s808, %s813
    %s815 = sand.u32 %s814, 4294901760
    %s816 = scalar_select %p810, 2143289344, %s815
    %s818 = sshrl.u32 %s816, 16
    %s819 = sld [smem:[#allocation2 + $0xd]]
    %p821 = scmp.ne.f32.partialorder %s819, %s819
    %s822 = sshrl.u32 %s819, 16
    %s823 = sand.u32 %s822, 1
    %s824 = sadd.s32 32767, %s823
    %s825 = sadd.s32 %s819, %s824
    %s826 = sand.u32 %s825, 4294901760
    %s827 = scalar_select %p821, 2143289344, %s826
    %s829 = sshrl.u32 %s827, 16
    %s830 = sld [smem:[#allocation2 + $0xe]]
    %p832 = scmp.ne.f32.partialorder %s830, %s830
    %s833 = sshrl.u32 %s830, 16
    %s834 = sand.u32 %s833, 1
    %s835 = sadd.s32 32767, %s834
    %s836 = sadd.s32 %s830, %s835
    %s837 = sand.u32 %s836, 4294901760
    %s838 = scalar_select %p832, 2143289344, %s837
    %s840 = sshrl.u32 %s838, 16
    %s841 = sld [smem:[#allocation2 + $0xf]]
    %p843 = scmp.ne.f32.partialorder %s841, %s841
    %s844 = sshrl.u32 %s841, 16
    %s845 = sand.u32 %s844, 1
    %s846 = sadd.s32 32767, %s845
    %s847 = sadd.s32 %s841, %s846
    %s848 = sand.u32 %s847, 4294901760
    %s849 = scalar_select %p843, 2143289344, %s848
    %s851 = sshrl.u32 %s849, 16
    %s852 = sld [smem:[#allocation2 + $0x10]]
    %p854 = scmp.ne.f32.partialorder %s852, %s852
    %s855 = sshrl.u32 %s852, 16
    %s856 = sand.u32 %s855, 1
    %s857 = sadd.s32 32767, %s856
    %s858 = sadd.s32 %s852, %s857
    %s859 = sand.u32 %s858, 4294901760
    %s860 = scalar_select %p854, 2143289344, %s859
    %s862 = sshrl.u32 %s860, 16
    %s863 = sld [smem:[#allocation2 + $0x11]]
    %p865 = scmp.ne.f32.partialorder %s863, %s863
    %s866 = sshrl.u32 %s863, 16
    %s867 = sand.u32 %s866, 1
    %s868 = sadd.s32 32767, %s867
    %s869 = sadd.s32 %s863, %s868
    %s870 = sand.u32 %s869, 4294901760
    %s871 = scalar_select %p865, 2143289344, %s870
    %s873 = sshrl.u32 %s871, 16
    %s874 = sshll.u32 %s785, 16
    %s875 = sor.u32 %s785, %s874
    %v876 = vstv %s875
    %v878 = vmul.bf16 %v91, %v876
    %v879 = vmul.bf16 %v92, %v876
    %v880 = vmul.bf16 %v93, %v876
    %v881 = vmul.bf16 %v94, %v876
    %v882 = vmul.bf16 %v95, %v876
    %v883 = vmul.bf16 %v96, %v876
    %s884 = sshll.u32 %s796, 16
    %s885 = sor.u32 %s796, %s884
    %v886 = vstv %s885
    %v888 = vmul.bf16 %v91, %v886
    %v889 = vmul.bf16 %v92, %v886
    %v890 = vmul.bf16 %v93, %v886
    %v891 = vmul.bf16 %v94, %v886
    %v892 = vmul.bf16 %v95, %v886
    %v893 = vmul.bf16 %v96, %v886
    %900 = vrot.lane.b32.xlu0 %v888, 127
    %v901 = vpop.permute.xlu0 %900
    %902 = vrot.lane.b32.xlu0 %v889, 127
    %v903 = vpop.permute.xlu0 %902
    %904 = vrot.lane.b32.xlu0 %v890, 127
    %v905 = vpop.permute.xlu0 %904
    %906 = vrot.lane.b32.xlu0 %v891, 127
    %v907 = vpop.permute.xlu0 %906
    %908 = vrot.lane.b32.xlu0 %v892, 127
    %v909 = vpop.permute.xlu0 %908
    %910 = vrot.lane.b32.xlu0 %v893, 127
    %v911 = vpop.permute.xlu0 %910
    %v912 = vsel %vm235, %v901, %v903
    %v913 = vsel %vm235, %v903, %v905
    %v914 = vsel %vm235, %v905, %v907
    %v915 = vsel %vm235, %v907, %v909
    %v916 = vsel %vm235, %v909, %v911
    %v923 = vadd.bf16 %v878, %v912
    %v924 = vadd.bf16 %v879, %v913
    %v925 = vadd.bf16 %v880, %v914
    %v926 = vadd.bf16 %v881, %v915
    %v927 = vadd.bf16 %v882, %v916
    %v928 = vadd.bf16 %v883, %v911
    %s929 = sshll.u32 %s807, 16
    %s930 = sor.u32 %s807, %s929
    %v931 = vstv %s930
    %v933 = vmul.bf16 %v91, %v931
    %v934 = vmul.bf16 %v92, %v931
    %v935 = vmul.bf16 %v93, %v931
    %v936 = vmul.bf16 %v94, %v931
    %v937 = vmul.bf16 %v95, %v931
    %v938 = vmul.bf16 %v96, %v931
    %945 = vrot.lane.b32.xlu0 %v933, 126
    %v946 = vpop.permute.xlu0 %945
    %947 = vrot.lane.b32.xlu0 %v934, 126
    %v948 = vpop.permute.xlu0 %947
    %949 = vrot.lane.b32.xlu0 %v935, 126
    %v950 = vpop.permute.xlu0 %949
    %951 = vrot.lane.b32.xlu0 %v936, 126
    %v952 = vpop.permute.xlu0 %951
    %953 = vrot.lane.b32.xlu0 %v937, 126
    %v954 = vpop.permute.xlu0 %953
    %955 = vrot.lane.b32.xlu0 %v938, 126
    %v956 = vpop.permute.xlu0 %955
    %v957 = vsel %vm281, %v946, %v948
    %v958 = vsel %vm281, %v948, %v950
    %v959 = vsel %vm281, %v950, %v952
    %v960 = vsel %vm281, %v952, %v954
    %v961 = vsel %vm281, %v954, %v956
    %v968 = vadd.bf16 %v923, %v957
    %v969 = vadd.bf16 %v924, %v958
    %v970 = vadd.bf16 %v925, %v959
    %v971 = vadd.bf16 %v926, %v960
    %v972 = vadd.bf16 %v927, %v961
    %v973 = vadd.bf16 %v928, %v956
    %s974 = sshll.u32 %s818, 16
    %s975 = sor.u32 %s818, %s974
    %v976 = vstv %s975
    %v978 = vmul.bf16 %v91, %v976
    %v979 = vmul.bf16 %v92, %v976
    %v980 = vmul.bf16 %v93, %v976
    %v981 = vmul.bf16 %v94, %v976
    %v982 = vmul.bf16 %v95, %v976
    %v983 = vmul.bf16 %v96, %v976
    %990 = vrot.lane.b32.xlu0 %v978, 100
    %v991 = vpop.permute.xlu0 %990
    %992 = vrot.lane.b32.xlu0 %v979, 100
    %v993 = vpop.permute.xlu0 %992
    %994 = vrot.lane.b32.xlu0 %v980, 100
    %v995 = vpop.permute.xlu0 %994
    %996 = vrot.lane.b32.xlu0 %v981, 100
    %v997 = vpop.permute.xlu0 %996
    %998 = vrot.lane.b32.xlu0 %v982, 100
    %v999 = vpop.permute.xlu0 %998
    %1000 = vrot.lane.b32.xlu0 %v983, 100
    %v1001 = vpop.permute.xlu0 %1000
    %v1002 = vsel %vm327, %v991, %v993
    %v1003 = vsel %vm327, %v993, %v995
    %v1004 = vsel %vm327, %v995, %v997
    %v1005 = vsel %vm327, %v997, %v999
    %v1006 = vsel %vm327, %v999, %v1001
    %v1013 = vadd.bf16 %v968, %v1002
    %v1014 = vadd.bf16 %v969, %v1003
    %v1015 = vadd.bf16 %v970, %v1004
    %v1016 = vadd.bf16 %v971, %v1005
    %v1017 = vadd.bf16 %v972, %v1006
    %v1018 = vadd.bf16 %v973, %v1001
    %s1019 = sshll.u32 %s829, 16
    %s1020 = sor.u32 %s829, %s1019
    %v1021 = vstv %s1020
    %v1023 = vmul.bf16 %v91, %v1021
    %v1024 = vmul.bf16 %v92, %v1021
    %v1025 = vmul.bf16 %v93, %v1021
    %v1026 = vmul.bf16 %v94, %v1021
    %v1027 = vmul.bf16 %v95, %v1021
    %v1028 = vmul.bf16 %v96, %v1021
    %1035 = vrot.lane.b32.xlu0 %v1023, 99
    %v1036 = vpop.permute.xlu0 %1035
    %1037 = vrot.lane.b32.xlu0 %v1024, 99
    %v1038 = vpop.permute.xlu0 %1037
    %1039 = vrot.lane.b32.xlu0 %v1025, 99
    %v1040 = vpop.permute.xlu0 %1039
    %1041 = vrot.lane.b32.xlu0 %v1026, 99
    %v1042 = vpop.permute.xlu0 %1041
    %1043 = vrot.lane.b32.xlu0 %v1027, 99
    %v1044 = vpop.permute.xlu0 %1043
    %1045 = vrot.lane.b32.xlu0 %v1028, 99
    %v1046 = vpop.permute.xlu0 %1045
    %v1047 = vsel %vm373, %v1036, %v1038
    %v1048 = vsel %vm373, %v1038, %v1040
    %v1049 = vsel %vm373, %v1040, %v1042
    %v1050 = vsel %vm373, %v1042, %v1044
    %v1051 = vsel %vm373, %v1044, %v1046
    %v1058 = vadd.bf16 %v1013, %v1047
    %v1059 = vadd.bf16 %v1014, %v1048
    %v1060 = vadd.bf16 %v1015, %v1049
    %v1061 = vadd.bf16 %v1016, %v1050
    %v1062 = vadd.bf16 %v1017, %v1051
    %v1063 = vadd.bf16 %v1018, %v1046
    %s1064 = sshll.u32 %s840, 16
    %s1065 = sor.u32 %s840, %s1064
    %v1066 = vstv %s1065
    %v1068 = vmul.bf16 %v91, %v1066
    %v1069 = vmul.bf16 %v92, %v1066
    %v1070 = vmul.bf16 %v93, %v1066
    %v1071 = vmul.bf16 %v94, %v1066
    %v1072 = vmul.bf16 %v95, %v1066
    %v1073 = vmul.bf16 %v96, %v1066
    %1080 = vrot.lane.b32.xlu0 %v1068, 98
    %v1081 = vpop.permute.xlu0 %1080
    %1082 = vrot.lane.b32.xlu0 %v1069, 98
    %v1083 = vpop.permute.xlu0 %1082
    %1084 = vrot.lane.b32.xlu0 %v1070, 98
    %v1085 = vpop.permute.xlu0 %1084
    %1086 = vrot.lane.b32.xlu0 %v1071, 98
    %v1087 = vpop.permute.xlu0 %1086
    %1088 = vrot.lane.b32.xlu0 %v1072, 98
    %v1089 = vpop.permute.xlu0 %1088
    %1090 = vrot.lane.b32.xlu0 %v1073, 98
    %v1091 = vpop.permute.xlu0 %1090
    %v1092 = vsel %vm419, %v1081, %v1083
    %v1093 = vsel %vm419, %v1083, %v1085
    %v1094 = vsel %vm419, %v1085, %v1087
    %v1095 = vsel %vm419, %v1087, %v1089
    %v1096 = vsel %vm419, %v1089, %v1091
    %v1103 = vadd.bf16 %v1058, %v1092
    %v1104 = vadd.bf16 %v1059, %v1093
    %v1105 = vadd.bf16 %v1060, %v1094
    %v1106 = vadd.bf16 %v1061, %v1095
    %v1107 = vadd.bf16 %v1062, %v1096
    %v1108 = vadd.bf16 %v1063, %v1091
    %s1109 = sshll.u32 %s851, 16
    %s1110 = sor.u32 %s851, %s1109
    %v1111 = vstv %s1110
    %v1113 = vmul.bf16 %v91, %v1111
    %v1114 = vmul.bf16 %v92, %v1111
    %v1115 = vmul.bf16 %v93, %v1111
    %v1116 = vmul.bf16 %v94, %v1111
    %v1117 = vmul.bf16 %v95, %v1111
    %v1118 = vmul.bf16 %v96, %v1111
    %v1119 = vmul.bf16 %v97, %v1111
    %1127 = vrot.lane.b32.xlu0 %v1113, 72
    %v1128 = vpop.permute.xlu0 %1127
    %1129 = vrot.lane.b32.xlu0 %v1114, 72
    %v1130 = vpop.permute.xlu0 %1129
    %1131 = vrot.lane.b32.xlu0 %v1115, 72
    %v1132 = vpop.permute.xlu0 %1131
    %1133 = vrot.lane.b32.xlu0 %v1116, 72
    %v1134 = vpop.permute.xlu0 %1133
    %1135 = vrot.lane.b32.xlu0 %v1117, 72
    %v1136 = vpop.permute.xlu0 %1135
    %1137 = vrot.lane.b32.xlu0 %v1118, 72
    %v1138 = vpop.permute.xlu0 %1137
    %1139 = vrot.lane.b32.xlu0 %v1119, 72
    %v1140 = vpop.permute.xlu0 %1139
    %v1141 = vsel %vm469, %v1128, %v1130
    %v1142 = vsel %vm469, %v1130, %v1132
    %v1143 = vsel %vm469, %v1132, %v1134
    %v1144 = vsel %vm469, %v1134, %v1136
    %v1145 = vsel %vm469, %v1136, %v1138
    %v1146 = vsel %vm469, %v1138, %v1140
    %v1153 = vadd.bf16 %v1103, %v1141
    %v1154 = vadd.bf16 %v1104, %v1142
    %v1155 = vadd.bf16 %v1105, %v1143
    %v1156 = vadd.bf16 %v1106, %v1144
    %v1157 = vadd.bf16 %v1107, %v1145
    %v1158 = vadd.bf16 %v1108, %v1146
    %s1159 = sshll.u32 %s862, 16
    %s1160 = sor.u32 %s862, %s1159
    %v1161 = vstv %s1160
    %v1163 = vmul.bf16 %v91, %v1161
    %v1164 = vmul.bf16 %v92, %v1161
    %v1165 = vmul.bf16 %v93, %v1161
    %v1166 = vmul.bf16 %v94, %v1161
    %v1167 = vmul.bf16 %v95, %v1161
    %v1168 = vmul.bf16 %v96, %v1161
    %v1169 = vmul.bf16 %v97, %v1161
    %1177 = vrot.lane.b32.xlu0 %v1163, 71
    %v1178 = vpop.permute.xlu0 %1177
    %1179 = vrot.lane.b32.xlu0 %v1164, 71
    %v1180 = vpop.permute.xlu0 %1179
    %1181 = vrot.lane.b32.xlu0 %v1165, 71
    %v1182 = vpop.permute.xlu0 %1181
    %1183 = vrot.lane.b32.xlu0 %v1166, 71
    %v1184 = vpop.permute.xlu0 %1183
    %1185 = vrot.lane.b32.xlu0 %v1167, 71
    %v1186 = vpop.permute.xlu0 %1185
    %1187 = vrot.lane.b32.xlu0 %v1168, 71
    %v1188 = vpop.permute.xlu0 %1187
    %1189 = vrot.lane.b32.xlu0 %v1169, 71
    %v1190 = vpop.permute.xlu0 %1189
    %v1191 = vsel %vm520, %v1178, %v1180
    %v1192 = vsel %vm520, %v1180, %v1182
    %v1193 = vsel %vm520, %v1182, %v1184
    %v1194 = vsel %vm520, %v1184, %v1186
    %v1195 = vsel %vm520, %v1186, %v1188
    %v1196 = vsel %vm520, %v1188, %v1190
    %v1203 = vadd.bf16 %v1153, %v1191
    %v1204 = vadd.bf16 %v1154, %v1192
    %v1205 = vadd.bf16 %v1155, %v1193
    %v1206 = vadd.bf16 %v1156, %v1194
    %v1207 = vadd.bf16 %v1157, %v1195
    %v1208 = vadd.bf16 %v1158, %v1196
    %s1209 = sshll.u32 %s873, 16
    %s1210 = sor.u32 %s873, %s1209
    %v1211 = vstv %s1210
    %v1213 = vmul.bf16 %v91, %v1211
    %v1214 = vmul.bf16 %v92, %v1211
    %v1215 = vmul.bf16 %v93, %v1211
    %v1216 = vmul.bf16 %v94, %v1211
    %v1217 = vmul.bf16 %v95, %v1211
    %v1218 = vmul.bf16 %v96, %v1211
    %v1219 = vmul.bf16 %v97, %v1211
    %1227 = vrot.lane.b32.xlu0 %v1213, 70
    %v1228 = vpop.permute.xlu0 %1227
    %1229 = vrot.lane.b32.xlu0 %v1214, 70
    %v1230 = vpop.permute.xlu0 %1229
    %1231 = vrot.lane.b32.xlu0 %v1215, 70
    %v1232 = vpop.permute.xlu0 %1231
    %1233 = vrot.lane.b32.xlu0 %v1216, 70
    %v1234 = vpop.permute.xlu0 %1233
    %1235 = vrot.lane.b32.xlu0 %v1217, 70
    %v1236 = vpop.permute.xlu0 %1235
    %1237 = vrot.lane.b32.xlu0 %v1218, 70
    %v1238 = vpop.permute.xlu0 %1237
    %1239 = vrot.lane.b32.xlu0 %v1219, 70
    %v1240 = vpop.permute.xlu0 %1239
    %v1241 = vsel %vm571, %v1228, %v1230
    %v1242 = vsel %vm571, %v1230, %v1232
    %v1243 = vsel %vm571, %v1232, %v1234
    %v1244 = vsel %vm571, %v1234, %v1236
    %v1245 = vsel %vm571, %v1236, %v1238
    %v1246 = vsel %vm571, %v1238, %v1240
    %v1253 = vadd.bf16 %v1203, %v1241
    %v1254 = vadd.bf16 %v1204, %v1242
    %v1255 = vadd.bf16 %v1205, %v1243
    %v1256 = vadd.bf16 %v1206, %v1244
    %v1257 = vadd.bf16 %v1207, %v1245
    %v1258 = vadd.bf16 %v1208, %v1246
    %1265 = vrot.lane.b32.xlu0 %v1253, 127
    %v1266 = vpop.permute.xlu0 %1265
    %1267 = vrot.lane.b32.xlu0 %v1254, 127
    %v1268 = vpop.permute.xlu0 %1267
    %1269 = vrot.lane.b32.xlu0 %v1255, 127
    %v1270 = vpop.permute.xlu0 %1269
    %1271 = vrot.lane.b32.xlu0 %v1256, 127
    %v1272 = vpop.permute.xlu0 %1271
    %1273 = vrot.lane.b32.xlu0 %v1257, 127
    %v1274 = vpop.permute.xlu0 %1273
    %1275 = vrot.lane.b32.xlu0 %v1258, 127
    %v1276 = vpop.permute.xlu0 %1275
    %v1277 = vsel %vm235, %v1266, %v1268
    %v1278 = vsel %vm235, %v1268, %v1270
    %v1279 = vsel %vm235, %v1270, %v1272
    %v1280 = vsel %vm235, %v1272, %v1274
    %v1281 = vsel %vm235, %v1274, %v1276
    %v1288 = vmax.bf16 %v1253, %v1277
    %v1289 = vmax.bf16 %v1254, %v1278
    %v1290 = vmax.bf16 %v1255, %v1279
    %v1291 = vmax.bf16 %v1256, %v1280
    %v1292 = vmax.bf16 %v1257, %v1281
    %v1293 = vmax.bf16 %v1258, %v1276
    %1300 = vrot.lane.b32.xlu0 %v1288, 100
    %v1301 = vpop.permute.xlu0 %1300
    %1302 = vrot.lane.b32.xlu0 %v1289, 100
    %v1303 = vpop.permute.xlu0 %1302
    %1304 = vrot.lane.b32.xlu0 %v1290, 100
    %v1305 = vpop.permute.xlu0 %1304
    %1306 = vrot.lane.b32.xlu0 %v1291, 100
    %v1307 = vpop.permute.xlu0 %1306
    %1308 = vrot.lane.b32.xlu0 %v1292, 100
    %v1309 = vpop.permute.xlu0 %1308
    %1310 = vrot.lane.b32.xlu0 %v1293, 100
    %v1311 = vpop.permute.xlu0 %1310
    %v1312 = vsel %vm327, %v1301, %v1303
    %v1313 = vsel %vm327, %v1303, %v1305
    %v1314 = vsel %vm327, %v1305, %v1307
    %v1315 = vsel %vm327, %v1307, %v1309
    %v1316 = vsel %vm327, %v1309, %v1311
    %v1323 = vmax.bf16 %v1288, %v1312
    %v1324 = vmax.bf16 %v1289, %v1313
    %v1325 = vmax.bf16 %v1290, %v1314
    %v1326 = vmax.bf16 %v1291, %v1315
    %v1327 = vmax.bf16 %v1292, %v1316
    %v1328 = vmax.bf16 %v1293, %v1311
    %s1329 = sld [smem:[#allocation5 + $0x1]]
    %p1331 = scmp.ne.f32.partialorder %s1329, %s1329
    %s1332 = sshrl.u32 %s1329, 16
    %s1333 = sand.u32 %s1332, 1
    %s1334 = sadd.s32 32767, %s1333
    %s1335 = sadd.s32 %s1329, %s1334
    %s1336 = sand.u32 %s1335, 4294901760
    %s1337 = scalar_select %p1331, 2143289344, %s1336
    %s1339 = sshrl.u32 %s1337, 16
    %s1340 = sshll.u32 %s1339, 16
    %s1341 = sor.u32 %s1339, %s1340
    %v1342 = vstv %s1341
    %v1344 = vadd.bf16 %v1323, %v1342
    %v1345 = vadd.bf16 %v1324, %v1342
    %v1346 = vadd.bf16 %v1325, %v1342
    %v1347 = vadd.bf16 %v1326, %v1342
    %v1348 = vadd.bf16 %v1327, %v1342
    %v1349 = vadd.bf16 %v1328, %v1342
    %v1350 = vmax.bf16 %v1344, 0
    %v1351 = vmax.bf16 %v1345, 0
    %v1352 = vmax.bf16 %v1346, 0
    %v1353 = vmax.bf16 %v1347, 0
    %v1354 = vmax.bf16 %v1348, 0
    %v1355 = vmax.bf16 %v1349, 0
    %s1356 = scalar_lea.vmem %s3, 352
    %v1357 = vld [vmem:[%s1356] sm:$0xf]
    %v1358 = vld [vmem:[%s1356 + $0x4] sm:$0xf]
    %v1359 = vld [vmem:[%s1356 + $0x8] sm:$0xf]
    %v1360 = vld [vmem:[%s1356 + $0xc] sm:$0xf]
    %v1361 = vld [vmem:[%s1356 + $0x10] sm:$0xf]
    %v1362 = vld [vmem:[%s1356 + $0x14] sm:$0xf]
    %v1363 = vld [vmem:[%s1356 + $0x18] sm:$0xf]
    %v1364 = vld [vmem:[%s1356 + $0x1c] sm:$0xf]
    %v1365 = vld [vmem:[%s1356 + $0x20] sm:$0xf]
    %v1366 = vld [vmem:[%s1356 + $0x24] sm:$0xf]
    %v1367 = vld [vmem:[%s1356 + $0x28] sm:$0xf]
    %v1368 = vld [vmem:[%s1356 + $0x2c] sm:$0xf]
    %v1369 = vld [vmem:[%s1356 + $0x30] sm:$0xf]
    %v1370 = vld [vmem:[%s1356 + $0x34] sm:$0xf]
    %v1371 = vld [vmem:[%s1356 + $0x38] sm:$0xf]
    %v1372 = vld [vmem:[%s1356 + $0x3c] sm:$0xf]
    %v1373 = vld [vmem:[%s1356 + $0x40] sm:$0xf]
    %v1374 = vld [vmem:[%s1356 + $0x44] sm:$0xf]
    %v1375 = vld [vmem:[%s1356 + $0x48] sm:$0xf]
    %v1376 = vld [vmem:[%s1356 + $0x4c] sm:$0xf]
    %v1377 = vld [vmem:[%s1356 + $0x50] sm:$0xf]
    %v1378 = vld [vmem:[%s1356 + $0x54] sm:$0xf]
    %v1379 = vld [vmem:[%s1356 + $0x58] sm:$0xf]
    %v1380 = vld [vmem:[%s1356 + $0x5c] sm:$0xf]
    %v1381 = vld [vmem:[%s1356 + $0x60] sm:$0xf]
    %v1382 = vld [vmem:[%s1356 + $0x64] sm:$0xf]
    %v1383 = vld [vmem:[%s1356 + $0x68] sm:$0xf]
    %v1384 = vld [vmem:[%s1356 + $0x6c] sm:$0xf]
    %v1385 = vld [vmem:[%s1356 + $0x70] sm:$0xf]
    %v1386 = vld [vmem:[%s1356 + $0x74] sm:$0xf]
    %v1387 = vld [vmem:[%s1356 + $0x78] sm:$0xf]
    %v1388 = vld [vmem:[%s1356 + $0x7c] sm:$0xf]
    %v1389 = vld [vmem:[%s1356 + $0x80] sm:$0xf]
    %v1390 = vld [vmem:[%s1356 + $0x84] sm:$0xf]
    %v1391 = vld [vmem:[%s1356 + $0x88] sm:$0xf]
    %v1392 = vld [vmem:[%s1356 + $0x8c] sm:$0xf]
    %v1393 = vld [vmem:[%s1356 + $0x90] sm:$0xf]
    %v1394 = vld [vmem:[%s1356 + $0x94] sm:$0xf]
    %v1395 = vld [vmem:[%s1356 + $0x98] sm:$0xf]
    %v1396 = vld [vmem:[%s1356 + $0x9c] sm:$0xf]
    %v1397 = vld [vmem:[%s1356 + $0xa0] sm:$0xf]
    %v1398 = vld [vmem:[%s1356 + $0xa4] sm:$0xf]
    %v1399 = vld [vmem:[%s1356 + $0xa8] sm:$0xf]
    %v1400 = vld [vmem:[%s1356 + $0xac] sm:$0xf]
    %v1401 = vld [vmem:[%s1356 + $0xb0] sm:$0xf]
    %v1402 = vld [vmem:[%s1356 + $0xb4] sm:$0xf]
    %v1403 = vld [vmem:[%s1356 + $0xb8] sm:$0xf]
    %v1404 = vld [vmem:[%s1356 + $0xbc] sm:$0xf]
    %v1405 = vld [vmem:[%s1356 + $0xc0] sm:$0xf]
    %v1406 = vld [vmem:[%s1356 + $0xc4] sm:$0xf]
    %v1407 = vld [vmem:[%s1356 + $0xc8] sm:$0xf]
    %v1408 = vld [vmem:[%s1356 + $0xcc] sm:$0xf]
    %v1409 = vld [vmem:[%s1356 + $0xd0] sm:$0xf]
    %v1410 = vld [vmem:[%s1356 + $0xd4] sm:$0xf]
    %v1411 = vld [vmem:[%s1356 + $0xd8] sm:$0xf]
    %v1412 = vld [vmem:[%s1356 + $0xdc] sm:$0xf]
    %v1413 = vld [vmem:[%s1356 + $0xe0] sm:$0xf]
    %v1414 = vld [vmem:[%s1356 + $0xe4] sm:$0xf]
    %v1415 = vld [vmem:[%s1356 + $0xe8] sm:$0xf]
    %v1416 = vld [vmem:[%s1356 + $0xec] sm:$0xf]
    %v1417 = vld [vmem:[%s1356 + $0xf0] sm:$0xf]
    %v1418 = vld [vmem:[%s1356 + $0xf4] sm:$0xf]
    %v1419 = vld [vmem:[%s1356 + $0xf8] sm:$0xf]
    %v1420 = vld [vmem:[%s1356 + $0xfc] sm:$0xf]
    %v1421 = vld [vmem:[%s1356 + $0x100] sm:$0xf]
    %v1422 = vld [vmem:[%s1356 + $0x104] sm:$0xf]
    %v1423 = vld [vmem:[%s1356 + $0x108] sm:$0xf]
    %v1424 = vld [vmem:[%s1356 + $0x10c] sm:$0xf]
    %v1425 = vld [vmem:[%s1356 + $0x110] sm:$0xf]
    %v1426 = vld [vmem:[%s1356 + $0x114] sm:$0xf]
    %v1427 = vld [vmem:[%s1356 + $0x118] sm:$0xf]
    %v1428 = vld [vmem:[%s1356 + $0x11c] sm:$0xf]
    %v1429 = vld [vmem:[%s1356 + $0x120] sm:$0xf]
    %v1430 = vld [vmem:[%s1356 + $0x124] sm:$0xf]
    %v1431 = vld [vmem:[%s1356 + $0x128] sm:$0xf]
    %v1432 = vld [vmem:[%s1356 + $0x12c] sm:$0xf]
    %v1433 = vld [vmem:[%s1356 + $0x130] sm:$0xf]
    %v1434 = vld [vmem:[%s1356 + $0x134] sm:$0xf]
    %v1435 = vld [vmem:[%s1356 + $0x138] sm:$0xf]
    %v1436 = vld [vmem:[%s1356 + $0x13c] sm:$0xf]
    %v1437 = vld [vmem:[%s1356 + $0x140] sm:$0xf]
    %v1438 = vld [vmem:[%s1356 + $0x144] sm:$0xf]
    %v1439 = vld [vmem:[%s1356 + $0x148] sm:$0xf]
    %v1440 = vld [vmem:[%s1356 + $0x14c] sm:$0xf]
    %v1441 = vld [vmem:[%s1356 + $0x150] sm:$0xf]
    %v1442 = vld [vmem:[%s1356 + $0x154] sm:$0xf]
    %v1443 = vld [vmem:[%s1356 + $0x158] sm:$0xf]
    %v1444 = vld [vmem:[%s1356 + $0x15c] sm:$0x1]
    %v1533 = vunpack.c.l.b16 %v1357
    %v1534 = vunpack.c.l.b16 %v1358
    %v1535 = vunpack.c.l.b16 %v1359
    %v1536 = vunpack.c.l.b16 %v1360
    %v1537 = vunpack.c.l.b16 %v1361
    %v1538 = vunpack.c.l.b16 %v1362
    %v1539 = vunpack.c.l.b16 %v1363
    %v1540 = vunpack.c.l.b16 %v1364
    %v1541 = vunpack.c.l.b16 %v1365
    %v1542 = vunpack.c.l.b16 %v1366
    %v1543 = vunpack.c.l.b16 %v1367
    %v1544 = vunpack.c.l.b16 %v1368
    %v1545 = vunpack.c.l.b16 %v1369
    %v1546 = vunpack.c.l.b16 %v1370
    %v1547 = vunpack.c.l.b16 %v1371
    %v1548 = vunpack.c.l.b16 %v1372
    %v1549 = vunpack.c.l.b16 %v1373
    %v1550 = vunpack.c.l.b16 %v1374
    %v1551 = vunpack.c.l.b16 %v1375
    %v1552 = vunpack.c.l.b16 %v1376
    %v1553 = vunpack.c.l.b16 %v1377
    %v1554 = vunpack.c.l.b16 %v1378
    %v1555 = vunpack.c.l.b16 %v1379
    %v1556 = vunpack.c.l.b16 %v1380
    %v1557 = vunpack.c.l.b16 %v1381
    %v1558 = vunpack.c.l.b16 %v1382
    %v1559 = vunpack.c.l.b16 %v1383
    %v1560 = vunpack.c.l.b16 %v1384
    %v1561 = vunpack.c.l.b16 %v1385
    %v1562 = vunpack.c.l.b16 %v1386
    %v1563 = vunpack.c.l.b16 %v1387
    %v1564 = vunpack.c.l.b16 %v1388
    %v1565 = vunpack.c.l.b16 %v1389
    %v1566 = vunpack.c.l.b16 %v1390
    %v1567 = vunpack.c.l.b16 %v1391
    %v1568 = vunpack.c.l.b16 %v1392
    %v1569 = vunpack.c.l.b16 %v1393
    %v1570 = vunpack.c.l.b16 %v1394
    %v1571 = vunpack.c.l.b16 %v1395
    %v1572 = vunpack.c.l.b16 %v1396
    %v1573 = vunpack.c.l.b16 %v1397
    %v1574 = vunpack.c.l.b16 %v1398
    %v1575 = vunpack.c.l.b16 %v1399
    %v1576 = vunpack.c.l.b16 %v1400
    %v1577 = vunpack.c.l.b16 %v1401
    %v1578 = vunpack.c.l.b16 %v1402
    %v1579 = vunpack.c.l.b16 %v1403
    %v1580 = vunpack.c.l.b16 %v1404
    %v1581 = vunpack.c.l.b16 %v1405
    %v1582 = vunpack.c.l.b16 %v1406
    %v1583 = vunpack.c.l.b16 %v1407
    %v1584 = vunpack.c.l.b16 %v1408
    %v1585 = vunpack.c.l.b16 %v1409
    %v1586 = vunpack.c.l.b16 %v1410
    %v1587 = vunpack.c.l.b16 %v1411
    %v1588 = vunpack.c.l.b16 %v1412
    %v1589 = vunpack.c.l.b16 %v1413
    %v1590 = vunpack.c.l.b16 %v1414
    %v1591 = vunpack.c.l.b16 %v1415
    %v1592 = vunpack.c.l.b16 %v1416
    %v1593 = vunpack.c.l.b16 %v1417
    %v1594 = vunpack.c.l.b16 %v1418
    %v1595 = vunpack.c.l.b16 %v1419
    %v1596 = vunpack.c.l.b16 %v1420
    %v1597 = vunpack.c.l.b16 %v1421
    %v1598 = vunpack.c.l.b16 %v1422
    %v1599 = vunpack.c.l.b16 %v1423
    %v1600 = vunpack.c.l.b16 %v1424
    %v1601 = vunpack.c.l.b16 %v1425
    %v1602 = vunpack.c.l.b16 %v1426
    %v1603 = vunpack.c.l.b16 %v1427
    %v1604 = vunpack.c.l.b16 %v1428
    %v1605 = vunpack.c.l.b16 %v1429
    %v1606 = vunpack.c.l.b16 %v1430
    %v1607 = vunpack.c.l.b16 %v1431
    %v1608 = vunpack.c.l.b16 %v1432
    %v1609 = vunpack.c.l.b16 %v1433
    %v1610 = vunpack.c.l.b16 %v1434
    %v1611 = vunpack.c.l.b16 %v1435
    %v1612 = vunpack.c.l.b16 %v1436
    %v1613 = vunpack.c.l.b16 %v1437
    %v1614 = vunpack.c.l.b16 %v1438
    %v1615 = vunpack.c.l.b16 %v1439
    %v1616 = vunpack.c.l.b16 %v1440
    %v1617 = vunpack.c.l.b16 %v1441
    %v1618 = vunpack.c.l.b16 %v1442
    %v1619 = vunpack.c.l.b16 %v1443
    %v1620 = vunpack.c.l.b16 %v1444
    %v1621 = vpack.c.b16 %v1534, %v1533
    %v1622 = vpack.c.b16 %v1536, %v1535
    %v1623 = vpack.c.b16 %v1538, %v1537
    %v1624 = vpack.c.b16 %v1540, %v1539
    %v1625 = vpack.c.b16 %v1542, %v1541
    %v1626 = vpack.c.b16 %v1544, %v1543
    %v1627 = vpack.c.b16 %v1546, %v1545
    %v1628 = vpack.c.b16 %v1548, %v1547
    %v1629 = vpack.c.b16 %v1550, %v1549
    %v1630 = vpack.c.b16 %v1552, %v1551
    %v1631 = vpack.c.b16 %v1554, %v1553
    %v1632 = vpack.c.b16 %v1556, %v1555
    %v1633 = vpack.c.b16 %v1558, %v1557
    %v1634 = vpack.c.b16 %v1560, %v1559
    %v1635 = vpack.c.b16 %v1562, %v1561
    %v1636 = vpack.c.b16 %v1564, %v1563
    %v1637 = vpack.c.b16 %v1566, %v1565
    %v1638 = vpack.c.b16 %v1568, %v1567
    %v1639 = vpack.c.b16 %v1570, %v1569
    %v1640 = vpack.c.b16 %v1572, %v1571
    %v1641 = vpack.c.b16 %v1574, %v1573
    %v1642 = vpack.c.b16 %v1576, %v1575
    %v1643 = vpack.c.b16 %v1578, %v1577
    %v1644 = vpack.c.b16 %v1580, %v1579
    %v1645 = vpack.c.b16 %v1582, %v1581
    %v1646 = vpack.c.b16 %v1584, %v1583
    %v1647 = vpack.c.b16 %v1586, %v1585
    %v1648 = vpack.c.b16 %v1588, %v1587
    %v1649 = vpack.c.b16 %v1590, %v1589
    %v1650 = vpack.c.b16 %v1592, %v1591
    %v1651 = vpack.c.b16 %v1594, %v1593
    %v1652 = vpack.c.b16 %v1596, %v1595
    %v1653 = vpack.c.b16 %v1598, %v1597
    %v1654 = vpack.c.b16 %v1600, %v1599
    %v1655 = vpack.c.b16 %v1602, %v1601
    %v1656 = vpack.c.b16 %v1604, %v1603
    %v1657 = vpack.c.b16 %v1606, %v1605
    %v1658 = vpack.c.b16 %v1608, %v1607
    %v1659 = vpack.c.b16 %v1610, %v1609
    %v1660 = vpack.c.b16 %v1612, %v1611
    %v1661 = vpack.c.b16 %v1614, %v1613
    %v1662 = vpack.c.b16 %v1616, %v1615
    %v1663 = vpack.c.b16 %v1618, %v1617
    %v1664 = vpack.c.b16 %v1620, %v1619
    %vm1708 = vcmask 465920
    %v1710 = vsel %vm1708, %v1355, 0
    %vm1712 = vcmask 1043456
    %vm1713 = vcmask 1044480
    %v1714 = vsel %vm1712, 4294967295, 65535
    %v1715 = vsel %vm1713, %v1714, 0
    %v1717 = vand.u32 %v1664, %v1715
    %1719 = vmatprep.subr.bf16.mxu0 0
    %1720 = vmatpush1.bf16.msra.mxu0 %v1628
    %1721 = vmatprep.subr.bf16.mxu0 0
    %1722 = vmatpush1.bf16.msra.mxu0 %v1627
    %1723 = vmatprep.subr.bf16.mxu0 0
    %1724 = vmatpush1.bf16.msra.mxu0 %v1626
    %1725 = vmatprep.subr.bf16.mxu0 0
    %1726 = vmatpush1.bf16.msra.mxu0 %v1625
    %1727 = vmatprep.subr.bf16.mxu0 0
    %1728 = vmatpush1.bf16.msra.mxu0 %v1624
    %1729 = vmatprep.subr.bf16.mxu0 0
    %1730 = vmatpush1.bf16.msra.mxu0 %v1623
    %1731 = vmatprep.subr.bf16.mxu0 0
    %1732 = vmatpush1.bf16.msra.mxu0 %v1622
    %1733 = vmatprep.subr.bf16.mxu0 0
    %1734 = vmatpush1.bf16.msra.mxu0 %v1621
    %1735 = vmatprep.subr.bf16.mxu0 0
    %1736 = vmatpush2.bf16.msra.mxu0 %v1636
    %1737 = vmatprep.subr.bf16.mxu0 0
    %1738 = vmatpush2.bf16.msra.mxu0 %v1635
    %1739 = vmatprep.subr.bf16.mxu0 0
    %1740 = vmatpush2.bf16.msra.mxu0 %v1634
    %1741 = vmatprep.subr.bf16.mxu0 0
    %1742 = vmatpush2.bf16.msra.mxu0 %v1633
    %1743 = vmatprep.subr.bf16.mxu0 0
    %1744 = vmatpush2.bf16.msra.mxu0 %v1632
    %1745 = vmatprep.subr.bf16.mxu0 0
    %1746 = vmatpush2.bf16.msra.mxu0 %v1631
    %1747 = vmatprep.subr.bf16.mxu0 0
    %1748 = vmatpush2.bf16.msra.mxu0 %v1630
    %1749 = vmatprep.subr.bf16.mxu0 0
    %1750 = vmatpush2.bf16.msra.mxu0 %v1629
    %1751 = vmatprep.mubr.bf16.mxu0 %v1351
    %1752 = vmatmul.mubr.bf16.gmra.mxu0 %v1350
    %v1753 = vpop.f32.mrf.mxu0
    %v1754 = vadd.f32 0.0, %v1753
    %v1755 = vpop.f32.mrf.mxu0
    %v1756 = vpop.f32.mrf.mxu0
    %v1757 = vpop.f32.mrf.mxu0
    %1758 = vdwg.mxu0
    %1759 = vmatprep.subr.bf16.mxu0 0
    %1760 = vmatpush1.bf16.msra.mxu0 %v1644
    %1761 = vmatprep.subr.bf16.mxu0 0
    %1762 = vmatpush1.bf16.msra.mxu0 %v1643
    %1763 = vmatprep.subr.bf16.mxu0 0
    %1764 = vmatpush1.bf16.msra.mxu0 %v1642
    %1765 = vmatprep.subr.bf16.mxu0 0
    %1766 = vmatpush1.bf16.msra.mxu0 %v1641
    %1767 = vmatprep.subr.bf16.mxu0 0
    %1768 = vmatpush1.bf16.msra.mxu0 %v1640
    %1769 = vmatprep.subr.bf16.mxu0 0
    %1770 = vmatpush1.bf16.msra.mxu0 %v1639
    %1771 = vmatprep.subr.bf16.mxu0 0
    %1772 = vmatpush1.bf16.msra.mxu0 %v1638
    %1773 = vmatprep.subr.bf16.mxu0 0
    %1774 = vmatpush1.bf16.msra.mxu0 %v1637
    %1775 = vmatprep.subr.bf16.mxu0 0
    %1776 = vmatpush2.bf16.msra.mxu0 %v1652
    %1777 = vmatprep.subr.bf16.mxu0 0
    %1778 = vmatpush2.bf16.msra.mxu0 %v1651
    %1779 = vmatprep.subr.bf16.mxu0 0
    %1780 = vmatpush2.bf16.msra.mxu0 %v1650
    %1781 = vmatprep.subr.bf16.mxu0 0
    %1782 = vmatpush2.bf16.msra.mxu0 %v1649
    %1783 = vmatprep.subr.bf16.mxu0 0
    %1784 = vmatpush2.bf16.msra.mxu0 %v1648
    %1785 = vmatprep.subr.bf16.mxu0 0
    %1786 = vmatpush2.bf16.msra.mxu0 %v1647
    %1787 = vmatprep.subr.bf16.mxu0 0
    %1788 = vmatpush2.bf16.msra.mxu0 %v1646
    %1789 = vmatprep.subr.bf16.mxu0 0
    %1790 = vmatpush2.bf16.msra.mxu0 %v1645
    %1791 = vmatprep.mubr.bf16.mxu0 %v1353
    %1792 = vmatmul.mubr.bf16.gmra.mxu0 %v1352
    %v1793 = vpop.f32.mrf.mxu0
    %v1794 = vadd.f32 %v1754, %v1793
    %v1795 = vpop.f32.mrf.mxu0
    %v1796 = vpop.f32.mrf.mxu0
    %v1797 = vpop.f32.mrf.mxu0
    %1798 = vdwg.mxu0
    %1799 = vmatprep.subr.bf16.mxu0 0
    %1800 = vmatpush1.bf16.msra.mxu0 %v1660
    %1801 = vmatprep.subr.bf16.mxu0 0
    %1802 = vmatpush1.bf16.msra.mxu0 %v1659
    %1803 = vmatprep.subr.bf16.mxu0 0
    %1804 = vmatpush1.bf16.msra.mxu0 %v1658
    %1805 = vmatprep.subr.bf16.mxu0 0
    %1806 = vmatpush1.bf16.msra.mxu0 %v1657
    %1807 = vmatprep.subr.bf16.mxu0 0
    %1808 = vmatpush1.bf16.msra.mxu0 %v1656
    %1809 = vmatprep.subr.bf16.mxu0 0
    %1810 = vmatpush1.bf16.msra.mxu0 %v1655
    %1811 = vmatprep.subr.bf16.mxu0 0
    %1812 = vmatpush1.bf16.msra.mxu0 %v1654
    %1813 = vmatprep.subr.bf16.mxu0 0
    %1814 = vmatpush1.bf16.msra.mxu0 %v1653
    %1815 = vmatprep.subr.bf16.mxu0 0
    %1816 = vmatpush2.bf16.msra.mxu0 0
    %1817 = vmatprep.subr.bf16.mxu0 0
    %1818 = vmatpush2.bf16.msra.mxu0 0
    %1819 = vmatprep.subr.bf16.mxu0 0
    %1820 = vmatpush2.bf16.msra.mxu0 0
    %1821 = vmatprep.subr.bf16.mxu0 0
    %1822 = vmatpush2.bf16.msra.mxu0 0
    %1823 = vmatprep.subr.bf16.mxu0 0
    %1824 = vmatpush2.bf16.msra.mxu0 %v1717
    %1825 = vmatprep.subr.bf16.mxu0 0
    %1826 = vmatpush2.bf16.msra.mxu0 %v1663
    %1827 = vmatprep.subr.bf16.mxu0 0
    %1828 = vmatpush2.bf16.msra.mxu0 %v1662
    %1829 = vmatprep.subr.bf16.mxu0 0
    %1830 = vmatpush2.bf16.msra.mxu0 %v1661
    %1831 = vmatprep.mubr.bf16.mxu0 %v1710
    %1832 = vmatmul.mubr.bf16.gmra.mxu0 %v1354
    %v1833 = vpop.f32.mrf.mxu0
    %v1834 = vadd.f32 %v1794, %v1833
    %v1835 = vpop.f32.mrf.mxu0
    %v1836 = vpop.f32.mrf.mxu0
    %v1837 = vpop.f32.mrf.mxu0
    %1838 = vdwg.mxu0
    %v1927 = vunpack.c.l.b16 %v687
    %v1928 = vunpack.c.l.b16 %v688
    %v1929 = vunpack.c.l.b16 %v689
    %v1930 = vunpack.c.l.b16 %v690
    %v1931 = vunpack.c.l.b16 %v691
    %v1932 = vunpack.c.l.b16 %v692
    %v1933 = vunpack.c.l.b16 %v693
    %v1934 = vunpack.c.l.b16 %v694
    %v1935 = vunpack.c.l.b16 %v695
    %v1936 = vunpack.c.l.b16 %v696
    %v1937 = vunpack.c.l.b16 %v697
    %v1938 = vunpack.c.l.b16 %v698
    %v1939 = vunpack.c.l.b16 %v699
    %v1940 = vunpack.c.l.b16 %v700
    %v1941 = vunpack.c.l.b16 %v701
    %v1942 = vunpack.c.l.b16 %v702
    %v1943 = vunpack.c.l.b16 %v703
    %v1944 = vunpack.c.l.b16 %v704
    %v1945 = vunpack.c.l.b16 %v705
    %v1946 = vunpack.c.l.b16 %v706
    %v1947 = vunpack.c.l.b16 %v707
    %v1948 = vunpack.c.l.b16 %v708
    %v1949 = vunpack.c.l.b16 %v709
    %v1950 = vunpack.c.l.b16 %v710
    %v1951 = vunpack.c.l.b16 %v711
    %v1952 = vunpack.c.l.b16 %v712
    %v1953 = vunpack.c.l.b16 %v713
    %v1954 = vunpack.c.l.b16 %v714
    %v1955 = vunpack.c.l.b16 %v715
    %v1956 = vunpack.c.l.b16 %v716
    %v1957 = vunpack.c.l.b16 %v717
    %v1958 = vunpack.c.l.b16 %v718
    %v1959 = vunpack.c.l.b16 %v719
    %v1960 = vunpack.c.l.b16 %v720
    %v1961 = vunpack.c.l.b16 %v721
    %v1962 = vunpack.c.l.b16 %v722
    %v1963 = vunpack.c.l.b16 %v723
    %v1964 = vunpack.c.l.b16 %v724
    %v1965 = vunpack.c.l.b16 %v725
    %v1966 = vunpack.c.l.b16 %v726
    %v1967 = vunpack.c.l.b16 %v727
    %v1968 = vunpack.c.l.b16 %v728
    %v1969 = vunpack.c.l.b16 %v729
    %v1970 = vunpack.c.l.b16 %v730
    %v1971 = vunpack.c.l.b16 %v731
    %v1972 = vunpack.c.l.b16 %v732
    %v1973 = vunpack.c.l.b16 %v733
    %v1974 = vunpack.c.l.b16 %v734
    %v1975 = vunpack.c.l.b16 %v735
    %v1976 = vunpack.c.l.b16 %v736
    %v1977 = vunpack.c.l.b16 %v737
    %v1978 = vunpack.c.l.b16 %v738
    %v1979 = vunpack.c.l.b16 %v739
    %v1980 = vunpack.c.l.b16 %v740
    %v1981 = vunpack.c.l.b16 %v741
    %v1982 = vunpack.c.l.b16 %v742
    %v1983 = vunpack.c.l.b16 %v743
    %v1984 = vunpack.c.l.b16 %v744
    %v1985 = vunpack.c.l.b16 %v745
    %v1986 = vunpack.c.l.b16 %v746
    %v1987 = vunpack.c.l.b16 %v747
    %v1988 = vunpack.c.l.b16 %v748
    %v1989 = vunpack.c.l.b16 %v749
    %v1990 = vunpack.c.l.b16 %v750
    %v1991 = vunpack.c.l.b16 %v751
    %v1992 = vunpack.c.l.b16 %v752
    %v1993 = vunpack.c.l.b16 %v753
    %v1994 = vunpack.c.l.b16 %v754
    %v1995 = vunpack.c.l.b16 %v755
    %v1996 = vunpack.c.l.b16 %v756
    %v1997 = vunpack.c.l.b16 %v757
    %v1998 = vunpack.c.l.b16 %v758
    %v1999 = vunpack.c.l.b16 %v759
    %v2000 = vunpack.c.l.b16 %v760
    %v2001 = vunpack.c.l.b16 %v761
    %v2002 = vunpack.c.l.b16 %v762
    %v2003 = vunpack.c.l.b16 %v763
    %v2004 = vunpack.c.l.b16 %v764
    %v2005 = vunpack.c.l.b16 %v765
    %v2006 = vunpack.c.l.b16 %v766
    %v2007 = vunpack.c.l.b16 %v767
    %v2008 = vunpack.c.l.b16 %v768
    %v2009 = vunpack.c.l.b16 %v769
    %v2010 = vunpack.c.l.b16 %v770
    %v2011 = vunpack.c.l.b16 %v771
    %v2012 = vunpack.c.l.b16 %v772
    %v2013 = vunpack.c.l.b16 %v773
    %v2014 = vunpack.c.l.b16 %v774
    %v2015 = vpack.c.b16 %v1928, %v1927
    %v2016 = vpack.c.b16 %v1930, %v1929
    %v2017 = vpack.c.b16 %v1932, %v1931
    %v2018 = vpack.c.b16 %v1934, %v1933
    %v2019 = vpack.c.b16 %v1936, %v1935
    %v2020 = vpack.c.b16 %v1938, %v1937
    %v2021 = vpack.c.b16 %v1940, %v1939
    %v2022 = vpack.c.b16 %v1942, %v1941
    %v2023 = vpack.c.b16 %v1944, %v1943
    %v2024 = vpack.c.b16 %v1946, %v1945
    %v2025 = vpack.c.b16 %v1948, %v1947
    %v2026 = vpack.c.b16 %v1950, %v1949
    %v2027 = vpack.c.b16 %v1952, %v1951
    %v2028 = vpack.c.b16 %v1954, %v1953
    %v2029 = vpack.c.b16 %v1956, %v1955
    %v2030 = vpack.c.b16 %v1958, %v1957
    %v2031 = vpack.c.b16 %v1960, %v1959
    %v2032 = vpack.c.b16 %v1962, %v1961
    %v2033 = vpack.c.b16 %v1964, %v1963
    %v2034 = vpack.c.b16 %v1966, %v1965
    %v2035 = vpack.c.b16 %v1968, %v1967
    %v2036 = vpack.c.b16 %v1970, %v1969
    %v2037 = vpack.c.b16 %v1972, %v1971
    %v2038 = vpack.c.b16 %v1974, %v1973
    %v2039 = vpack.c.b16 %v1976, %v1975
    %v2040 = vpack.c.b16 %v1978, %v1977
    %v2041 = vpack.c.b16 %v1980, %v1979
    %v2042 = vpack.c.b16 %v1982, %v1981
    %v2043 = vpack.c.b16 %v1984, %v1983
    %v2044 = vpack.c.b16 %v1986, %v1985
    %v2045 = vpack.c.b16 %v1988, %v1987
    %v2046 = vpack.c.b16 %v1990, %v1989
    %v2047 = vpack.c.b16 %v1992, %v1991
    %v2048 = vpack.c.b16 %v1994, %v1993
    %v2049 = vpack.c.b16 %v1996, %v1995
    %v2050 = vpack.c.b16 %v1998, %v1997
    %v2051 = vpack.c.b16 %v2000, %v1999
    %v2052 = vpack.c.b16 %v2002, %v2001
    %v2053 = vpack.c.b16 %v2004, %v2003
    %v2054 = vpack.c.b16 %v2006, %v2005
    %v2055 = vpack.c.b16 %v2008, %v2007
    %v2056 = vpack.c.b16 %v2010, %v2009
    %v2057 = vpack.c.b16 %v2012, %v2011
    %v2058 = vpack.c.b16 %v2014, %v2013
    %v2103 = vsel %vm1708, %v686, 0
    %v2106 = vand.u32 %v2058, %v1715
    %2108 = vmatprep.subr.bf16.mxu0 0
    %2109 = vmatpush1.bf16.msra.mxu0 %v2022
    %2110 = vmatprep.subr.bf16.mxu0 0
    %2111 = vmatpush1.bf16.msra.mxu0 %v2021
    %2112 = vmatprep.subr.bf16.mxu0 0
    %2113 = vmatpush1.bf16.msra.mxu0 %v2020
    %2114 = vmatprep.subr.bf16.mxu0 0
    %2115 = vmatpush1.bf16.msra.mxu0 %v2019
    %2116 = vmatprep.subr.bf16.mxu0 0
    %2117 = vmatpush1.bf16.msra.mxu0 %v2018
    %2118 = vmatprep.subr.bf16.mxu0 0
    %2119 = vmatpush1.bf16.msra.mxu0 %v2017
    %2120 = vmatprep.subr.bf16.mxu0 0
    %2121 = vmatpush1.bf16.msra.mxu0 %v2016
    %2122 = vmatprep.subr.bf16.mxu0 0
    %2123 = vmatpush1.bf16.msra.mxu0 %v2015
    %2124 = vmatprep.subr.bf16.mxu0 0
    %2125 = vmatpush2.bf16.msra.mxu0 %v2030
    %2126 = vmatprep.subr.bf16.mxu0 0
    %2127 = vmatpush2.bf16.msra.mxu0 %v2029
    %2128 = vmatprep.subr.bf16.mxu0 0
    %2129 = vmatpush2.bf16.msra.mxu0 %v2028
    %2130 = vmatprep.subr.bf16.mxu0 0
    %2131 = vmatpush2.bf16.msra.mxu0 %v2027
    %2132 = vmatprep.subr.bf16.mxu0 0
    %2133 = vmatpush2.bf16.msra.mxu0 %v2026
    %2134 = vmatprep.subr.bf16.mxu0 0
    %2135 = vmatpush2.bf16.msra.mxu0 %v2025
    %2136 = vmatprep.subr.bf16.mxu0 0
    %2137 = vmatpush2.bf16.msra.mxu0 %v2024
    %2138 = vmatprep.subr.bf16.mxu0 0
    %2139 = vmatpush2.bf16.msra.mxu0 %v2023
    %2140 = vmatprep.mubr.bf16.mxu0 %v682
    %2141 = vmatmul.mubr.bf16.gmra.mxu0 %v681
    %v2142 = vpop.f32.mrf.mxu0
    %v2143 = vadd.f32 %v1834, %v2142
    %v2144 = vpop.f32.mrf.mxu0
    %v2145 = vpop.f32.mrf.mxu0
    %v2146 = vpop.f32.mrf.mxu0
    %2147 = vdwg.mxu0
    %2148 = vmatprep.subr.bf16.mxu0 0
    %2149 = vmatpush1.bf16.msra.mxu0 %v2038
    %2150 = vmatprep.subr.bf16.mxu0 0
    %2151 = vmatpush1.bf16.msra.mxu0 %v2037
    %2152 = vmatprep.subr.bf16.mxu0 0
    %2153 = vmatpush1.bf16.msra.mxu0 %v2036
    %2154 = vmatprep.subr.bf16.mxu0 0
    %2155 = vmatpush1.bf16.msra.mxu0 %v2035
    %2156 = vmatprep.subr.bf16.mxu0 0
    %2157 = vmatpush1.bf16.msra.mxu0 %v2034
    %2158 = vmatprep.subr.bf16.mxu0 0
    %2159 = vmatpush1.bf16.msra.mxu0 %v2033
    %2160 = vmatprep.subr.bf16.mxu0 0
    %2161 = vmatpush1.bf16.msra.mxu0 %v2032
    %2162 = vmatprep.subr.bf16.mxu0 0
    %2163 = vmatpush1.bf16.msra.mxu0 %v2031
    %2164 = vmatprep.subr.bf16.mxu0 0
    %2165 = vmatpush2.bf16.msra.mxu0 %v2046
    %2166 = vmatprep.subr.bf16.mxu0 0
    %2167 = vmatpush2.bf16.msra.mxu0 %v2045
    %2168 = vmatprep.subr.bf16.mxu0 0
    %2169 = vmatpush2.bf16.msra.mxu0 %v2044
    %2170 = vmatprep.subr.bf16.mxu0 0
    %2171 = vmatpush2.bf16.msra.mxu0 %v2043
    %2172 = vmatprep.subr.bf16.mxu0 0
    %2173 = vmatpush2.bf16.msra.mxu0 %v2042
    %2174 = vmatprep.subr.bf16.mxu0 0
    %2175 = vmatpush2.bf16.msra.mxu0 %v2041
    %2176 = vmatprep.subr.bf16.mxu0 0
    %2177 = vmatpush2.bf16.msra.mxu0 %v2040
    %2178 = vmatprep.subr.bf16.mxu0 0
    %2179 = vmatpush2.bf16.msra.mxu0 %v2039
    %2180 = vmatprep.mubr.bf16.mxu0 %v684
    %2181 = vmatmul.mubr.bf16.gmra.mxu0 %v683
    %v2182 = vpop.f32.mrf.mxu0
    %v2183 = vadd.f32 %v2143, %v2182
    %v2184 = vpop.f32.mrf.mxu0
    %v2185 = vpop.f32.mrf.mxu0
    %v2186 = vpop.f32.mrf.mxu0
    %2187 = vdwg.mxu0
    %2188 = vmatprep.subr.bf16.mxu0 0
    %2189 = vmatpush1.bf16.msra.mxu0 %v2054
    %2190 = vmatprep.subr.bf16.mxu0 0
    %2191 = vmatpush1.bf16.msra.mxu0 %v2053
    %2192 = vmatprep.subr.bf16.mxu0 0
    %2193 = vmatpush1.bf16.msra.mxu0 %v2052
    %2194 = vmatprep.subr.bf16.mxu0 0
    %2195 = vmatpush1.bf16.msra.mxu0 %v2051
    %2196 = vmatprep.subr.bf16.mxu0 0
    %2197 = vmatpush1.bf16.msra.mxu0 %v2050
    %2198 = vmatprep.subr.bf16.mxu0 0
    %2199 = vmatpush1.bf16.msra.mxu0 %v2049
    %2200 = vmatprep.subr.bf16.mxu0 0
    %2201 = vmatpush1.bf16.msra.mxu0 %v2048
    %2202 = vmatprep.subr.bf16.mxu0 0
    %2203 = vmatpush1.bf16.msra.mxu0 %v2047
    %2204 = vmatprep.subr.bf16.mxu0 0
    %2205 = vmatpush2.bf16.msra.mxu0 0
    %2206 = vmatprep.subr.bf16.mxu0 0
    %2207 = vmatpush2.bf16.msra.mxu0 0
    %2208 = vmatprep.subr.bf16.mxu0 0
    %2209 = vmatpush2.bf16.msra.mxu0 0
    %2210 = vmatprep.subr.bf16.mxu0 0
    %2211 = vmatpush2.bf16.msra.mxu0 0
    %2212 = vmatprep.subr.bf16.mxu0 0
    %2213 = vmatpush2.bf16.msra.mxu0 %v2106
    %2214 = vmatprep.subr.bf16.mxu0 0
    %2215 = vmatpush2.bf16.msra.mxu0 %v2057
    %2216 = vmatprep.subr.bf16.mxu0 0
    %2217 = vmatpush2.bf16.msra.mxu0 %v2056
    %2218 = vmatprep.subr.bf16.mxu0 0
    %2219 = vmatpush2.bf16.msra.mxu0 %v2055
    %2220 = vmatprep.mubr.bf16.mxu0 %v2103
    %2221 = vmatmul.mubr.bf16.gmra.mxu0 %v685
    %v2222 = vpop.f32.mrf.mxu0
    %v2223 = vadd.f32 %v2183, %v2222
    %v2224 = vpop.f32.mrf.mxu0
    %v2225 = vpop.f32.mrf.mxu0
    %v2226 = vpop.f32.mrf.mxu0
    %2227 = vdwg.mxu0
    %s2228 = sld [smem:[#allocation2 + $0x12]]
    %p2230 = scmp.ne.f32.partialorder %s2228, %s2228
    %s2231 = sshrl.u32 %s2228, 16
    %s2232 = sand.u32 %s2231, 1
    %s2233 = sadd.s32 32767, %s2232
    %s2234 = sadd.s32 %s2228, %s2233
    %s2235 = sand.u32 %s2234, 4294901760
    %s2236 = scalar_select %p2230, 2143289344, %s2235
    %s2238 = sshrl.u32 %s2236, 16
    %s2239 = sld [smem:[#allocation2 + $0x13]]
    %p2241 = scmp.ne.f32.partialorder %s2239, %s2239
    %s2242 = sshrl.u32 %s2239, 16
    %s2243 = sand.u32 %s2242, 1
    %s2244 = sadd.s32 32767, %s2243
    %s2245 = sadd.s32 %s2239, %s2244
    %s2246 = sand.u32 %s2245, 4294901760
    %s2247 = scalar_select %p2241, 2143289344, %s2246
    %s2249 = sshrl.u32 %s2247, 16
    %s2250 = sld [smem:[#allocation2 + $0x14]]
    %p2252 = scmp.ne.f32.partialorder %s2250, %s2250
    %s2253 = sshrl.u32 %s2250, 16
    %s2254 = sand.u32 %s2253, 1
    %s2255 = sadd.s32 32767, %s2254
    %s2256 = sadd.s32 %s2250, %s2255
    %s2257 = sand.u32 %s2256, 4294901760
    %s2258 = scalar_select %p2252, 2143289344, %s2257
    %s2260 = sshrl.u32 %s2258, 16
    %s2261 = sld [smem:[#allocation2 + $0x15]]
    %p2263 = scmp.ne.f32.partialorder %s2261, %s2261
    %s2264 = sshrl.u32 %s2261, 16
    %s2265 = sand.u32 %s2264, 1
    %s2266 = sadd.s32 32767, %s2265
    %s2267 = sadd.s32 %s2261, %s2266
    %s2268 = sand.u32 %s2267, 4294901760
    %s2269 = scalar_select %p2263, 2143289344, %s2268
    %s2271 = sshrl.u32 %s2269, 16
    %s2272 = sld [smem:[#allocation2 + $0x16]]
    %p2274 = scmp.ne.f32.partialorder %s2272, %s2272
    %s2275 = sshrl.u32 %s2272, 16
    %s2276 = sand.u32 %s2275, 1
    %s2277 = sadd.s32 32767, %s2276
    %s2278 = sadd.s32 %s2272, %s2277
    %s2279 = sand.u32 %s2278, 4294901760
    %s2280 = scalar_select %p2274, 2143289344, %s2279
    %s2282 = sshrl.u32 %s2280, 16
    %s2283 = sld [smem:[#allocation2 + $0x17]]
    %p2285 = scmp.ne.f32.partialorder %s2283, %s2283
    %s2286 = sshrl.u32 %s2283, 16
    %s2287 = sand.u32 %s2286, 1
    %s2288 = sadd.s32 32767, %s2287
    %s2289 = sadd.s32 %s2283, %s2288
    %s2290 = sand.u32 %s2289, 4294901760
    %s2291 = scalar_select %p2285, 2143289344, %s2290
    %s2293 = sshrl.u32 %s2291, 16
    %s2294 = sld [smem:[#allocation2 + $0x18]]
    %p2296 = scmp.ne.f32.partialorder %s2294, %s2294
    %s2297 = sshrl.u32 %s2294, 16
    %s2298 = sand.u32 %s2297, 1
    %s2299 = sadd.s32 32767, %s2298
    %s2300 = sadd.s32 %s2294, %s2299
    %s2301 = sand.u32 %s2300, 4294901760
    %s2302 = scalar_select %p2296, 2143289344, %s2301
    %s2304 = sshrl.u32 %s2302, 16
    %s2305 = sld [smem:[#allocation2 + $0x19]]
    %p2307 = scmp.ne.f32.partialorder %s2305, %s2305
    %s2308 = sshrl.u32 %s2305, 16
    %s2309 = sand.u32 %s2308, 1
    %s2310 = sadd.s32 32767, %s2309
    %s2311 = sadd.s32 %s2305, %s2310
    %s2312 = sand.u32 %s2311, 4294901760
    %s2313 = scalar_select %p2307, 2143289344, %s2312
    %s2315 = sshrl.u32 %s2313, 16
    %s2316 = sld [smem:[#allocation2 + $0x1a]]
    %p2318 = scmp.ne.f32.partialorder %s2316, %s2316
    %s2319 = sshrl.u32 %s2316, 16
    %s2320 = sand.u32 %s2319, 1
    %s2321 = sadd.s32 32767, %s2320
    %s2322 = sadd.s32 %s2316, %s2321
    %s2323 = sand.u32 %s2322, 4294901760
    %s2324 = scalar_select %p2318, 2143289344, %s2323
    %s2326 = sshrl.u32 %s2324, 16
    %s2327 = sshll.u32 %s2238, 16
    %s2328 = sor.u32 %s2238, %s2327
    %v2329 = vstv %s2328
    %v2331 = vmul.bf16 %v91, %v2329
    %v2332 = vmul.bf16 %v92, %v2329
    %v2333 = vmul.bf16 %v93, %v2329
    %v2334 = vmul.bf16 %v94, %v2329
    %v2335 = vmul.bf16 %v95, %v2329
    %v2336 = vmul.bf16 %v96, %v2329
    %s2337 = sshll.u32 %s2249, 16
    %s2338 = sor.u32 %s2249, %s2337
    %v2339 = vstv %s2338
    %v2341 = vmul.bf16 %v91, %v2339
    %v2342 = vmul.bf16 %v92, %v2339
    %v2343 = vmul.bf16 %v93, %v2339
    %v2344 = vmul.bf16 %v94, %v2339
    %v2345 = vmul.bf16 %v95, %v2339
    %v2346 = vmul.bf16 %v96, %v2339
    %2353 = vrot.lane.b32.xlu0 %v2341, 127
    %v2354 = vpop.permute.xlu0 %2353
    %2355 = vrot.lane.b32.xlu0 %v2342, 127
    %v2356 = vpop.permute.xlu0 %2355
    %2357 = vrot.lane.b32.xlu0 %v2343, 127
    %v2358 = vpop.permute.xlu0 %2357
    %2359 = vrot.lane.b32.xlu0 %v2344, 127
    %v2360 = vpop.permute.xlu0 %2359
    %2361 = vrot.lane.b32.xlu0 %v2345, 127
    %v2362 = vpop.permute.xlu0 %2361
    %2363 = vrot.lane.b32.xlu0 %v2346, 127
    %v2364 = vpop.permute.xlu0 %2363
    %v2365 = vsel %vm235, %v2354, %v2356
    %v2366 = vsel %vm235, %v2356, %v2358
    %v2367 = vsel %vm235, %v2358, %v2360
    %v2368 = vsel %vm235, %v2360, %v2362
    %v2369 = vsel %vm235, %v2362, %v2364
    %v2376 = vadd.bf16 %v2331, %v2365
    %v2377 = vadd.bf16 %v2332, %v2366
    %v2378 = vadd.bf16 %v2333, %v2367
    %v2379 = vadd.bf16 %v2334, %v2368
    %v2380 = vadd.bf16 %v2335, %v2369
    %v2381 = vadd.bf16 %v2336, %v2364
    %s2382 = sshll.u32 %s2260, 16
    %s2383 = sor.u32 %s2260, %s2382
    %v2384 = vstv %s2383
    %v2386 = vmul.bf16 %v91, %v2384
    %v2387 = vmul.bf16 %v92, %v2384
    %v2388 = vmul.bf16 %v93, %v2384
    %v2389 = vmul.bf16 %v94, %v2384
    %v2390 = vmul.bf16 %v95, %v2384
    %v2391 = vmul.bf16 %v96, %v2384
    %2398 = vrot.lane.b32.xlu0 %v2386, 126
    %v2399 = vpop.permute.xlu0 %2398
    %2400 = vrot.lane.b32.xlu0 %v2387, 126
    %v2401 = vpop.permute.xlu0 %2400
    %2402 = vrot.lane.b32.xlu0 %v2388, 126
    %v2403 = vpop.permute.xlu0 %2402
    %2404 = vrot.lane.b32.xlu0 %v2389, 126
    %v2405 = vpop.permute.xlu0 %2404
    %2406 = vrot.lane.b32.xlu0 %v2390, 126
    %v2407 = vpop.permute.xlu0 %2406
    %2408 = vrot.lane.b32.xlu0 %v2391, 126
    %v2409 = vpop.permute.xlu0 %2408
    %v2410 = vsel %vm281, %v2399, %v2401
    %v2411 = vsel %vm281, %v2401, %v2403
    %v2412 = vsel %vm281, %v2403, %v2405
    %v2413 = vsel %vm281, %v2405, %v2407
    %v2414 = vsel %vm281, %v2407, %v2409
    %v2421 = vadd.bf16 %v2376, %v2410
    %v2422 = vadd.bf16 %v2377, %v2411
    %v2423 = vadd.bf16 %v2378, %v2412
    %v2424 = vadd.bf16 %v2379, %v2413
    %v2425 = vadd.bf16 %v2380, %v2414
    %v2426 = vadd.bf16 %v2381, %v2409
    %s2427 = sshll.u32 %s2271, 16
    %s2428 = sor.u32 %s2271, %s2427
    %v2429 = vstv %s2428
    %v2431 = vmul.bf16 %v91, %v2429
    %v2432 = vmul.bf16 %v92, %v2429
    %v2433 = vmul.bf16 %v93, %v2429
    %v2434 = vmul.bf16 %v94, %v2429
    %v2435 = vmul.bf16 %v95, %v2429
    %v2436 = vmul.bf16 %v96, %v2429
    %2443 = vrot.lane.b32.xlu0 %v2431, 100
    %v2444 = vpop.permute.xlu0 %2443
    %2445 = vrot.lane.b32.xlu0 %v2432, 100
    %v2446 = vpop.permute.xlu0 %2445
    %2447 = vrot.lane.b32.xlu0 %v2433, 100
    %v2448 = vpop.permute.xlu0 %2447
    %2449 = vrot.lane.b32.xlu0 %v2434, 100
    %v2450 = vpop.permute.xlu0 %2449
    %2451 = vrot.lane.b32.xlu0 %v2435, 100
    %v2452 = vpop.permute.xlu0 %2451
    %2453 = vrot.lane.b32.xlu0 %v2436, 100
    %v2454 = vpop.permute.xlu0 %2453
    %v2455 = vsel %vm327, %v2444, %v2446
    %v2456 = vsel %vm327, %v2446, %v2448
    %v2457 = vsel %vm327, %v2448, %v2450
    %v2458 = vsel %vm327, %v2450, %v2452
    %v2459 = vsel %vm327, %v2452, %v2454
    %v2466 = vadd.bf16 %v2421, %v2455
    %v2467 = vadd.bf16 %v2422, %v2456
    %v2468 = vadd.bf16 %v2423, %v2457
    %v2469 = vadd.bf16 %v2424, %v2458
    %v2470 = vadd.bf16 %v2425, %v2459
    %v2471 = vadd.bf16 %v2426, %v2454
    %s2472 = sshll.u32 %s2282, 16
    %s2473 = sor.u32 %s2282, %s2472
    %v2474 = vstv %s2473
    %v2476 = vmul.bf16 %v91, %v2474
    %v2477 = vmul.bf16 %v92, %v2474
    %v2478 = vmul.bf16 %v93, %v2474
    %v2479 = vmul.bf16 %v94, %v2474
    %v2480 = vmul.bf16 %v95, %v2474
    %v2481 = vmul.bf16 %v96, %v2474
    %2488 = vrot.lane.b32.xlu0 %v2476, 99
    %v2489 = vpop.permute.xlu0 %2488
    %2490 = vrot.lane.b32.xlu0 %v2477, 99
    %v2491 = vpop.permute.xlu0 %2490
    %2492 = vrot.lane.b32.xlu0 %v2478, 99
    %v2493 = vpop.permute.xlu0 %2492
    %2494 = vrot.lane.b32.xlu0 %v2479, 99
    %v2495 = vpop.permute.xlu0 %2494
    %2496 = vrot.lane.b32.xlu0 %v2480, 99
    %v2497 = vpop.permute.xlu0 %2496
    %2498 = vrot.lane.b32.xlu0 %v2481, 99
    %v2499 = vpop.permute.xlu0 %2498
    %v2500 = vsel %vm373, %v2489, %v2491
    %v2501 = vsel %vm373, %v2491, %v2493
    %v2502 = vsel %vm373, %v2493, %v2495
    %v2503 = vsel %vm373, %v2495, %v2497
    %v2504 = vsel %vm373, %v2497, %v2499
    %v2511 = vadd.bf16 %v2466, %v2500
    %v2512 = vadd.bf16 %v2467, %v2501
    %v2513 = vadd.bf16 %v2468, %v2502
    %v2514 = vadd.bf16 %v2469, %v2503
    %v2515 = vadd.bf16 %v2470, %v2504
    %v2516 = vadd.bf16 %v2471, %v2499
    %s2517 = sshll.u32 %s2293, 16
    %s2518 = sor.u32 %s2293, %s2517
    %v2519 = vstv %s2518
    %v2521 = vmul.bf16 %v91, %v2519
    %v2522 = vmul.bf16 %v92, %v2519
    %v2523 = vmul.bf16 %v93, %v2519
    %v2524 = vmul.bf16 %v94, %v2519
    %v2525 = vmul.bf16 %v95, %v2519
    %v2526 = vmul.bf16 %v96, %v2519
    %2533 = vrot.lane.b32.xlu0 %v2521, 98
    %v2534 = vpop.permute.xlu0 %2533
    %2535 = vrot.lane.b32.xlu0 %v2522, 98
    %v2536 = vpop.permute.xlu0 %2535
    %2537 = vrot.lane.b32.xlu0 %v2523, 98
    %v2538 = vpop.permute.xlu0 %2537
    %2539 = vrot.lane.b32.xlu0 %v2524, 98
    %v2540 = vpop.permute.xlu0 %2539
    %2541 = vrot.lane.b32.xlu0 %v2525, 98
    %v2542 = vpop.permute.xlu0 %2541
    %2543 = vrot.lane.b32.xlu0 %v2526, 98
    %v2544 = vpop.permute.xlu0 %2543
    %v2545 = vsel %vm419, %v2534, %v2536
    %v2546 = vsel %vm419, %v2536, %v2538
    %v2547 = vsel %vm419, %v2538, %v2540
    %v2548 = vsel %vm419, %v2540, %v2542
    %v2549 = vsel %vm419, %v2542, %v2544
    %v2556 = vadd.bf16 %v2511, %v2545
    %v2557 = vadd.bf16 %v2512, %v2546
    %v2558 = vadd.bf16 %v2513, %v2547
    %v2559 = vadd.bf16 %v2514, %v2548
    %v2560 = vadd.bf16 %v2515, %v2549
    %v2561 = vadd.bf16 %v2516, %v2544
    %s2562 = sshll.u32 %s2304, 16
    %s2563 = sor.u32 %s2304, %s2562
    %v2564 = vstv %s2563
    %v2566 = vmul.bf16 %v91, %v2564
    %v2567 = vmul.bf16 %v92, %v2564
    %v2568 = vmul.bf16 %v93, %v2564
    %v2569 = vmul.bf16 %v94, %v2564
    %v2570 = vmul.bf16 %v95, %v2564
    %v2571 = vmul.bf16 %v96, %v2564
    %v2572 = vmul.bf16 %v97, %v2564
    %2580 = vrot.lane.b32.xlu0 %v2566, 72
    %v2581 = vpop.permute.xlu0 %2580
    %2582 = vrot.lane.b32.xlu0 %v2567, 72
    %v2583 = vpop.permute.xlu0 %2582
    %2584 = vrot.lane.b32.xlu0 %v2568, 72
    %v2585 = vpop.permute.xlu0 %2584
    %2586 = vrot.lane.b32.xlu0 %v2569, 72
    %v2587 = vpop.permute.xlu0 %2586
    %2588 = vrot.lane.b32.xlu0 %v2570, 72
    %v2589 = vpop.permute.xlu0 %2588
    %2590 = vrot.lane.b32.xlu0 %v2571, 72
    %v2591 = vpop.permute.xlu0 %2590
    %2592 = vrot.lane.b32.xlu0 %v2572, 72
    %v2593 = vpop.permute.xlu0 %2592
    %v2594 = vsel %vm469, %v2581, %v2583
    %v2595 = vsel %vm469, %v2583, %v2585
    %v2596 = vsel %vm469, %v2585, %v2587
    %v2597 = vsel %vm469, %v2587, %v2589
    %v2598 = vsel %vm469, %v2589, %v2591
    %v2599 = vsel %vm469, %v2591, %v2593
    %v2606 = vadd.bf16 %v2556, %v2594
    %v2607 = vadd.bf16 %v2557, %v2595
    %v2608 = vadd.bf16 %v2558, %v2596
    %v2609 = vadd.bf16 %v2559, %v2597
    %v2610 = vadd.bf16 %v2560, %v2598
    %v2611 = vadd.bf16 %v2561, %v2599
    %s2612 = sshll.u32 %s2315, 16
    %s2613 = sor.u32 %s2315, %s2612
    %v2614 = vstv %s2613
    %v2616 = vmul.bf16 %v91, %v2614
    %v2617 = vmul.bf16 %v92, %v2614
    %v2618 = vmul.bf16 %v93, %v2614
    %v2619 = vmul.bf16 %v94, %v2614
    %v2620 = vmul.bf16 %v95, %v2614
    %v2621 = vmul.bf16 %v96, %v2614
    %v2622 = vmul.bf16 %v97, %v2614
    %2630 = vrot.lane.b32.xlu0 %v2616, 71
    %v2631 = vpop.permute.xlu0 %2630
    %2632 = vrot.lane.b32.xlu0 %v2617, 71
    %v2633 = vpop.permute.xlu0 %2632
    %2634 = vrot.lane.b32.xlu0 %v2618, 71
    %v2635 = vpop.permute.xlu0 %2634
    %2636 = vrot.lane.b32.xlu0 %v2619, 71
    %v2637 = vpop.permute.xlu0 %2636
    %2638 = vrot.lane.b32.xlu0 %v2620, 71
    %v2639 = vpop.permute.xlu0 %2638
    %2640 = vrot.lane.b32.xlu0 %v2621, 71
    %v2641 = vpop.permute.xlu0 %2640
    %2642 = vrot.lane.b32.xlu0 %v2622, 71
    %v2643 = vpop.permute.xlu0 %2642
    %v2644 = vsel %vm520, %v2631, %v2633
    %v2645 = vsel %vm520, %v2633, %v2635
    %v2646 = vsel %vm520, %v2635, %v2637
    %v2647 = vsel %vm520, %v2637, %v2639
    %v2648 = vsel %vm520, %v2639, %v2641
    %v2649 = vsel %vm520, %v2641, %v2643
    %v2656 = vadd.bf16 %v2606, %v2644
    %v2657 = vadd.bf16 %v2607, %v2645
    %v2658 = vadd.bf16 %v2608, %v2646
    %v2659 = vadd.bf16 %v2609, %v2647
    %v2660 = vadd.bf16 %v2610, %v2648
    %v2661 = vadd.bf16 %v2611, %v2649
    %s2662 = sshll.u32 %s2326, 16
    %s2663 = sor.u32 %s2326, %s2662
    %v2664 = vstv %s2663
    %v2666 = vmul.bf16 %v91, %v2664
    %v2667 = vmul.bf16 %v92, %v2664
    %v2668 = vmul.bf16 %v93, %v2664
    %v2669 = vmul.bf16 %v94, %v2664
    %v2670 = vmul.bf16 %v95, %v2664
    %v2671 = vmul.bf16 %v96, %v2664
    %v2672 = vmul.bf16 %v97, %v2664
    %2680 = vrot.lane.b32.xlu0 %v2666, 70
    %v2681 = vpop.permute.xlu0 %2680
    %2682 = vrot.lane.b32.xlu0 %v2667, 70
    %v2683 = vpop.permute.xlu0 %2682
    %2684 = vrot.lane.b32.xlu0 %v2668, 70
    %v2685 = vpop.permute.xlu0 %2684
    %2686 = vrot.lane.b32.xlu0 %v2669, 70
    %v2687 = vpop.permute.xlu0 %2686
    %2688 = vrot.lane.b32.xlu0 %v2670, 70
    %v2689 = vpop.permute.xlu0 %2688
    %2690 = vrot.lane.b32.xlu0 %v2671, 70
    %v2691 = vpop.permute.xlu0 %2690
    %2692 = vrot.lane.b32.xlu0 %v2672, 70
    %v2693 = vpop.permute.xlu0 %2692
    %v2694 = vsel %vm571, %v2681, %v2683
    %v2695 = vsel %vm571, %v2683, %v2685
    %v2696 = vsel %vm571, %v2685, %v2687
    %v2697 = vsel %vm571, %v2687, %v2689
    %v2698 = vsel %vm571, %v2689, %v2691
    %v2699 = vsel %vm571, %v2691, %v2693
    %v2706 = vadd.bf16 %v2656, %v2694
    %v2707 = vadd.bf16 %v2657, %v2695
    %v2708 = vadd.bf16 %v2658, %v2696
    %v2709 = vadd.bf16 %v2659, %v2697
    %v2710 = vadd.bf16 %v2660, %v2698
    %v2711 = vadd.bf16 %v2661, %v2699
    %2718 = vrot.lane.b32.xlu0 %v2706, 127
    %v2719 = vpop.permute.xlu0 %2718
    %2720 = vrot.lane.b32.xlu0 %v2707, 127
    %v2721 = vpop.permute.xlu0 %2720
    %2722 = vrot.lane.b32.xlu0 %v2708, 127
    %v2723 = vpop.permute.xlu0 %2722
    %2724 = vrot.lane.b32.xlu0 %v2709, 127
    %v2725 = vpop.permute.xlu0 %2724
    %2726 = vrot.lane.b32.xlu0 %v2710, 127
    %v2727 = vpop.permute.xlu0 %2726
    %2728 = vrot.lane.b32.xlu0 %v2711, 127
    %v2729 = vpop.permute.xlu0 %2728
    %v2730 = vsel %vm235, %v2719, %v2721
    %v2731 = vsel %vm235, %v2721, %v2723
    %v2732 = vsel %vm235, %v2723, %v2725
    %v2733 = vsel %vm235, %v2725, %v2727
    %v2734 = vsel %vm235, %v2727, %v2729
    %v2741 = vmax.bf16 %v2706, %v2730
    %v2742 = vmax.bf16 %v2707, %v2731
    %v2743 = vmax.bf16 %v2708, %v2732
    %v2744 = vmax.bf16 %v2709, %v2733
    %v2745 = vmax.bf16 %v2710, %v2734
    %v2746 = vmax.bf16 %v2711, %v2729
    %2753 = vrot.lane.b32.xlu0 %v2741, 100
    %v2754 = vpop.permute.xlu0 %2753
    %2755 = vrot.lane.b32.xlu0 %v2742, 100
    %v2756 = vpop.permute.xlu0 %2755
    %2757 = vrot.lane.b32.xlu0 %v2743, 100
    %v2758 = vpop.permute.xlu0 %2757
    %2759 = vrot.lane.b32.xlu0 %v2744, 100
    %v2760 = vpop.permute.xlu0 %2759
    %2761 = vrot.lane.b32.xlu0 %v2745, 100
    %v2762 = vpop.permute.xlu0 %2761
    %2763 = vrot.lane.b32.xlu0 %v2746, 100
    %v2764 = vpop.permute.xlu0 %2763
    %v2765 = vsel %vm327, %v2754, %v2756
    %v2766 = vsel %vm327, %v2756, %v2758
    %v2767 = vsel %vm327, %v2758, %v2760
    %v2768 = vsel %vm327, %v2760, %v2762
    %v2769 = vsel %vm327, %v2762, %v2764
    %v2776 = vmax.bf16 %v2741, %v2765
    %v2777 = vmax.bf16 %v2742, %v2766
    %v2778 = vmax.bf16 %v2743, %v2767
    %v2779 = vmax.bf16 %v2744, %v2768
    %v2780 = vmax.bf16 %v2745, %v2769
    %v2781 = vmax.bf16 %v2746, %v2764
    %s2782 = sld [smem:[#allocation5 + $0x2]]
    %p2784 = scmp.ne.f32.partialorder %s2782, %s2782
    %s2785 = sshrl.u32 %s2782, 16
    %s2786 = sand.u32 %s2785, 1
    %s2787 = sadd.s32 32767, %s2786
    %s2788 = sadd.s32 %s2782, %s2787
    %s2789 = sand.u32 %s2788, 4294901760
    %s2790 = scalar_select %p2784, 2143289344, %s2789
    %s2792 = sshrl.u32 %s2790, 16
    %s2793 = sshll.u32 %s2792, 16
    %s2794 = sor.u32 %s2792, %s2793
    %v2795 = vstv %s2794
    %v2797 = vadd.bf16 %v2776, %v2795
    %v2798 = vadd.bf16 %v2777, %v2795
    %v2799 = vadd.bf16 %v2778, %v2795
    %v2800 = vadd.bf16 %v2779, %v2795
    %v2801 = vadd.bf16 %v2780, %v2795
    %v2802 = vadd.bf16 %v2781, %v2795
    %v2803 = vmax.bf16 %v2797, 0
    %v2804 = vmax.bf16 %v2798, 0
    %v2805 = vmax.bf16 %v2799, 0
    %v2806 = vmax.bf16 %v2800, 0
    %v2807 = vmax.bf16 %v2801, 0
    %v2808 = vmax.bf16 %v2802, 0
    %s2809 = scalar_lea.vmem %s3, 704
    %v2810 = vld [vmem:[%s2809] sm:$0xf]
    %v2811 = vld [vmem:[%s2809 + $0x4] sm:$0xf]
    %v2812 = vld [vmem:[%s2809 + $0x8] sm:$0xf]
    %v2813 = vld [vmem:[%s2809 + $0xc] sm:$0xf]
    %v2814 = vld [vmem:[%s2809 + $0x10] sm:$0xf]
    %v2815 = vld [vmem:[%s2809 + $0x14] sm:$0xf]
    %v2816 = vld [vmem:[%s2809 + $0x18] sm:$0xf]
    %v2817 = vld [vmem:[%s2809 + $0x1c] sm:$0xf]
    %v2818 = vld [vmem:[%s2809 + $0x20] sm:$0xf]
    %v2819 = vld [vmem:[%s2809 + $0x24] sm:$0xf]
    %v2820 = vld [vmem:[%s2809 + $0x28] sm:$0xf]
    %v2821 = vld [vmem:[%s2809 + $0x2c] sm:$0xf]
    %v2822 = vld [vmem:[%s2809 + $0x30] sm:$0xf]
    %v2823 = vld [vmem:[%s2809 + $0x34] sm:$0xf]
    %v2824 = vld [vmem:[%s2809 + $0x38] sm:$0xf]
    %v2825 = vld [vmem:[%s2809 + $0x3c] sm:$0xf]
    %v2826 = vld [vmem:[%s2809 + $0x40] sm:$0xf]
    %v2827 = vld [vmem:[%s2809 + $0x44] sm:$0xf]
    %v2828 = vld [vmem:[%s2809 + $0x48] sm:$0xf]
    %v2829 = vld [vmem:[%s2809 + $0x4c] sm:$0xf]
    %v2830 = vld [vmem:[%s2809 + $0x50] sm:$0xf]
    %v2831 = vld [vmem:[%s2809 + $0x54] sm:$0xf]
    %v2832 = vld [vmem:[%s2809 + $0x58] sm:$0xf]
    %v2833 = vld [vmem:[%s2809 + $0x5c] sm:$0xf]
    %v2834 = vld [vmem:[%s2809 + $0x60] sm:$0xf]
    %v2835 = vld [vmem:[%s2809 + $0x64] sm:$0xf]
    %v2836 = vld [vmem:[%s2809 + $0x68] sm:$0xf]
    %v2837 = vld [vmem:[%s2809 + $0x6c] sm:$0xf]
    %v2838 = vld [vmem:[%s2809 + $0x70] sm:$0xf]
    %v2839 = vld [vmem:[%s2809 + $0x74] sm:$0xf]
    %v2840 = vld [vmem:[%s2809 + $0x78] sm:$0xf]
    %v2841 = vld [vmem:[%s2809 + $0x7c] sm:$0xf]
    %v2842 = vld [vmem:[%s2809 + $0x80] sm:$0xf]
    %v2843 = vld [vmem:[%s2809 + $0x84] sm:$0xf]
    %v2844 = vld [vmem:[%s2809 + $0x88] sm:$0xf]
    %v2845 = vld [vmem:[%s2809 + $0x8c] sm:$0xf]
    %v2846 = vld [vmem:[%s2809 + $0x90] sm:$0xf]
    %v2847 = vld [vmem:[%s2809 + $0x94] sm:$0xf]
    %v2848 = vld [vmem:[%s2809 + $0x98] sm:$0xf]
    %v2849 = vld [vmem:[%s2809 + $0x9c] sm:$0xf]
    %v2850 = vld [vmem:[%s2809 + $0xa0] sm:$0xf]
    %v2851 = vld [vmem:[%s2809 + $0xa4] sm:$0xf]
    %v2852 = vld [vmem:[%s2809 + $0xa8] sm:$0xf]
    %v2853 = vld [vmem:[%s2809 + $0xac] sm:$0xf]
    %v2854 = vld [vmem:[%s2809 + $0xb0] sm:$0xf]
    %v2855 = vld [vmem:[%s2809 + $0xb4] sm:$0xf]
    %v2856 = vld [vmem:[%s2809 + $0xb8] sm:$0xf]
    %v2857 = vld [vmem:[%s2809 + $0xbc] sm:$0xf]
    %v2858 = vld [vmem:[%s2809 + $0xc0] sm:$0xf]
    %v2859 = vld [vmem:[%s2809 + $0xc4] sm:$0xf]
    %v2860 = vld [vmem:[%s2809 + $0xc8] sm:$0xf]
    %v2861 = vld [vmem:[%s2809 + $0xcc] sm:$0xf]
    %v2862 = vld [vmem:[%s2809 + $0xd0] sm:$0xf]
    %v2863 = vld [vmem:[%s2809 + $0xd4] sm:$0xf]
    %v2864 = vld [vmem:[%s2809 + $0xd8] sm:$0xf]
    %v2865 = vld [vmem:[%s2809 + $0xdc] sm:$0xf]
    %v2866 = vld [vmem:[%s2809 + $0xe0] sm:$0xf]
    %v2867 = vld [vmem:[%s2809 + $0xe4] sm:$0xf]
    %v2868 = vld [vmem:[%s2809 + $0xe8] sm:$0xf]
    %v2869 = vld [vmem:[%s2809 + $0xec] sm:$0xf]
    %v2870 = vld [vmem:[%s2809 + $0xf0] sm:$0xf]
    %v2871 = vld [vmem:[%s2809 + $0xf4] sm:$0xf]
    %v2872 = vld [vmem:[%s2809 + $0xf8] sm:$0xf]
    %v2873 = vld [vmem:[%s2809 + $0xfc] sm:$0xf]
    %v2874 = vld [vmem:[%s2809 + $0x100] sm:$0xf]
    %v2875 = vld [vmem:[%s2809 + $0x104] sm:$0xf]
    %v2876 = vld [vmem:[%s2809 + $0x108] sm:$0xf]
    %v2877 = vld [vmem:[%s2809 + $0x10c] sm:$0xf]
    %v2878 = vld [vmem:[%s2809 + $0x110] sm:$0xf]
    %v2879 = vld [vmem:[%s2809 + $0x114] sm:$0xf]
    %v2880 = vld [vmem:[%s2809 + $0x118] sm:$0xf]
    %v2881 = vld [vmem:[%s2809 + $0x11c] sm:$0xf]
    %v2882 = vld [vmem:[%s2809 + $0x120] sm:$0xf]
    %v2883 = vld [vmem:[%s2809 + $0x124] sm:$0xf]
    %v2884 = vld [vmem:[%s2809 + $0x128] sm:$0xf]
    %v2885 = vld [vmem:[%s2809 + $0x12c] sm:$0xf]
    %v2886 = vld [vmem:[%s2809 + $0x130] sm:$0xf]
    %v2887 = vld [vmem:[%s2809 + $0x134] sm:$0xf]
    %v2888 = vld [vmem:[%s2809 + $0x138] sm:$0xf]
    %v2889 = vld [vmem:[%s2809 + $0x13c] sm:$0xf]
    %v2890 = vld [vmem:[%s2809 + $0x140] sm:$0xf]
    %v2891 = vld [vmem:[%s2809 + $0x144] sm:$0xf]
    %v2892 = vld [vmem:[%s2809 + $0x148] sm:$0xf]
    %v2893 = vld [vmem:[%s2809 + $0x14c] sm:$0xf]
    %v2894 = vld [vmem:[%s2809 + $0x150] sm:$0xf]
    %v2895 = vld [vmem:[%s2809 + $0x154] sm:$0xf]
    %v2896 = vld [vmem:[%s2809 + $0x158] sm:$0xf]
    %v2897 = vld [vmem:[%s2809 + $0x15c] sm:$0x1]
    %v2986 = vunpack.c.l.b16 %v2810
    %v2987 = vunpack.c.l.b16 %v2811
    %v2988 = vunpack.c.l.b16 %v2812
    %v2989 = vunpack.c.l.b16 %v2813
    %v2990 = vunpack.c.l.b16 %v2814
    %v2991 = vunpack.c.l.b16 %v2815
    %v2992 = vunpack.c.l.b16 %v2816
    %v2993 = vunpack.c.l.b16 %v2817
    %v2994 = vunpack.c.l.b16 %v2818
    %v2995 = vunpack.c.l.b16 %v2819
    %v2996 = vunpack.c.l.b16 %v2820
    %v2997 = vunpack.c.l.b16 %v2821
    %v2998 = vunpack.c.l.b16 %v2822
    %v2999 = vunpack.c.l.b16 %v2823
    %v3000 = vunpack.c.l.b16 %v2824
    %v3001 = vunpack.c.l.b16 %v2825
    %v3002 = vunpack.c.l.b16 %v2826
    %v3003 = vunpack.c.l.b16 %v2827
    %v3004 = vunpack.c.l.b16 %v2828
    %v3005 = vunpack.c.l.b16 %v2829
    %v3006 = vunpack.c.l.b16 %v2830
    %v3007 = vunpack.c.l.b16 %v2831
    %v3008 = vunpack.c.l.b16 %v2832
    %v3009 = vunpack.c.l.b16 %v2833
    %v3010 = vunpack.c.l.b16 %v2834
    %v3011 = vunpack.c.l.b16 %v2835
    %v3012 = vunpack.c.l.b16 %v2836
    %v3013 = vunpack.c.l.b16 %v2837
    %v3014 = vunpack.c.l.b16 %v2838
    %v3015 = vunpack.c.l.b16 %v2839
    %v3016 = vunpack.c.l.b16 %v2840
    %v3017 = vunpack.c.l.b16 %v2841
    %v3018 = vunpack.c.l.b16 %v2842
    %v3019 = vunpack.c.l.b16 %v2843
    %v3020 = vunpack.c.l.b16 %v2844
    %v3021 = vunpack.c.l.b16 %v2845
    %v3022 = vunpack.c.l.b16 %v2846
    %v3023 = vunpack.c.l.b16 %v2847
    %v3024 = vunpack.c.l.b16 %v2848
    %v3025 = vunpack.c.l.b16 %v2849
    %v3026 = vunpack.c.l.b16 %v2850
    %v3027 = vunpack.c.l.b16 %v2851
    %v3028 = vunpack.c.l.b16 %v2852
    %v3029 = vunpack.c.l.b16 %v2853
    %v3030 = vunpack.c.l.b16 %v2854
    %v3031 = vunpack.c.l.b16 %v2855
    %v3032 = vunpack.c.l.b16 %v2856
    %v3033 = vunpack.c.l.b16 %v2857
    %v3034 = vunpack.c.l.b16 %v2858
    %v3035 = vunpack.c.l.b16 %v2859
    %v3036 = vunpack.c.l.b16 %v2860
    %v3037 = vunpack.c.l.b16 %v2861
    %v3038 = vunpack.c.l.b16 %v2862
    %v3039 = vunpack.c.l.b16 %v2863
    %v3040 = vunpack.c.l.b16 %v2864
    %v3041 = vunpack.c.l.b16 %v2865
    %v3042 = vunpack.c.l.b16 %v2866
    %v3043 = vunpack.c.l.b16 %v2867
    %v3044 = vunpack.c.l.b16 %v2868
    %v3045 = vunpack.c.l.b16 %v2869
    %v3046 = vunpack.c.l.b16 %v2870
    %v3047 = vunpack.c.l.b16 %v2871
    %v3048 = vunpack.c.l.b16 %v2872
    %v3049 = vunpack.c.l.b16 %v2873
    %v3050 = vunpack.c.l.b16 %v2874
    %v3051 = vunpack.c.l.b16 %v2875
    %v3052 = vunpack.c.l.b16 %v2876
    %v3053 = vunpack.c.l.b16 %v2877
    %v3054 = vunpack.c.l.b16 %v2878
    %v3055 = vunpack.c.l.b16 %v2879
    %v3056 = vunpack.c.l.b16 %v2880
    %v3057 = vunpack.c.l.b16 %v2881
    %v3058 = vunpack.c.l.b16 %v2882
    %v3059 = vunpack.c.l.b16 %v2883
    %v3060 = vunpack.c.l.b16 %v2884
    %v3061 = vunpack.c.l.b16 %v2885
    %v3062 = vunpack.c.l.b16 %v2886
    %v3063 = vunpack.c.l.b16 %v2887
    %v3064 = vunpack.c.l.b16 %v2888
    %v3065 = vunpack.c.l.b16 %v2889
    %v3066 = vunpack.c.l.b16 %v2890
    %v3067 = vunpack.c.l.b16 %v2891
    %v3068 = vunpack.c.l.b16 %v2892
    %v3069 = vunpack.c.l.b16 %v2893
    %v3070 = vunpack.c.l.b16 %v2894
    %v3071 = vunpack.c.l.b16 %v2895
    %v3072 = vunpack.c.l.b16 %v2896
    %v3073 = vunpack.c.l.b16 %v2897
    %v3074 = vpack.c.b16 %v2987, %v2986
    %v3075 = vpack.c.b16 %v2989, %v2988
    %v3076 = vpack.c.b16 %v2991, %v2990
    %v3077 = vpack.c.b16 %v2993, %v2992
    %v3078 = vpack.c.b16 %v2995, %v2994
    %v3079 = vpack.c.b16 %v2997, %v2996
    %v3080 = vpack.c.b16 %v2999, %v2998
    %v3081 = vpack.c.b16 %v3001, %v3000
    %v3082 = vpack.c.b16 %v3003, %v3002
    %v3083 = vpack.c.b16 %v3005, %v3004
    %v3084 = vpack.c.b16 %v3007, %v3006
    %v3085 = vpack.c.b16 %v3009, %v3008
    %v3086 = vpack.c.b16 %v3011, %v3010
    %v3087 = vpack.c.b16 %v3013, %v3012
    %v3088 = vpack.c.b16 %v3015, %v3014
    %v3089 = vpack.c.b16 %v3017, %v3016
    %v3090 = vpack.c.b16 %v3019, %v3018
    %v3091 = vpack.c.b16 %v3021, %v3020
    %v3092 = vpack.c.b16 %v3023, %v3022
    %v3093 = vpack.c.b16 %v3025, %v3024
    %v3094 = vpack.c.b16 %v3027, %v3026
    %v3095 = vpack.c.b16 %v3029, %v3028
    %v3096 = vpack.c.b16 %v3031, %v3030
    %v3097 = vpack.c.b16 %v3033, %v3032
    %v3098 = vpack.c.b16 %v3035, %v3034
    %v3099 = vpack.c.b16 %v3037, %v3036
    %v3100 = vpack.c.b16 %v3039, %v3038
    %v3101 = vpack.c.b16 %v3041, %v3040
    %v3102 = vpack.c.b16 %v3043, %v3042
    %v3103 = vpack.c.b16 %v3045, %v3044
    %v3104 = vpack.c.b16 %v3047, %v3046
    %v3105 = vpack.c.b16 %v3049, %v3048
    %v3106 = vpack.c.b16 %v3051, %v3050
    %v3107 = vpack.c.b16 %v3053, %v3052
    %v3108 = vpack.c.b16 %v3055, %v3054
    %v3109 = vpack.c.b16 %v3057, %v3056
    %v3110 = vpack.c.b16 %v3059, %v3058
    %v3111 = vpack.c.b16 %v3061, %v3060
    %v3112 = vpack.c.b16 %v3063, %v3062
    %v3113 = vpack.c.b16 %v3065, %v3064
    %v3114 = vpack.c.b16 %v3067, %v3066
    %v3115 = vpack.c.b16 %v3069, %v3068
    %v3116 = vpack.c.b16 %v3071, %v3070
    %v3117 = vpack.c.b16 %v3073, %v3072
    %v3162 = vsel %vm1708, %v2808, 0
    %v3165 = vand.u32 %v3117, %v1715
    %3167 = vmatprep.subr.bf16.mxu0 0
    %3168 = vmatpush1.bf16.msra.mxu0 %v3081
    %3169 = vmatprep.subr.bf16.mxu0 0
    %3170 = vmatpush1.bf16.msra.mxu0 %v3080
    %3171 = vmatprep.subr.bf16.mxu0 0
    %3172 = vmatpush1.bf16.msra.mxu0 %v3079
    %3173 = vmatprep.subr.bf16.mxu0 0
    %3174 = vmatpush1.bf16.msra.mxu0 %v3078
    %3175 = vmatprep.subr.bf16.mxu0 0
    %3176 = vmatpush1.bf16.msra.mxu0 %v3077
    %3177 = vmatprep.subr.bf16.mxu0 0
    %3178 = vmatpush1.bf16.msra.mxu0 %v3076
    %3179 = vmatprep.subr.bf16.mxu0 0
    %3180 = vmatpush1.bf16.msra.mxu0 %v3075
    %3181 = vmatprep.subr.bf16.mxu0 0
    %3182 = vmatpush1.bf16.msra.mxu0 %v3074
    %3183 = vmatprep.subr.bf16.mxu0 0
    %3184 = vmatpush2.bf16.msra.mxu0 %v3089
    %3185 = vmatprep.subr.bf16.mxu0 0
    %3186 = vmatpush2.bf16.msra.mxu0 %v3088
    %3187 = vmatprep.subr.bf16.mxu0 0
    %3188 = vmatpush2.bf16.msra.mxu0 %v3087
    %3189 = vmatprep.subr.bf16.mxu0 0
    %3190 = vmatpush2.bf16.msra.mxu0 %v3086
    %3191 = vmatprep.subr.bf16.mxu0 0
    %3192 = vmatpush2.bf16.msra.mxu0 %v3085
    %3193 = vmatprep.subr.bf16.mxu0 0
    %3194 = vmatpush2.bf16.msra.mxu0 %v3084
    %3195 = vmatprep.subr.bf16.mxu0 0
    %3196 = vmatpush2.bf16.msra.mxu0 %v3083
    %3197 = vmatprep.subr.bf16.mxu0 0
    %3198 = vmatpush2.bf16.msra.mxu0 %v3082
    %3199 = vmatprep.mubr.bf16.mxu0 %v2804
    %3200 = vmatmul.mubr.bf16.gmra.mxu0 %v2803
    %v3201 = vpop.f32.mrf.mxu0
    %v3202 = vadd.f32 0.0, %v3201
    %v3203 = vpop.f32.mrf.mxu0
    %v3204 = vpop.f32.mrf.mxu0
    %v3205 = vpop.f32.mrf.mxu0
    %3206 = vdwg.mxu0
    %3207 = vmatprep.subr.bf16.mxu0 0
    %3208 = vmatpush1.bf16.msra.mxu0 %v3097
    %3209 = vmatprep.subr.bf16.mxu0 0
    %3210 = vmatpush1.bf16.msra.mxu0 %v3096
    %3211 = vmatprep.subr.bf16.mxu0 0
    %3212 = vmatpush1.bf16.msra.mxu0 %v3095
    %3213 = vmatprep.subr.bf16.mxu0 0
    %3214 = vmatpush1.bf16.msra.mxu0 %v3094
    %3215 = vmatprep.subr.bf16.mxu0 0
    %3216 = vmatpush1.bf16.msra.mxu0 %v3093
    %3217 = vmatprep.subr.bf16.mxu0 0
    %3218 = vmatpush1.bf16.msra.mxu0 %v3092
    %3219 = vmatprep.subr.bf16.mxu0 0
    %3220 = vmatpush1.bf16.msra.mxu0 %v3091
    %3221 = vmatprep.subr.bf16.mxu0 0
    %3222 = vmatpush1.bf16.msra.mxu0 %v3090
    %3223 = vmatprep.subr.bf16.mxu0 0
    %3224 = vmatpush2.bf16.msra.mxu0 %v3105
    %3225 = vmatprep.subr.bf16.mxu0 0
    %3226 = vmatpush2.bf16.msra.mxu0 %v3104
    %3227 = vmatprep.subr.bf16.mxu0 0
    %3228 = vmatpush2.bf16.msra.mxu0 %v3103
    %3229 = vmatprep.subr.bf16.mxu0 0
    %3230 = vmatpush2.bf16.msra.mxu0 %v3102
    %3231 = vmatprep.subr.bf16.mxu0 0
    %3232 = vmatpush2.bf16.msra.mxu0 %v3101
    %3233 = vmatprep.subr.bf16.mxu0 0
    %3234 = vmatpush2.bf16.msra.mxu0 %v3100
    %3235 = vmatprep.subr.bf16.mxu0 0
    %3236 = vmatpush2.bf16.msra.mxu0 %v3099
    %3237 = vmatprep.subr.bf16.mxu0 0
    %3238 = vmatpush2.bf16.msra.mxu0 %v3098
    %3239 = vmatprep.mubr.bf16.mxu0 %v2806
    %3240 = vmatmul.mubr.bf16.gmra.mxu0 %v2805
    %v3241 = vpop.f32.mrf.mxu0
    %v3242 = vadd.f32 %v3202, %v3241
    %v3243 = vpop.f32.mrf.mxu0
    %v3244 = vpop.f32.mrf.mxu0
    %v3245 = vpop.f32.mrf.mxu0
    %3246 = vdwg.mxu0
    %3247 = vmatprep.subr.bf16.mxu0 0
    %3248 = vmatpush1.bf16.msra.mxu0 %v3113
    %3249 = vmatprep.subr.bf16.mxu0 0
    %3250 = vmatpush1.bf16.msra.mxu0 %v3112
    %3251 = vmatprep.subr.bf16.mxu0 0
    %3252 = vmatpush1.bf16.msra.mxu0 %v3111
    %3253 = vmatprep.subr.bf16.mxu0 0
    %3254 = vmatpush1.bf16.msra.mxu0 %v3110
    %3255 = vmatprep.subr.bf16.mxu0 0
    %3256 = vmatpush1.bf16.msra.mxu0 %v3109
    %3257 = vmatprep.subr.bf16.mxu0 0
    %3258 = vmatpush1.bf16.msra.mxu0 %v3108
    %3259 = vmatprep.subr.bf16.mxu0 0
    %3260 = vmatpush1.bf16.msra.mxu0 %v3107
    %3261 = vmatprep.subr.bf16.mxu0 0
    %3262 = vmatpush1.bf16.msra.mxu0 %v3106
    %3263 = vmatprep.subr.bf16.mxu0 0
    %3264 = vmatpush2.bf16.msra.mxu0 0
    %3265 = vmatprep.subr.bf16.mxu0 0
    %3266 = vmatpush2.bf16.msra.mxu0 0
    %3267 = vmatprep.subr.bf16.mxu0 0
    %3268 = vmatpush2.bf16.msra.mxu0 0
    %3269 = vmatprep.subr.bf16.mxu0 0
    %3270 = vmatpush2.bf16.msra.mxu0 0
    %3271 = vmatprep.subr.bf16.mxu0 0
    %3272 = vmatpush2.bf16.msra.mxu0 %v3165
    %3273 = vmatprep.subr.bf16.mxu0 0
    %3274 = vmatpush2.bf16.msra.mxu0 %v3116
    %3275 = vmatprep.subr.bf16.mxu0 0
    %3276 = vmatpush2.bf16.msra.mxu0 %v3115
    %3277 = vmatprep.subr.bf16.mxu0 0
    %3278 = vmatpush2.bf16.msra.mxu0 %v3114
    %3279 = vmatprep.mubr.bf16.mxu0 %v3162
    %3280 = vmatmul.mubr.bf16.gmra.mxu0 %v2807
    %v3281 = vpop.f32.mrf.mxu0
    %v3282 = vadd.f32 %v3242, %v3281
    %v3283 = vpop.f32.mrf.mxu0
    %v3284 = vpop.f32.mrf.mxu0
    %v3285 = vpop.f32.mrf.mxu0
    %3286 = vdwg.mxu0
    %v3287 = vadd.f32 %v2223, %v3282
    %s3288 = sld [smem:[#allocation2 + $0x1b]]
    %p3290 = scmp.ne.f32.partialorder %s3288, %s3288
    %s3291 = sshrl.u32 %s3288, 16
    %s3292 = sand.u32 %s3291, 1
    %s3293 = sadd.s32 32767, %s3292
    %s3294 = sadd.s32 %s3288, %s3293
    %s3295 = sand.u32 %s3294, 4294901760
    %s3296 = scalar_select %p3290, 2143289344, %s3295
    %s3298 = sshrl.u32 %s3296, 16
    %s3299 = sld [smem:[#allocation2 + $0x1c]]
    %p3301 = scmp.ne.f32.partialorder %s3299, %s3299
    %s3302 = sshrl.u32 %s3299, 16
    %s3303 = sand.u32 %s3302, 1
    %s3304 = sadd.s32 32767, %s3303
    %s3305 = sadd.s32 %s3299, %s3304
    %s3306 = sand.u32 %s3305, 4294901760
    %s3307 = scalar_select %p3301, 2143289344, %s3306
    %s3309 = sshrl.u32 %s3307, 16
    %s3310 = sld [smem:[#allocation2 + $0x1d]]
    %p3312 = scmp.ne.f32.partialorder %s3310, %s3310
    %s3313 = sshrl.u32 %s3310, 16
    %s3314 = sand.u32 %s3313, 1
    %s3315 = sadd.s32 32767, %s3314
    %s3316 = sadd.s32 %s3310, %s3315
    %s3317 = sand.u32 %s3316, 4294901760
    %s3318 = scalar_select %p3312, 2143289344, %s3317
    %s3320 = sshrl.u32 %s3318, 16
    %s3321 = sld [smem:[#allocation2 + $0x1e]]
    %p3323 = scmp.ne.f32.partialorder %s3321, %s3321
    %s3324 = sshrl.u32 %s3321, 16
    %s3325 = sand.u32 %s3324, 1
    %s3326 = sadd.s32 32767, %s3325
    %s3327 = sadd.s32 %s3321, %s3326
    %s3328 = sand.u32 %s3327, 4294901760
    %s3329 = scalar_select %p3323, 2143289344, %s3328
    %s3331 = sshrl.u32 %s3329, 16
    %s3332 = sld [smem:[#allocation2 + $0x1f]]
    %p3334 = scmp.ne.f32.partialorder %s3332, %s3332
    %s3335 = sshrl.u32 %s3332, 16
    %s3336 = sand.u32 %s3335, 1
    %s3337 = sadd.s32 32767, %s3336
    %s3338 = sadd.s32 %s3332, %s3337
    %s3339 = sand.u32 %s3338, 4294901760
    %s3340 = scalar_select %p3334, 2143289344, %s3339
    %s3342 = sshrl.u32 %s3340, 16
    %s3343 = sld [smem:[#allocation2 + $0x20]]
    %p3345 = scmp.ne.f32.partialorder %s3343, %s3343
    %s3346 = sshrl.u32 %s3343, 16
    %s3347 = sand.u32 %s3346, 1
    %s3348 = sadd.s32 32767, %s3347
    %s3349 = sadd.s32 %s3343, %s3348
    %s3350 = sand.u32 %s3349, 4294901760
    %s3351 = scalar_select %p3345, 2143289344, %s3350
    %s3353 = sshrl.u32 %s3351, 16
    %s3354 = sld [smem:[#allocation2 + $0x21]]
    %p3356 = scmp.ne.f32.partialorder %s3354, %s3354
    %s3357 = sshrl.u32 %s3354, 16
    %s3358 = sand.u32 %s3357, 1
    %s3359 = sadd.s32 32767, %s3358
    %s3360 = sadd.s32 %s3354, %s3359
    %s3361 = sand.u32 %s3360, 4294901760
    %s3362 = scalar_select %p3356, 2143289344, %s3361
    %s3364 = sshrl.u32 %s3362, 16
    %s3365 = sld [smem:[#allocation2 + $0x22]]
    %p3367 = scmp.ne.f32.partialorder %s3365, %s3365
    %s3368 = sshrl.u32 %s3365, 16
    %s3369 = sand.u32 %s3368, 1
    %s3370 = sadd.s32 32767, %s3369
    %s3371 = sadd.s32 %s3365, %s3370
    %s3372 = sand.u32 %s3371, 4294901760
    %s3373 = scalar_select %p3367, 2143289344, %s3372
    %s3375 = sshrl.u32 %s3373, 16
    %s3376 = sld [smem:[#allocation2 + $0x23]]
    %p3378 = scmp.ne.f32.partialorder %s3376, %s3376
    %s3379 = sshrl.u32 %s3376, 16
    %s3380 = sand.u32 %s3379, 1
    %s3381 = sadd.s32 32767, %s3380
    %s3382 = sadd.s32 %s3376, %s3381
    %s3383 = sand.u32 %s3382, 4294901760
    %s3384 = scalar_select %p3378, 2143289344, %s3383
    %s3386 = sshrl.u32 %s3384, 16
    %s3387 = sshll.u32 %s3298, 16
    %s3388 = sor.u32 %s3298, %s3387
    %v3389 = vstv %s3388
    %v3391 = vmul.bf16 %v91, %v3389
    %v3392 = vmul.bf16 %v92, %v3389
    %v3393 = vmul.bf16 %v93, %v3389
    %v3394 = vmul.bf16 %v94, %v3389
    %v3395 = vmul.bf16 %v95, %v3389
    %v3396 = vmul.bf16 %v96, %v3389
    %s3397 = sshll.u32 %s3309, 16
    %s3398 = sor.u32 %s3309, %s3397
    %v3399 = vstv %s3398
    %v3401 = vmul.bf16 %v91, %v3399
    %v3402 = vmul.bf16 %v92, %v3399
    %v3403 = vmul.bf16 %v93, %v3399
    %v3404 = vmul.bf16 %v94, %v3399
    %v3405 = vmul.bf16 %v95, %v3399
    %v3406 = vmul.bf16 %v96, %v3399
    %3413 = vrot.lane.b32.xlu0 %v3401, 127
    %v3414 = vpop.permute.xlu0 %3413
    %3415 = vrot.lane.b32.xlu0 %v3402, 127
    %v3416 = vpop.permute.xlu0 %3415
    %3417 = vrot.lane.b32.xlu0 %v3403, 127
    %v3418 = vpop.permute.xlu0 %3417
    %3419 = vrot.lane.b32.xlu0 %v3404, 127
    %v3420 = vpop.permute.xlu0 %3419
    %3421 = vrot.lane.b32.xlu0 %v3405, 127
    %v3422 = vpop.permute.xlu0 %3421
    %3423 = vrot.lane.b32.xlu0 %v3406, 127
    %v3424 = vpop.permute.xlu0 %3423
    %v3425 = vsel %vm235, %v3414, %v3416
    %v3426 = vsel %vm235, %v3416, %v3418
    %v3427 = vsel %vm235, %v3418, %v3420
    %v3428 = vsel %vm235, %v3420, %v3422
    %v3429 = vsel %vm235, %v3422, %v3424
    %v3436 = vadd.bf16 %v3391, %v3425
    %v3437 = vadd.bf16 %v3392, %v3426
    %v3438 = vadd.bf16 %v3393, %v3427
    %v3439 = vadd.bf16 %v3394, %v3428
    %v3440 = vadd.bf16 %v3395, %v3429
    %v3441 = vadd.bf16 %v3396, %v3424
    %s3442 = sshll.u32 %s3320, 16
    %s3443 = sor.u32 %s3320, %s3442
    %v3444 = vstv %s3443
    %v3446 = vmul.bf16 %v91, %v3444
    %v3447 = vmul.bf16 %v92, %v3444
    %v3448 = vmul.bf16 %v93, %v3444
    %v3449 = vmul.bf16 %v94, %v3444
    %v3450 = vmul.bf16 %v95, %v3444
    %v3451 = vmul.bf16 %v96, %v3444
    %3458 = vrot.lane.b32.xlu0 %v3446, 126
    %v3459 = vpop.permute.xlu0 %3458
    %3460 = vrot.lane.b32.xlu0 %v3447, 126
    %v3461 = vpop.permute.xlu0 %3460
    %3462 = vrot.lane.b32.xlu0 %v3448, 126
    %v3463 = vpop.permute.xlu0 %3462
    %3464 = vrot.lane.b32.xlu0 %v3449, 126
    %v3465 = vpop.permute.xlu0 %3464
    %3466 = vrot.lane.b32.xlu0 %v3450, 126
    %v3467 = vpop.permute.xlu0 %3466
    %3468 = vrot.lane.b32.xlu0 %v3451, 126
    %v3469 = vpop.permute.xlu0 %3468
    %v3470 = vsel %vm281, %v3459, %v3461
    %v3471 = vsel %vm281, %v3461, %v3463
    %v3472 = vsel %vm281, %v3463, %v3465
    %v3473 = vsel %vm281, %v3465, %v3467
    %v3474 = vsel %vm281, %v3467, %v3469
    %v3481 = vadd.bf16 %v3436, %v3470
    %v3482 = vadd.bf16 %v3437, %v3471
    %v3483 = vadd.bf16 %v3438, %v3472
    %v3484 = vadd.bf16 %v3439, %v3473
    %v3485 = vadd.bf16 %v3440, %v3474
    %v3486 = vadd.bf16 %v3441, %v3469
    %s3487 = sshll.u32 %s3331, 16
    %s3488 = sor.u32 %s3331, %s3487
    %v3489 = vstv %s3488
    %v3491 = vmul.bf16 %v91, %v3489
    %v3492 = vmul.bf16 %v92, %v3489
    %v3493 = vmul.bf16 %v93, %v3489
    %v3494 = vmul.bf16 %v94, %v3489
    %v3495 = vmul.bf16 %v95, %v3489
    %v3496 = vmul.bf16 %v96, %v3489
    %3503 = vrot.lane.b32.xlu0 %v3491, 100
    %v3504 = vpop.permute.xlu0 %3503
    %3505 = vrot.lane.b32.xlu0 %v3492, 100
    %v3506 = vpop.permute.xlu0 %3505
    %3507 = vrot.lane.b32.xlu0 %v3493, 100
    %v3508 = vpop.permute.xlu0 %3507
    %3509 = vrot.lane.b32.xlu0 %v3494, 100
    %v3510 = vpop.permute.xlu0 %3509
    %3511 = vrot.lane.b32.xlu0 %v3495, 100
    %v3512 = vpop.permute.xlu0 %3511
    %3513 = vrot.lane.b32.xlu0 %v3496, 100
    %v3514 = vpop.permute.xlu0 %3513
    %v3515 = vsel %vm327, %v3504, %v3506
    %v3516 = vsel %vm327, %v3506, %v3508
    %v3517 = vsel %vm327, %v3508, %v3510
    %v3518 = vsel %vm327, %v3510, %v3512
    %v3519 = vsel %vm327, %v3512, %v3514
    %v3526 = vadd.bf16 %v3481, %v3515
    %v3527 = vadd.bf16 %v3482, %v3516
    %v3528 = vadd.bf16 %v3483, %v3517
    %v3529 = vadd.bf16 %v3484, %v3518
    %v3530 = vadd.bf16 %v3485, %v3519
    %v3531 = vadd.bf16 %v3486, %v3514
    %s3532 = sshll.u32 %s3342, 16
    %s3533 = sor.u32 %s3342, %s3532
    %v3534 = vstv %s3533
    %v3536 = vmul.bf16 %v91, %v3534
    %v3537 = vmul.bf16 %v92, %v3534
    %v3538 = vmul.bf16 %v93, %v3534
    %v3539 = vmul.bf16 %v94, %v3534
    %v3540 = vmul.bf16 %v95, %v3534
    %v3541 = vmul.bf16 %v96, %v3534
    %3548 = vrot.lane.b32.xlu0 %v3536, 99
    %v3549 = vpop.permute.xlu0 %3548
    %3550 = vrot.lane.b32.xlu0 %v3537, 99
    %v3551 = vpop.permute.xlu0 %3550
    %3552 = vrot.lane.b32.xlu0 %v3538, 99
    %v3553 = vpop.permute.xlu0 %3552
    %3554 = vrot.lane.b32.xlu0 %v3539, 99
    %v3555 = vpop.permute.xlu0 %3554
    %3556 = vrot.lane.b32.xlu0 %v3540, 99
    %v3557 = vpop.permute.xlu0 %3556
    %3558 = vrot.lane.b32.xlu0 %v3541, 99
    %v3559 = vpop.permute.xlu0 %3558
    %v3560 = vsel %vm373, %v3549, %v3551
    %v3561 = vsel %vm373, %v3551, %v3553
    %v3562 = vsel %vm373, %v3553, %v3555
    %v3563 = vsel %vm373, %v3555, %v3557
    %v3564 = vsel %vm373, %v3557, %v3559
    %v3571 = vadd.bf16 %v3526, %v3560
    %v3572 = vadd.bf16 %v3527, %v3561
    %v3573 = vadd.bf16 %v3528, %v3562
    %v3574 = vadd.bf16 %v3529, %v3563
    %v3575 = vadd.bf16 %v3530, %v3564
    %v3576 = vadd.bf16 %v3531, %v3559
    %s3577 = sshll.u32 %s3353, 16
    %s3578 = sor.u32 %s3353, %s3577
    %v3579 = vstv %s3578
    %v3581 = vmul.bf16 %v91, %v3579
    %v3582 = vmul.bf16 %v92, %v3579
    %v3583 = vmul.bf16 %v93, %v3579
    %v3584 = vmul.bf16 %v94, %v3579
    %v3585 = vmul.bf16 %v95, %v3579
    %v3586 = vmul.bf16 %v96, %v3579
    %3593 = vrot.lane.b32.xlu0 %v3581, 98
    %v3594 = vpop.permute.xlu0 %3593
    %3595 = vrot.lane.b32.xlu0 %v3582, 98
    %v3596 = vpop.permute.xlu0 %3595
    %3597 = vrot.lane.b32.xlu0 %v3583, 98
    %v3598 = vpop.permute.xlu0 %3597
    %3599 = vrot.lane.b32.xlu0 %v3584, 98
    %v3600 = vpop.permute.xlu0 %3599
    %3601 = vrot.lane.b32.xlu0 %v3585, 98
    %v3602 = vpop.permute.xlu0 %3601
    %3603 = vrot.lane.b32.xlu0 %v3586, 98
    %v3604 = vpop.permute.xlu0 %3603
    %v3605 = vsel %vm419, %v3594, %v3596
    %v3606 = vsel %vm419, %v3596, %v3598
    %v3607 = vsel %vm419, %v3598, %v3600
    %v3608 = vsel %vm419, %v3600, %v3602
    %v3609 = vsel %vm419, %v3602, %v3604
    %v3616 = vadd.bf16 %v3571, %v3605
    %v3617 = vadd.bf16 %v3572, %v3606
    %v3618 = vadd.bf16 %v3573, %v3607
    %v3619 = vadd.bf16 %v3574, %v3608
    %v3620 = vadd.bf16 %v3575, %v3609
    %v3621 = vadd.bf16 %v3576, %v3604
    %s3622 = sshll.u32 %s3364, 16
    %s3623 = sor.u32 %s3364, %s3622
    %v3624 = vstv %s3623
    %v3626 = vmul.bf16 %v91, %v3624
    %v3627 = vmul.bf16 %v92, %v3624
    %v3628 = vmul.bf16 %v93, %v3624
    %v3629 = vmul.bf16 %v94, %v3624
    %v3630 = vmul.bf16 %v95, %v3624
    %v3631 = vmul.bf16 %v96, %v3624
    %v3632 = vmul.bf16 %v97, %v3624
    %3640 = vrot.lane.b32.xlu0 %v3626, 72
    %v3641 = vpop.permute.xlu0 %3640
    %3642 = vrot.lane.b32.xlu0 %v3627, 72
    %v3643 = vpop.permute.xlu0 %3642
    %3644 = vrot.lane.b32.xlu0 %v3628, 72
    %v3645 = vpop.permute.xlu0 %3644
    %3646 = vrot.lane.b32.xlu0 %v3629, 72
    %v3647 = vpop.permute.xlu0 %3646
    %3648 = vrot.lane.b32.xlu0 %v3630, 72
    %v3649 = vpop.permute.xlu0 %3648
    %3650 = vrot.lane.b32.xlu0 %v3631, 72
    %v3651 = vpop.permute.xlu0 %3650
    %3652 = vrot.lane.b32.xlu0 %v3632, 72
    %v3653 = vpop.permute.xlu0 %3652
    %v3654 = vsel %vm469, %v3641, %v3643
    %v3655 = vsel %vm469, %v3643, %v3645
    %v3656 = vsel %vm469, %v3645, %v3647
    %v3657 = vsel %vm469, %v3647, %v3649
    %v3658 = vsel %vm469, %v3649, %v3651
    %v3659 = vsel %vm469, %v3651, %v3653
    %v3666 = vadd.bf16 %v3616, %v3654
    %v3667 = vadd.bf16 %v3617, %v3655
    %v3668 = vadd.bf16 %v3618, %v3656
    %v3669 = vadd.bf16 %v3619, %v3657
    %v3670 = vadd.bf16 %v3620, %v3658
    %v3671 = vadd.bf16 %v3621, %v3659
    %s3672 = sshll.u32 %s3375, 16
    %s3673 = sor.u32 %s3375, %s3672
    %v3674 = vstv %s3673
    %v3676 = vmul.bf16 %v91, %v3674
    %v3677 = vmul.bf16 %v92, %v3674
    %v3678 = vmul.bf16 %v93, %v3674
    %v3679 = vmul.bf16 %v94, %v3674
    %v3680 = vmul.bf16 %v95, %v3674
    %v3681 = vmul.bf16 %v96, %v3674
    %v3682 = vmul.bf16 %v97, %v3674
    %3690 = vrot.lane.b32.xlu0 %v3676, 71
    %v3691 = vpop.permute.xlu0 %3690
    %3692 = vrot.lane.b32.xlu0 %v3677, 71
    %v3693 = vpop.permute.xlu0 %3692
    %3694 = vrot.lane.b32.xlu0 %v3678, 71
    %v3695 = vpop.permute.xlu0 %3694
    %3696 = vrot.lane.b32.xlu0 %v3679, 71
    %v3697 = vpop.permute.xlu0 %3696
    %3698 = vrot.lane.b32.xlu0 %v3680, 71
    %v3699 = vpop.permute.xlu0 %3698
    %3700 = vrot.lane.b32.xlu0 %v3681, 71
    %v3701 = vpop.permute.xlu0 %3700
    %3702 = vrot.lane.b32.xlu0 %v3682, 71
    %v3703 = vpop.permute.xlu0 %3702
    %v3704 = vsel %vm520, %v3691, %v3693
    %v3705 = vsel %vm520, %v3693, %v3695
    %v3706 = vsel %vm520, %v3695, %v3697
    %v3707 = vsel %vm520, %v3697, %v3699
    %v3708 = vsel %vm520, %v3699, %v3701
    %v3709 = vsel %vm520, %v3701, %v3703
    %v3716 = vadd.bf16 %v3666, %v3704
    %v3717 = vadd.bf16 %v3667, %v3705
    %v3718 = vadd.bf16 %v3668, %v3706
    %v3719 = vadd.bf16 %v3669, %v3707
    %v3720 = vadd.bf16 %v3670, %v3708
    %v3721 = vadd.bf16 %v3671, %v3709
    %s3722 = sshll.u32 %s3386, 16
    %s3723 = sor.u32 %s3386, %s3722
    %v3724 = vstv %s3723
    %v3726 = vmul.bf16 %v91, %v3724
    %v3727 = vmul.bf16 %v92, %v3724
    %v3728 = vmul.bf16 %v93, %v3724
    %v3729 = vmul.bf16 %v94, %v3724
    %v3730 = vmul.bf16 %v95, %v3724
    %v3731 = vmul.bf16 %v96, %v3724
    %v3732 = vmul.bf16 %v97, %v3724
    %3740 = vrot.lane.b32.xlu0 %v3726, 70
    %v3741 = vpop.permute.xlu0 %3740
    %3742 = vrot.lane.b32.xlu0 %v3727, 70
    %v3743 = vpop.permute.xlu0 %3742
    %3744 = vrot.lane.b32.xlu0 %v3728, 70
    %v3745 = vpop.permute.xlu0 %3744
    %3746 = vrot.lane.b32.xlu0 %v3729, 70
    %v3747 = vpop.permute.xlu0 %3746
    %3748 = vrot.lane.b32.xlu0 %v3730, 70
    %v3749 = vpop.permute.xlu0 %3748
    %3750 = vrot.lane.b32.xlu0 %v3731, 70
    %v3751 = vpop.permute.xlu0 %3750
    %3752 = vrot.lane.b32.xlu0 %v3732, 70
    %v3753 = vpop.permute.xlu0 %3752
    %v3754 = vsel %vm571, %v3741, %v3743
    %v3755 = vsel %vm571, %v3743, %v3745
    %v3756 = vsel %vm571, %v3745, %v3747
    %v3757 = vsel %vm571, %v3747, %v3749
    %v3758 = vsel %vm571, %v3749, %v3751
    %v3759 = vsel %vm571, %v3751, %v3753
    %v3766 = vadd.bf16 %v3716, %v3754
    %v3767 = vadd.bf16 %v3717, %v3755
    %v3768 = vadd.bf16 %v3718, %v3756
    %v3769 = vadd.bf16 %v3719, %v3757
    %v3770 = vadd.bf16 %v3720, %v3758
    %v3771 = vadd.bf16 %v3721, %v3759
    %3778 = vrot.lane.b32.xlu0 %v3766, 127
    %v3779 = vpop.permute.xlu0 %3778
    %3780 = vrot.lane.b32.xlu0 %v3767, 127
    %v3781 = vpop.permute.xlu0 %3780
    %3782 = vrot.lane.b32.xlu0 %v3768, 127
    %v3783 = vpop.permute.xlu0 %3782
    %3784 = vrot.lane.b32.xlu0 %v3769, 127
    %v3785 = vpop.permute.xlu0 %3784
    %3786 = vrot.lane.b32.xlu0 %v3770, 127
    %v3787 = vpop.permute.xlu0 %3786
    %3788 = vrot.lane.b32.xlu0 %v3771, 127
    %v3789 = vpop.permute.xlu0 %3788
    %v3790 = vsel %vm235, %v3779, %v3781
    %v3791 = vsel %vm235, %v3781, %v3783
    %v3792 = vsel %vm235, %v3783, %v3785
    %v3793 = vsel %vm235, %v3785, %v3787
    %v3794 = vsel %vm235, %v3787, %v3789
    %v3801 = vmax.bf16 %v3766, %v3790
    %v3802 = vmax.bf16 %v3767, %v3791
    %v3803 = vmax.bf16 %v3768, %v3792
    %v3804 = vmax.bf16 %v3769, %v3793
    %v3805 = vmax.bf16 %v3770, %v3794
    %v3806 = vmax.bf16 %v3771, %v3789
    %3813 = vrot.lane.b32.xlu0 %v3801, 100
    %v3814 = vpop.permute.xlu0 %3813
    %3815 = vrot.lane.b32.xlu0 %v3802, 100
    %v3816 = vpop.permute.xlu0 %3815
    %3817 = vrot.lane.b32.xlu0 %v3803, 100
    %v3818 = vpop.permute.xlu0 %3817
    %3819 = vrot.lane.b32.xlu0 %v3804, 100
    %v3820 = vpop.permute.xlu0 %3819
    %3821 = vrot.lane.b32.xlu0 %v3805, 100
    %v3822 = vpop.permute.xlu0 %3821
    %3823 = vrot.lane.b32.xlu0 %v3806, 100
    %v3824 = vpop.permute.xlu0 %3823
    %v3825 = vsel %vm327, %v3814, %v3816
    %v3826 = vsel %vm327, %v3816, %v3818
    %v3827 = vsel %vm327, %v3818, %v3820
    %v3828 = vsel %vm327, %v3820, %v3822
    %v3829 = vsel %vm327, %v3822, %v3824
    %v3836 = vmax.bf16 %v3801, %v3825
    %v3837 = vmax.bf16 %v3802, %v3826
    %v3838 = vmax.bf16 %v3803, %v3827
    %v3839 = vmax.bf16 %v3804, %v3828
    %v3840 = vmax.bf16 %v3805, %v3829
    %v3841 = vmax.bf16 %v3806, %v3824
    %s3842 = sld [smem:[#allocation5 + $0x3]]
    %p3844 = scmp.ne.f32.partialorder %s3842, %s3842
    %s3845 = sshrl.u32 %s3842, 16
    %s3846 = sand.u32 %s3845, 1
    %s3847 = sadd.s32 32767, %s3846
    %s3848 = sadd.s32 %s3842, %s3847
    %s3849 = sand.u32 %s3848, 4294901760
    %s3850 = scalar_select %p3844, 2143289344, %s3849
    %s3852 = sshrl.u32 %s3850, 16
    %s3853 = sshll.u32 %s3852, 16
    %s3854 = sor.u32 %s3852, %s3853
    %v3855 = vstv %s3854
    %v3857 = vadd.bf16 %v3836, %v3855
    %v3858 = vadd.bf16 %v3837, %v3855
    %v3859 = vadd.bf16 %v3838, %v3855
    %v3860 = vadd.bf16 %v3839, %v3855
    %v3861 = vadd.bf16 %v3840, %v3855
    %v3862 = vadd.bf16 %v3841, %v3855
    %v3863 = vmax.bf16 %v3857, 0
    %v3864 = vmax.bf16 %v3858, 0
    %v3865 = vmax.bf16 %v3859, 0
    %v3866 = vmax.bf16 %v3860, 0
    %v3867 = vmax.bf16 %v3861, 0
    %v3868 = vmax.bf16 %v3862, 0
    %s3869 = scalar_lea.vmem %s3, 1056
    %v3870 = vld [vmem:[%s3869] sm:$0xf]
    %v3871 = vld [vmem:[%s3869 + $0x4] sm:$0xf]
    %v3872 = vld [vmem:[%s3869 + $0x8] sm:$0xf]
    %v3873 = vld [vmem:[%s3869 + $0xc] sm:$0xf]
    %v3874 = vld [vmem:[%s3869 + $0x10] sm:$0xf]
    %v3875 = vld [vmem:[%s3869 + $0x14] sm:$0xf]
    %v3876 = vld [vmem:[%s3869 + $0x18] sm:$0xf]
    %v3877 = vld [vmem:[%s3869 + $0x1c] sm:$0xf]
    %v3878 = vld [vmem:[%s3869 + $0x20] sm:$0xf]
    %v3879 = vld [vmem:[%s3869 + $0x24] sm:$0xf]
    %v3880 = vld [vmem:[%s3869 + $0x28] sm:$0xf]
    %v3881 = vld [vmem:[%s3869 + $0x2c] sm:$0xf]
    %v3882 = vld [vmem:[%s3869 + $0x30] sm:$0xf]
    %v3883 = vld [vmem:[%s3869 + $0x34] sm:$0xf]
    %v3884 = vld [vmem:[%s3869 + $0x38] sm:$0xf]
    %v3885 = vld [vmem:[%s3869 + $0x3c] sm:$0xf]
    %v3886 = vld [vmem:[%s3869 + $0x40] sm:$0xf]
    %v3887 = vld [vmem:[%s3869 + $0x44] sm:$0xf]
    %v3888 = vld [vmem:[%s3869 + $0x48] sm:$0xf]
    %v3889 = vld [vmem:[%s3869 + $0x4c] sm:$0xf]
    %v3890 = vld [vmem:[%s3869 + $0x50] sm:$0xf]
    %v3891 = vld [vmem:[%s3869 + $0x54] sm:$0xf]
    %v3892 = vld [vmem:[%s3869 + $0x58] sm:$0xf]
    %v3893 = vld [vmem:[%s3869 + $0x5c] sm:$0xf]
    %v3894 = vld [vmem:[%s3869 + $0x60] sm:$0xf]
    %v3895 = vld [vmem:[%s3869 + $0x64] sm:$0xf]
    %v3896 = vld [vmem:[%s3869 + $0x68] sm:$0xf]
    %v3897 = vld [vmem:[%s3869 + $0x6c] sm:$0xf]
    %v3898 = vld [vmem:[%s3869 + $0x70] sm:$0xf]
    %v3899 = vld [vmem:[%s3869 + $0x74] sm:$0xf]
    %v3900 = vld [vmem:[%s3869 + $0x78] sm:$0xf]
    %v3901 = vld [vmem:[%s3869 + $0x7c] sm:$0xf]
    %v3902 = vld [vmem:[%s3869 + $0x80] sm:$0xf]
    %v3903 = vld [vmem:[%s3869 + $0x84] sm:$0xf]
    %v3904 = vld [vmem:[%s3869 + $0x88] sm:$0xf]
    %v3905 = vld [vmem:[%s3869 + $0x8c] sm:$0xf]
    %v3906 = vld [vmem:[%s3869 + $0x90] sm:$0xf]
    %v3907 = vld [vmem:[%s3869 + $0x94] sm:$0xf]
    %v3908 = vld [vmem:[%s3869 + $0x98] sm:$0xf]
    %v3909 = vld [vmem:[%s3869 + $0x9c] sm:$0xf]
    %v3910 = vld [vmem:[%s3869 + $0xa0] sm:$0xf]
    %v3911 = vld [vmem:[%s3869 + $0xa4] sm:$0xf]
    %v3912 = vld [vmem:[%s3869 + $0xa8] sm:$0xf]
    %v3913 = vld [vmem:[%s3869 + $0xac] sm:$0xf]
    %v3914 = vld [vmem:[%s3869 + $0xb0] sm:$0xf]
    %v3915 = vld [vmem:[%s3869 + $0xb4] sm:$0xf]
    %v3916 = vld [vmem:[%s3869 + $0xb8] sm:$0xf]
    %v3917 = vld [vmem:[%s3869 + $0xbc] sm:$0xf]
    %v3918 = vld [vmem:[%s3869 + $0xc0] sm:$0xf]
    %v3919 = vld [vmem:[%s3869 + $0xc4] sm:$0xf]
    %v3920 = vld [vmem:[%s3869 + $0xc8] sm:$0xf]
    %v3921 = vld [vmem:[%s3869 + $0xcc] sm:$0xf]
    %v3922 = vld [vmem:[%s3869 + $0xd0] sm:$0xf]
    %v3923 = vld [vmem:[%s3869 + $0xd4] sm:$0xf]
    %v3924 = vld [vmem:[%s3869 + $0xd8] sm:$0xf]
    %v3925 = vld [vmem:[%s3869 + $0xdc] sm:$0xf]
    %v3926 = vld [vmem:[%s3869 + $0xe0] sm:$0xf]
    %v3927 = vld [vmem:[%s3869 + $0xe4] sm:$0xf]
    %v3928 = vld [vmem:[%s3869 + $0xe8] sm:$0xf]
    %v3929 = vld [vmem:[%s3869 + $0xec] sm:$0xf]
    %v3930 = vld [vmem:[%s3869 + $0xf0] sm:$0xf]
    %v3931 = vld [vmem:[%s3869 + $0xf4] sm:$0xf]
    %v3932 = vld [vmem:[%s3869 + $0xf8] sm:$0xf]
    %v3933 = vld [vmem:[%s3869 + $0xfc] sm:$0xf]
    %v3934 = vld [vmem:[%s3869 + $0x100] sm:$0xf]
    %v3935 = vld [vmem:[%s3869 + $0x104] sm:$0xf]
    %v3936 = vld [vmem:[%s3869 + $0x108] sm:$0xf]
    %v3937 = vld [vmem:[%s3869 + $0x10c] sm:$0xf]
    %v3938 = vld [vmem:[%s3869 + $0x110] sm:$0xf]
    %v3939 = vld [vmem:[%s3869 + $0x114] sm:$0xf]
    %v3940 = vld [vmem:[%s3869 + $0x118] sm:$0xf]
    %v3941 = vld [vmem:[%s3869 + $0x11c] sm:$0xf]
    %v3942 = vld [vmem:[%s3869 + $0x120] sm:$0xf]
    %v3943 = vld [vmem:[%s3869 + $0x124] sm:$0xf]
    %v3944 = vld [vmem:[%s3869 + $0x128] sm:$0xf]
    %v3945 = vld [vmem:[%s3869 + $0x12c] sm:$0xf]
    %v3946 = vld [vmem:[%s3869 + $0x130] sm:$0xf]
    %v3947 = vld [vmem:[%s3869 + $0x134] sm:$0xf]
    %v3948 = vld [vmem:[%s3869 + $0x138] sm:$0xf]
    %v3949 = vld [vmem:[%s3869 + $0x13c] sm:$0xf]
    %v3950 = vld [vmem:[%s3869 + $0x140] sm:$0xf]
    %v3951 = vld [vmem:[%s3869 + $0x144] sm:$0xf]
    %v3952 = vld [vmem:[%s3869 + $0x148] sm:$0xf]
    %v3953 = vld [vmem:[%s3869 + $0x14c] sm:$0xf]
    %v3954 = vld [vmem:[%s3869 + $0x150] sm:$0xf]
    %v3955 = vld [vmem:[%s3869 + $0x154] sm:$0xf]
    %v3956 = vld [vmem:[%s3869 + $0x158] sm:$0xf]
    %v3957 = vld [vmem:[%s3869 + $0x15c] sm:$0x1]
    %v4046 = vunpack.c.l.b16 %v3870
    %v4047 = vunpack.c.l.b16 %v3871
    %v4048 = vunpack.c.l.b16 %v3872
    %v4049 = vunpack.c.l.b16 %v3873
    %v4050 = vunpack.c.l.b16 %v3874
    %v4051 = vunpack.c.l.b16 %v3875
    %v4052 = vunpack.c.l.b16 %v3876
    %v4053 = vunpack.c.l.b16 %v3877
    %v4054 = vunpack.c.l.b16 %v3878
    %v4055 = vunpack.c.l.b16 %v3879
    %v4056 = vunpack.c.l.b16 %v3880
    %v4057 = vunpack.c.l.b16 %v3881
    %v4058 = vunpack.c.l.b16 %v3882
    %v4059 = vunpack.c.l.b16 %v3883
    %v4060 = vunpack.c.l.b16 %v3884
    %v4061 = vunpack.c.l.b16 %v3885
    %v4062 = vunpack.c.l.b16 %v3886
    %v4063 = vunpack.c.l.b16 %v3887
    %v4064 = vunpack.c.l.b16 %v3888
    %v4065 = vunpack.c.l.b16 %v3889
    %v4066 = vunpack.c.l.b16 %v3890
    %v4067 = vunpack.c.l.b16 %v3891
    %v4068 = vunpack.c.l.b16 %v3892
    %v4069 = vunpack.c.l.b16 %v3893
    %v4070 = vunpack.c.l.b16 %v3894
    %v4071 = vunpack.c.l.b16 %v3895
    %v4072 = vunpack.c.l.b16 %v3896
    %v4073 = vunpack.c.l.b16 %v3897
    %v4074 = vunpack.c.l.b16 %v3898
    %v4075 = vunpack.c.l.b16 %v3899
    %v4076 = vunpack.c.l.b16 %v3900
    %v4077 = vunpack.c.l.b16 %v3901
    %v4078 = vunpack.c.l.b16 %v3902
    %v4079 = vunpack.c.l.b16 %v3903
    %v4080 = vunpack.c.l.b16 %v3904
    %v4081 = vunpack.c.l.b16 %v3905
    %v4082 = vunpack.c.l.b16 %v3906
    %v4083 = vunpack.c.l.b16 %v3907
    %v4084 = vunpack.c.l.b16 %v3908
    %v4085 = vunpack.c.l.b16 %v3909
    %v4086 = vunpack.c.l.b16 %v3910
    %v4087 = vunpack.c.l.b16 %v3911
    %v4088 = vunpack.c.l.b16 %v3912
    %v4089 = vunpack.c.l.b16 %v3913
    %v4090 = vunpack.c.l.b16 %v3914
    %v4091 = vunpack.c.l.b16 %v3915
    %v4092 = vunpack.c.l.b16 %v3916
    %v4093 = vunpack.c.l.b16 %v3917
    %v4094 = vunpack.c.l.b16 %v3918
    %v4095 = vunpack.c.l.b16 %v3919
    %v4096 = vunpack.c.l.b16 %v3920
    %v4097 = vunpack.c.l.b16 %v3921
    %v4098 = vunpack.c.l.b16 %v3922
    %v4099 = vunpack.c.l.b16 %v3923
    %v4100 = vunpack.c.l.b16 %v3924
    %v4101 = vunpack.c.l.b16 %v3925
    %v4102 = vunpack.c.l.b16 %v3926
    %v4103 = vunpack.c.l.b16 %v3927
    %v4104 = vunpack.c.l.b16 %v3928
    %v4105 = vunpack.c.l.b16 %v3929
    %v4106 = vunpack.c.l.b16 %v3930
    %v4107 = vunpack.c.l.b16 %v3931
    %v4108 = vunpack.c.l.b16 %v3932
    %v4109 = vunpack.c.l.b16 %v3933
    %v4110 = vunpack.c.l.b16 %v3934
    %v4111 = vunpack.c.l.b16 %v3935
    %v4112 = vunpack.c.l.b16 %v3936
    %v4113 = vunpack.c.l.b16 %v3937
    %v4114 = vunpack.c.l.b16 %v3938
    %v4115 = vunpack.c.l.b16 %v3939
    %v4116 = vunpack.c.l.b16 %v3940
    %v4117 = vunpack.c.l.b16 %v3941
    %v4118 = vunpack.c.l.b16 %v3942
    %v4119 = vunpack.c.l.b16 %v3943
    %v4120 = vunpack.c.l.b16 %v3944
    %v4121 = vunpack.c.l.b16 %v3945
    %v4122 = vunpack.c.l.b16 %v3946
    %v4123 = vunpack.c.l.b16 %v3947
    %v4124 = vunpack.c.l.b16 %v3948
    %v4125 = vunpack.c.l.b16 %v3949
    %v4126 = vunpack.c.l.b16 %v3950
    %v4127 = vunpack.c.l.b16 %v3951
    %v4128 = vunpack.c.l.b16 %v3952
    %v4129 = vunpack.c.l.b16 %v3953
    %v4130 = vunpack.c.l.b16 %v3954
    %v4131 = vunpack.c.l.b16 %v3955
    %v4132 = vunpack.c.l.b16 %v3956
    %v4133 = vunpack.c.l.b16 %v3957
    %v4134 = vpack.c.b16 %v4047, %v4046
    %v4135 = vpack.c.b16 %v4049, %v4048
    %v4136 = vpack.c.b16 %v4051, %v4050
    %v4137 = vpack.c.b16 %v4053, %v4052
    %v4138 = vpack.c.b16 %v4055, %v4054
    %v4139 = vpack.c.b16 %v4057, %v4056
    %v4140 = vpack.c.b16 %v4059, %v4058
    %v4141 = vpack.c.b16 %v4061, %v4060
    %v4142 = vpack.c.b16 %v4063, %v4062
    %v4143 = vpack.c.b16 %v4065, %v4064
    %v4144 = vpack.c.b16 %v4067, %v4066
    %v4145 = vpack.c.b16 %v4069, %v4068
    %v4146 = vpack.c.b16 %v4071, %v4070
    %v4147 = vpack.c.b16 %v4073, %v4072
    %v4148 = vpack.c.b16 %v4075, %v4074
    %v4149 = vpack.c.b16 %v4077, %v4076
    %v4150 = vpack.c.b16 %v4079, %v4078
    %v4151 = vpack.c.b16 %v4081, %v4080
    %v4152 = vpack.c.b16 %v4083, %v4082
    %v4153 = vpack.c.b16 %v4085, %v4084
    %v4154 = vpack.c.b16 %v4087, %v4086
    %v4155 = vpack.c.b16 %v4089, %v4088
    %v4156 = vpack.c.b16 %v4091, %v4090
    %v4157 = vpack.c.b16 %v4093, %v4092
    %v4158 = vpack.c.b16 %v4095, %v4094
    %v4159 = vpack.c.b16 %v4097, %v4096
    %v4160 = vpack.c.b16 %v4099, %v4098
    %v4161 = vpack.c.b16 %v4101, %v4100
    %v4162 = vpack.c.b16 %v4103, %v4102
    %v4163 = vpack.c.b16 %v4105, %v4104
    %v4164 = vpack.c.b16 %v4107, %v4106
    %v4165 = vpack.c.b16 %v4109, %v4108
    %v4166 = vpack.c.b16 %v4111, %v4110
    %v4167 = vpack.c.b16 %v4113, %v4112
    %v4168 = vpack.c.b16 %v4115, %v4114
    %v4169 = vpack.c.b16 %v4117, %v4116
    %v4170 = vpack.c.b16 %v4119, %v4118
    %v4171 = vpack.c.b16 %v4121, %v4120
    %v4172 = vpack.c.b16 %v4123, %v4122
    %v4173 = vpack.c.b16 %v4125, %v4124
    %v4174 = vpack.c.b16 %v4127, %v4126
    %v4175 = vpack.c.b16 %v4129, %v4128
    %v4176 = vpack.c.b16 %v4131, %v4130
    %v4177 = vpack.c.b16 %v4133, %v4132
    %v4222 = vsel %vm1708, %v3868, 0
    %v4225 = vand.u32 %v4177, %v1715
    %4227 = vmatprep.subr.bf16.mxu0 0
    %4228 = vmatpush1.bf16.msra.mxu0 %v4141
    %4229 = vmatprep.subr.bf16.mxu0 0
    %4230 = vmatpush1.bf16.msra.mxu0 %v4140
    %4231 = vmatprep.subr.bf16.mxu0 0
    %4232 = vmatpush1.bf16.msra.mxu0 %v4139
    %4233 = vmatprep.subr.bf16.mxu0 0
    %4234 = vmatpush1.bf16.msra.mxu0 %v4138
    %4235 = vmatprep.subr.bf16.mxu0 0
    %4236 = vmatpush1.bf16.msra.mxu0 %v4137
    %4237 = vmatprep.subr.bf16.mxu0 0
    %4238 = vmatpush1.bf16.msra.mxu0 %v4136
    %4239 = vmatprep.subr.bf16.mxu0 0
    %4240 = vmatpush1.bf16.msra.mxu0 %v4135
    %4241 = vmatprep.subr.bf16.mxu0 0
    %4242 = vmatpush1.bf16.msra.mxu0 %v4134
    %4243 = vmatprep.subr.bf16.mxu0 0
    %4244 = vmatpush2.bf16.msra.mxu0 %v4149
    %4245 = vmatprep.subr.bf16.mxu0 0
    %4246 = vmatpush2.bf16.msra.mxu0 %v4148
    %4247 = vmatprep.subr.bf16.mxu0 0
    %4248 = vmatpush2.bf16.msra.mxu0 %v4147
    %4249 = vmatprep.subr.bf16.mxu0 0
    %4250 = vmatpush2.bf16.msra.mxu0 %v4146
    %4251 = vmatprep.subr.bf16.mxu0 0
    %4252 = vmatpush2.bf16.msra.mxu0 %v4145
    %4253 = vmatprep.subr.bf16.mxu0 0
    %4254 = vmatpush2.bf16.msra.mxu0 %v4144
    %4255 = vmatprep.subr.bf16.mxu0 0
    %4256 = vmatpush2.bf16.msra.mxu0 %v4143
    %4257 = vmatprep.subr.bf16.mxu0 0
    %4258 = vmatpush2.bf16.msra.mxu0 %v4142
    %4259 = vmatprep.mubr.bf16.mxu0 %v3864
    %4260 = vmatmul.mubr.bf16.gmra.mxu0 %v3863
    %v4261 = vpop.f32.mrf.mxu0
    %v4262 = vadd.f32 0.0, %v4261
    %v4263 = vpop.f32.mrf.mxu0
    %v4264 = vpop.f32.mrf.mxu0
    %v4265 = vpop.f32.mrf.mxu0
    %4266 = vdwg.mxu0
    %4267 = vmatprep.subr.bf16.mxu0 0
    %4268 = vmatpush1.bf16.msra.mxu0 %v4157
    %4269 = vmatprep.subr.bf16.mxu0 0
    %4270 = vmatpush1.bf16.msra.mxu0 %v4156
    %4271 = vmatprep.subr.bf16.mxu0 0
    %4272 = vmatpush1.bf16.msra.mxu0 %v4155
    %4273 = vmatprep.subr.bf16.mxu0 0
    %4274 = vmatpush1.bf16.msra.mxu0 %v4154
    %4275 = vmatprep.subr.bf16.mxu0 0
    %4276 = vmatpush1.bf16.msra.mxu0 %v4153
    %4277 = vmatprep.subr.bf16.mxu0 0
    %4278 = vmatpush1.bf16.msra.mxu0 %v4152
    %4279 = vmatprep.subr.bf16.mxu0 0
    %4280 = vmatpush1.bf16.msra.mxu0 %v4151
    %4281 = vmatprep.subr.bf16.mxu0 0
    %4282 = vmatpush1.bf16.msra.mxu0 %v4150
    %4283 = vmatprep.subr.bf16.mxu0 0
    %4284 = vmatpush2.bf16.msra.mxu0 %v4165
    %4285 = vmatprep.subr.bf16.mxu0 0
    %4286 = vmatpush2.bf16.msra.mxu0 %v4164
    %4287 = vmatprep.subr.bf16.mxu0 0
    %4288 = vmatpush2.bf16.msra.mxu0 %v4163
    %4289 = vmatprep.subr.bf16.mxu0 0
    %4290 = vmatpush2.bf16.msra.mxu0 %v4162
    %4291 = vmatprep.subr.bf16.mxu0 0
    %4292 = vmatpush2.bf16.msra.mxu0 %v4161
    %4293 = vmatprep.subr.bf16.mxu0 0
    %4294 = vmatpush2.bf16.msra.mxu0 %v4160
    %4295 = vmatprep.subr.bf16.mxu0 0
    %4296 = vmatpush2.bf16.msra.mxu0 %v4159
    %4297 = vmatprep.subr.bf16.mxu0 0
    %4298 = vmatpush2.bf16.msra.mxu0 %v4158
    %4299 = vmatprep.mubr.bf16.mxu0 %v3866
    %4300 = vmatmul.mubr.bf16.gmra.mxu0 %v3865
    %v4301 = vpop.f32.mrf.mxu0
    %v4302 = vadd.f32 %v4262, %v4301
    %v4303 = vpop.f32.mrf.mxu0
    %v4304 = vpop.f32.mrf.mxu0
    %v4305 = vpop.f32.mrf.mxu0
    %4306 = vdwg.mxu0
    %4307 = vmatprep.subr.bf16.mxu0 0
    %4308 = vmatpush1.bf16.msra.mxu0 %v4173
    %4309 = vmatprep.subr.bf16.mxu0 0
    %4310 = vmatpush1.bf16.msra.mxu0 %v4172
    %4311 = vmatprep.subr.bf16.mxu0 0
    %4312 = vmatpush1.bf16.msra.mxu0 %v4171
    %4313 = vmatprep.subr.bf16.mxu0 0
    %4314 = vmatpush1.bf16.msra.mxu0 %v4170
    %4315 = vmatprep.subr.bf16.mxu0 0
    %4316 = vmatpush1.bf16.msra.mxu0 %v4169
    %4317 = vmatprep.subr.bf16.mxu0 0
    %4318 = vmatpush1.bf16.msra.mxu0 %v4168
    %4319 = vmatprep.subr.bf16.mxu0 0
    %4320 = vmatpush1.bf16.msra.mxu0 %v4167
    %4321 = vmatprep.subr.bf16.mxu0 0
    %4322 = vmatpush1.bf16.msra.mxu0 %v4166
    %4323 = vmatprep.subr.bf16.mxu0 0
    %4324 = vmatpush2.bf16.msra.mxu0 0
    %4325 = vmatprep.subr.bf16.mxu0 0
    %4326 = vmatpush2.bf16.msra.mxu0 0
    %4327 = vmatprep.subr.bf16.mxu0 0
    %4328 = vmatpush2.bf16.msra.mxu0 0
    %4329 = vmatprep.subr.bf16.mxu0 0
    %4330 = vmatpush2.bf16.msra.mxu0 0
    %4331 = vmatprep.subr.bf16.mxu0 0
    %4332 = vmatpush2.bf16.msra.mxu0 %v4225
    %4333 = vmatprep.subr.bf16.mxu0 0
    %4334 = vmatpush2.bf16.msra.mxu0 %v4176
    %4335 = vmatprep.subr.bf16.mxu0 0
    %4336 = vmatpush2.bf16.msra.mxu0 %v4175
    %4337 = vmatprep.subr.bf16.mxu0 0
    %4338 = vmatpush2.bf16.msra.mxu0 %v4174
    %4339 = vmatprep.mubr.bf16.mxu0 %v4222
    %4340 = vmatmul.mubr.bf16.gmra.mxu0 %v3867
    %v4341 = vpop.f32.mrf.mxu0
    %v4342 = vadd.f32 %v4302, %v4341
    %v4343 = vpop.f32.mrf.mxu0
    %v4344 = vpop.f32.mrf.mxu0
    %v4345 = vpop.f32.mrf.mxu0
    %4346 = vdwg.mxu0
    %v4347 = vadd.f32 %v3287, %v4342
    %s4348 = sld [smem:[#allocation2 + $0x24]]
    %p4350 = scmp.ne.f32.partialorder %s4348, %s4348
    %s4351 = sshrl.u32 %s4348, 16
    %s4352 = sand.u32 %s4351, 1
    %s4353 = sadd.s32 32767, %s4352
    %s4354 = sadd.s32 %s4348, %s4353
    %s4355 = sand.u32 %s4354, 4294901760
    %s4356 = scalar_select %p4350, 2143289344, %s4355
    %s4358 = sshrl.u32 %s4356, 16
    %s4359 = sld [smem:[#allocation2 + $0x25]]
    %p4361 = scmp.ne.f32.partialorder %s4359, %s4359
    %s4362 = sshrl.u32 %s4359, 16
    %s4363 = sand.u32 %s4362, 1
    %s4364 = sadd.s32 32767, %s4363
    %s4365 = sadd.s32 %s4359, %s4364
    %s4366 = sand.u32 %s4365, 4294901760
    %s4367 = scalar_select %p4361, 2143289344, %s4366
    %s4369 = sshrl.u32 %s4367, 16
    %s4370 = sld [smem:[#allocation2 + $0x26]]
    %p4372 = scmp.ne.f32.partialorder %s4370, %s4370
    %s4373 = sshrl.u32 %s4370, 16
    %s4374 = sand.u32 %s4373, 1
    %s4375 = sadd.s32 32767, %s4374
    %s4376 = sadd.s32 %s4370, %s4375
    %s4377 = sand.u32 %s4376, 4294901760
    %s4378 = scalar_select %p4372, 2143289344, %s4377
    %s4380 = sshrl.u32 %s4378, 16
    %s4381 = sld [smem:[#allocation2 + $0x27]]
    %p4383 = scmp.ne.f32.partialorder %s4381, %s4381
    %s4384 = sshrl.u32 %s4381, 16
    %s4385 = sand.u32 %s4384, 1
    %s4386 = sadd.s32 32767, %s4385
    %s4387 = sadd.s32 %s4381, %s4386
    %s4388 = sand.u32 %s4387, 4294901760
    %s4389 = scalar_select %p4383, 2143289344, %s4388
    %s4391 = sshrl.u32 %s4389, 16
    %s4392 = sld [smem:[#allocation2 + $0x28]]
    %p4394 = scmp.ne.f32.partialorder %s4392, %s4392
    %s4395 = sshrl.u32 %s4392, 16
    %s4396 = sand.u32 %s4395, 1
    %s4397 = sadd.s32 32767, %s4396
    %s4398 = sadd.s32 %s4392, %s4397
    %s4399 = sand.u32 %s4398, 4294901760
    %s4400 = scalar_select %p4394, 2143289344, %s4399
    %s4402 = sshrl.u32 %s4400, 16
    %s4403 = sld [smem:[#allocation2 + $0x29]]
    %p4405 = scmp.ne.f32.partialorder %s4403, %s4403
    %s4406 = sshrl.u32 %s4403, 16
    %s4407 = sand.u32 %s4406, 1
    %s4408 = sadd.s32 32767, %s4407
    %s4409 = sadd.s32 %s4403, %s4408
    %s4410 = sand.u32 %s4409, 4294901760
    %s4411 = scalar_select %p4405, 2143289344, %s4410
    %s4413 = sshrl.u32 %s4411, 16
    %s4414 = sld [smem:[#allocation2 + $0x2a]]
    %p4416 = scmp.ne.f32.partialorder %s4414, %s4414
    %s4417 = sshrl.u32 %s4414, 16
    %s4418 = sand.u32 %s4417, 1
    %s4419 = sadd.s32 32767, %s4418
    %s4420 = sadd.s32 %s4414, %s4419
    %s4421 = sand.u32 %s4420, 4294901760
    %s4422 = scalar_select %p4416, 2143289344, %s4421
    %s4424 = sshrl.u32 %s4422, 16
    %s4425 = sld [smem:[#allocation2 + $0x2b]]
    %p4427 = scmp.ne.f32.partialorder %s4425, %s4425
    %s4428 = sshrl.u32 %s4425, 16
    %s4429 = sand.u32 %s4428, 1
    %s4430 = sadd.s32 32767, %s4429
    %s4431 = sadd.s32 %s4425, %s4430
    %s4432 = sand.u32 %s4431, 4294901760
    %s4433 = scalar_select %p4427, 2143289344, %s4432
    %s4435 = sshrl.u32 %s4433, 16
    %s4436 = sld [smem:[#allocation2 + $0x2c]]
    %p4438 = scmp.ne.f32.partialorder %s4436, %s4436
    %s4439 = sshrl.u32 %s4436, 16
    %s4440 = sand.u32 %s4439, 1
    %s4441 = sadd.s32 32767, %s4440
    %s4442 = sadd.s32 %s4436, %s4441
    %s4443 = sand.u32 %s4442, 4294901760
    %s4444 = scalar_select %p4438, 2143289344, %s4443
    %s4446 = sshrl.u32 %s4444, 16
    %s4447 = sshll.u32 %s4358, 16
    %s4448 = sor.u32 %s4358, %s4447
    %v4449 = vstv %s4448
    %v4451 = vmul.bf16 %v91, %v4449
    %v4452 = vmul.bf16 %v92, %v4449
    %v4453 = vmul.bf16 %v93, %v4449
    %v4454 = vmul.bf16 %v94, %v4449
    %v4455 = vmul.bf16 %v95, %v4449
    %v4456 = vmul.bf16 %v96, %v4449
    %s4457 = sshll.u32 %s4369, 16
    %s4458 = sor.u32 %s4369, %s4457
    %v4459 = vstv %s4458
    %v4461 = vmul.bf16 %v91, %v4459
    %v4462 = vmul.bf16 %v92, %v4459
    %v4463 = vmul.bf16 %v93, %v4459
    %v4464 = vmul.bf16 %v94, %v4459
    %v4465 = vmul.bf16 %v95, %v4459
    %v4466 = vmul.bf16 %v96, %v4459
    %4473 = vrot.lane.b32.xlu0 %v4461, 127
    %v4474 = vpop.permute.xlu0 %4473
    %4475 = vrot.lane.b32.xlu0 %v4462, 127
    %v4476 = vpop.permute.xlu0 %4475
    %4477 = vrot.lane.b32.xlu0 %v4463, 127
    %v4478 = vpop.permute.xlu0 %4477
    %4479 = vrot.lane.b32.xlu0 %v4464, 127
    %v4480 = vpop.permute.xlu0 %4479
    %4481 = vrot.lane.b32.xlu0 %v4465, 127
    %v4482 = vpop.permute.xlu0 %4481
    %4483 = vrot.lane.b32.xlu0 %v4466, 127
    %v4484 = vpop.permute.xlu0 %4483
    %v4485 = vsel %vm235, %v4474, %v4476
    %v4486 = vsel %vm235, %v4476, %v4478
    %v4487 = vsel %vm235, %v4478, %v4480
    %v4488 = vsel %vm235, %v4480, %v4482
    %v4489 = vsel %vm235, %v4482, %v4484
    %v4496 = vadd.bf16 %v4451, %v4485
    %v4497 = vadd.bf16 %v4452, %v4486
    %v4498 = vadd.bf16 %v4453, %v4487
    %v4499 = vadd.bf16 %v4454, %v4488
    %v4500 = vadd.bf16 %v4455, %v4489
    %v4501 = vadd.bf16 %v4456, %v4484
    %s4502 = sshll.u32 %s4380, 16
    %s4503 = sor.u32 %s4380, %s4502
    %v4504 = vstv %s4503
    %v4506 = vmul.bf16 %v91, %v4504
    %v4507 = vmul.bf16 %v92, %v4504
    %v4508 = vmul.bf16 %v93, %v4504
    %v4509 = vmul.bf16 %v94, %v4504
    %v4510 = vmul.bf16 %v95, %v4504
    %v4511 = vmul.bf16 %v96, %v4504
    %4518 = vrot.lane.b32.xlu0 %v4506, 126
    %v4519 = vpop.permute.xlu0 %4518
    %4520 = vrot.lane.b32.xlu0 %v4507, 126
    %v4521 = vpop.permute.xlu0 %4520
    %4522 = vrot.lane.b32.xlu0 %v4508, 126
    %v4523 = vpop.permute.xlu0 %4522
    %4524 = vrot.lane.b32.xlu0 %v4509, 126
    %v4525 = vpop.permute.xlu0 %4524
    %4526 = vrot.lane.b32.xlu0 %v4510, 126
    %v4527 = vpop.permute.xlu0 %4526
    %4528 = vrot.lane.b32.xlu0 %v4511, 126
    %v4529 = vpop.permute.xlu0 %4528
    %v4530 = vsel %vm281, %v4519, %v4521
    %v4531 = vsel %vm281, %v4521, %v4523
    %v4532 = vsel %vm281, %v4523, %v4525
    %v4533 = vsel %vm281, %v4525, %v4527
    %v4534 = vsel %vm281, %v4527, %v4529
    %v4541 = vadd.bf16 %v4496, %v4530
    %v4542 = vadd.bf16 %v4497, %v4531
    %v4543 = vadd.bf16 %v4498, %v4532
    %v4544 = vadd.bf16 %v4499, %v4533
    %v4545 = vadd.bf16 %v4500, %v4534
    %v4546 = vadd.bf16 %v4501, %v4529
    %s4547 = sshll.u32 %s4391, 16
    %s4548 = sor.u32 %s4391, %s4547
    %v4549 = vstv %s4548
    %v4551 = vmul.bf16 %v91, %v4549
    %v4552 = vmul.bf16 %v92, %v4549
    %v4553 = vmul.bf16 %v93, %v4549
    %v4554 = vmul.bf16 %v94, %v4549
    %v4555 = vmul.bf16 %v95, %v4549
    %v4556 = vmul.bf16 %v96, %v4549
    %4563 = vrot.lane.b32.xlu0 %v4551, 100
    %v4564 = vpop.permute.xlu0 %4563
    %4565 = vrot.lane.b32.xlu0 %v4552, 100
    %v4566 = vpop.permute.xlu0 %4565
    %4567 = vrot.lane.b32.xlu0 %v4553, 100
    %v4568 = vpop.permute.xlu0 %4567
    %4569 = vrot.lane.b32.xlu0 %v4554, 100
    %v4570 = vpop.permute.xlu0 %4569
    %4571 = vrot.lane.b32.xlu0 %v4555, 100
    %v4572 = vpop.permute.xlu0 %4571
    %4573 = vrot.lane.b32.xlu0 %v4556, 100
    %v4574 = vpop.permute.xlu0 %4573
    %v4575 = vsel %vm327, %v4564, %v4566
    %v4576 = vsel %vm327, %v4566, %v4568
    %v4577 = vsel %vm327, %v4568, %v4570
    %v4578 = vsel %vm327, %v4570, %v4572
    %v4579 = vsel %vm327, %v4572, %v4574
    %v4586 = vadd.bf16 %v4541, %v4575
    %v4587 = vadd.bf16 %v4542, %v4576
    %v4588 = vadd.bf16 %v4543, %v4577
    %v4589 = vadd.bf16 %v4544, %v4578
    %v4590 = vadd.bf16 %v4545, %v4579
    %v4591 = vadd.bf16 %v4546, %v4574
    %s4592 = sshll.u32 %s4402, 16
    %s4593 = sor.u32 %s4402, %s4592
    %v4594 = vstv %s4593
    %v4596 = vmul.bf16 %v91, %v4594
    %v4597 = vmul.bf16 %v92, %v4594
    %v4598 = vmul.bf16 %v93, %v4594
    %v4599 = vmul.bf16 %v94, %v4594
    %v4600 = vmul.bf16 %v95, %v4594
    %v4601 = vmul.bf16 %v96, %v4594
    %4608 = vrot.lane.b32.xlu0 %v4596, 99
    %v4609 = vpop.permute.xlu0 %4608
    %4610 = vrot.lane.b32.xlu0 %v4597, 99
    %v4611 = vpop.permute.xlu0 %4610
    %4612 = vrot.lane.b32.xlu0 %v4598, 99
    %v4613 = vpop.permute.xlu0 %4612
    %4614 = vrot.lane.b32.xlu0 %v4599, 99
    %v4615 = vpop.permute.xlu0 %4614
    %4616 = vrot.lane.b32.xlu0 %v4600, 99
    %v4617 = vpop.permute.xlu0 %4616
    %4618 = vrot.lane.b32.xlu0 %v4601, 99
    %v4619 = vpop.permute.xlu0 %4618
    %v4620 = vsel %vm373, %v4609, %v4611
    %v4621 = vsel %vm373, %v4611, %v4613
    %v4622 = vsel %vm373, %v4613, %v4615
    %v4623 = vsel %vm373, %v4615, %v4617
    %v4624 = vsel %vm373, %v4617, %v4619
    %v4631 = vadd.bf16 %v4586, %v4620
    %v4632 = vadd.bf16 %v4587, %v4621
    %v4633 = vadd.bf16 %v4588, %v4622
    %v4634 = vadd.bf16 %v4589, %v4623
    %v4635 = vadd.bf16 %v4590, %v4624
    %v4636 = vadd.bf16 %v4591, %v4619
    %s4637 = sshll.u32 %s4413, 16
    %s4638 = sor.u32 %s4413, %s4637
    %v4639 = vstv %s4638
    %v4641 = vmul.bf16 %v91, %v4639
    %v4642 = vmul.bf16 %v92, %v4639
    %v4643 = vmul.bf16 %v93, %v4639
    %v4644 = vmul.bf16 %v94, %v4639
    %v4645 = vmul.bf16 %v95, %v4639
    %v4646 = vmul.bf16 %v96, %v4639
    %4653 = vrot.lane.b32.xlu0 %v4641, 98
    %v4654 = vpop.permute.xlu0 %4653
    %4655 = vrot.lane.b32.xlu0 %v4642, 98
    %v4656 = vpop.permute.xlu0 %4655
    %4657 = vrot.lane.b32.xlu0 %v4643, 98
    %v4658 = vpop.permute.xlu0 %4657
    %4659 = vrot.lane.b32.xlu0 %v4644, 98
    %v4660 = vpop.permute.xlu0 %4659
    %4661 = vrot.lane.b32.xlu0 %v4645, 98
    %v4662 = vpop.permute.xlu0 %4661
    %4663 = vrot.lane.b32.xlu0 %v4646, 98
    %v4664 = vpop.permute.xlu0 %4663
    %v4665 = vsel %vm419, %v4654, %v4656
    %v4666 = vsel %vm419, %v4656, %v4658
    %v4667 = vsel %vm419, %v4658, %v4660
    %v4668 = vsel %vm419, %v4660, %v4662
    %v4669 = vsel %vm419, %v4662, %v4664
    %v4676 = vadd.bf16 %v4631, %v4665
    %v4677 = vadd.bf16 %v4632, %v4666
    %v4678 = vadd.bf16 %v4633, %v4667
    %v4679 = vadd.bf16 %v4634, %v4668
    %v4680 = vadd.bf16 %v4635, %v4669
    %v4681 = vadd.bf16 %v4636, %v4664
    %s4682 = sshll.u32 %s4424, 16
    %s4683 = sor.u32 %s4424, %s4682
    %v4684 = vstv %s4683
    %v4686 = vmul.bf16 %v91, %v4684
    %v4687 = vmul.bf16 %v92, %v4684
    %v4688 = vmul.bf16 %v93, %v4684
    %v4689 = vmul.bf16 %v94, %v4684
    %v4690 = vmul.bf16 %v95, %v4684
    %v4691 = vmul.bf16 %v96, %v4684
    %v4692 = vmul.bf16 %v97, %v4684
    %4700 = vrot.lane.b32.xlu0 %v4686, 72
    %v4701 = vpop.permute.xlu0 %4700
    %4702 = vrot.lane.b32.xlu0 %v4687, 72
    %v4703 = vpop.permute.xlu0 %4702
    %4704 = vrot.lane.b32.xlu0 %v4688, 72
    %v4705 = vpop.permute.xlu0 %4704
    %4706 = vrot.lane.b32.xlu0 %v4689, 72
    %v4707 = vpop.permute.xlu0 %4706
    %4708 = vrot.lane.b32.xlu0 %v4690, 72
    %v4709 = vpop.permute.xlu0 %4708
    %4710 = vrot.lane.b32.xlu0 %v4691, 72
    %v4711 = vpop.permute.xlu0 %4710
    %4712 = vrot.lane.b32.xlu0 %v4692, 72
    %v4713 = vpop.permute.xlu0 %4712
    %v4714 = vsel %vm469, %v4701, %v4703
    %v4715 = vsel %vm469, %v4703, %v4705
    %v4716 = vsel %vm469, %v4705, %v4707
    %v4717 = vsel %vm469, %v4707, %v4709
    %v4718 = vsel %vm469, %v4709, %v4711
    %v4719 = vsel %vm469, %v4711, %v4713
    %v4726 = vadd.bf16 %v4676, %v4714
    %v4727 = vadd.bf16 %v4677, %v4715
    %v4728 = vadd.bf16 %v4678, %v4716
    %v4729 = vadd.bf16 %v4679, %v4717
    %v4730 = vadd.bf16 %v4680, %v4718
    %v4731 = vadd.bf16 %v4681, %v4719
    %s4732 = sshll.u32 %s4435, 16
    %s4733 = sor.u32 %s4435, %s4732
    %v4734 = vstv %s4733
    %v4736 = vmul.bf16 %v91, %v4734
    %v4737 = vmul.bf16 %v92, %v4734
    %v4738 = vmul.bf16 %v93, %v4734
    %v4739 = vmul.bf16 %v94, %v4734
    %v4740 = vmul.bf16 %v95, %v4734
    %v4741 = vmul.bf16 %v96, %v4734
    %v4742 = vmul.bf16 %v97, %v4734
    %4750 = vrot.lane.b32.xlu0 %v4736, 71
    %v4751 = vpop.permute.xlu0 %4750
    %4752 = vrot.lane.b32.xlu0 %v4737, 71
    %v4753 = vpop.permute.xlu0 %4752
    %4754 = vrot.lane.b32.xlu0 %v4738, 71
    %v4755 = vpop.permute.xlu0 %4754
    %4756 = vrot.lane.b32.xlu0 %v4739, 71
    %v4757 = vpop.permute.xlu0 %4756
    %4758 = vrot.lane.b32.xlu0 %v4740, 71
    %v4759 = vpop.permute.xlu0 %4758
    %4760 = vrot.lane.b32.xlu0 %v4741, 71
    %v4761 = vpop.permute.xlu0 %4760
    %4762 = vrot.lane.b32.xlu0 %v4742, 71
    %v4763 = vpop.permute.xlu0 %4762
    %v4764 = vsel %vm520, %v4751, %v4753
    %v4765 = vsel %vm520, %v4753, %v4755
    %v4766 = vsel %vm520, %v4755, %v4757
    %v4767 = vsel %vm520, %v4757, %v4759
    %v4768 = vsel %vm520, %v4759, %v4761
    %v4769 = vsel %vm520, %v4761, %v4763
    %v4776 = vadd.bf16 %v4726, %v4764
    %v4777 = vadd.bf16 %v4727, %v4765
    %v4778 = vadd.bf16 %v4728, %v4766
    %v4779 = vadd.bf16 %v4729, %v4767
    %v4780 = vadd.bf16 %v4730, %v4768
    %v4781 = vadd.bf16 %v4731, %v4769
    %s4782 = sshll.u32 %s4446, 16
    %s4783 = sor.u32 %s4446, %s4782
    %v4784 = vstv %s4783
    %v4786 = vmul.bf16 %v91, %v4784
    %v4787 = vmul.bf16 %v92, %v4784
    %v4788 = vmul.bf16 %v93, %v4784
    %v4789 = vmul.bf16 %v94, %v4784
    %v4790 = vmul.bf16 %v95, %v4784
    %v4791 = vmul.bf16 %v96, %v4784
    %v4792 = vmul.bf16 %v97, %v4784
    %4800 = vrot.lane.b32.xlu0 %v4786, 70
    %v4801 = vpop.permute.xlu0 %4800
    %4802 = vrot.lane.b32.xlu0 %v4787, 70
    %v4803 = vpop.permute.xlu0 %4802
    %4804 = vrot.lane.b32.xlu0 %v4788, 70
    %v4805 = vpop.permute.xlu0 %4804
    %4806 = vrot.lane.b32.xlu0 %v4789, 70
    %v4807 = vpop.permute.xlu0 %4806
    %4808 = vrot.lane.b32.xlu0 %v4790, 70
    %v4809 = vpop.permute.xlu0 %4808
    %4810 = vrot.lane.b32.xlu0 %v4791, 70
    %v4811 = vpop.permute.xlu0 %4810
    %4812 = vrot.lane.b32.xlu0 %v4792, 70
    %v4813 = vpop.permute.xlu0 %4812
    %v4814 = vsel %vm571, %v4801, %v4803
    %v4815 = vsel %vm571, %v4803, %v4805
    %v4816 = vsel %vm571, %v4805, %v4807
    %v4817 = vsel %vm571, %v4807, %v4809
    %v4818 = vsel %vm571, %v4809, %v4811
    %v4819 = vsel %vm571, %v4811, %v4813
    %v4826 = vadd.bf16 %v4776, %v4814
    %v4827 = vadd.bf16 %v4777, %v4815
    %v4828 = vadd.bf16 %v4778, %v4816
    %v4829 = vadd.bf16 %v4779, %v4817
    %v4830 = vadd.bf16 %v4780, %v4818
    %v4831 = vadd.bf16 %v4781, %v4819
    %4838 = vrot.lane.b32.xlu0 %v4826, 127
    %v4839 = vpop.permute.xlu0 %4838
    %4840 = vrot.lane.b32.xlu0 %v4827, 127
    %v4841 = vpop.permute.xlu0 %4840
    %4842 = vrot.lane.b32.xlu0 %v4828, 127
    %v4843 = vpop.permute.xlu0 %4842
    %4844 = vrot.lane.b32.xlu0 %v4829, 127
    %v4845 = vpop.permute.xlu0 %4844
    %4846 = vrot.lane.b32.xlu0 %v4830, 127
    %v4847 = vpop.permute.xlu0 %4846
    %4848 = vrot.lane.b32.xlu0 %v4831, 127
    %v4849 = vpop.permute.xlu0 %4848
    %v4850 = vsel %vm235, %v4839, %v4841
    %v4851 = vsel %vm235, %v4841, %v4843
    %v4852 = vsel %vm235, %v4843, %v4845
    %v4853 = vsel %vm235, %v4845, %v4847
    %v4854 = vsel %vm235, %v4847, %v4849
    %v4861 = vmax.bf16 %v4826, %v4850
    %v4862 = vmax.bf16 %v4827, %v4851
    %v4863 = vmax.bf16 %v4828, %v4852
    %v4864 = vmax.bf16 %v4829, %v4853
    %v4865 = vmax.bf16 %v4830, %v4854
    %v4866 = vmax.bf16 %v4831, %v4849
    %4873 = vrot.lane.b32.xlu0 %v4861, 100
    %v4874 = vpop.permute.xlu0 %4873
    %4875 = vrot.lane.b32.xlu0 %v4862, 100
    %v4876 = vpop.permute.xlu0 %4875
    %4877 = vrot.lane.b32.xlu0 %v4863, 100
    %v4878 = vpop.permute.xlu0 %4877
    %4879 = vrot.lane.b32.xlu0 %v4864, 100
    %v4880 = vpop.permute.xlu0 %4879
    %4881 = vrot.lane.b32.xlu0 %v4865, 100
    %v4882 = vpop.permute.xlu0 %4881
    %4883 = vrot.lane.b32.xlu0 %v4866, 100
    %v4884 = vpop.permute.xlu0 %4883
    %v4885 = vsel %vm327, %v4874, %v4876
    %v4886 = vsel %vm327, %v4876, %v4878
    %v4887 = vsel %vm327, %v4878, %v4880
    %v4888 = vsel %vm327, %v4880, %v4882
    %v4889 = vsel %vm327, %v4882, %v4884
    %v4896 = vmax.bf16 %v4861, %v4885
    %v4897 = vmax.bf16 %v4862, %v4886
    %v4898 = vmax.bf16 %v4863, %v4887
    %v4899 = vmax.bf16 %v4864, %v4888
    %v4900 = vmax.bf16 %v4865, %v4889
    %v4901 = vmax.bf16 %v4866, %v4884
    %s4902 = sld [smem:[#allocation5 + $0x4]]
    %p4904 = scmp.ne.f32.partialorder %s4902, %s4902
    %s4905 = sshrl.u32 %s4902, 16
    %s4906 = sand.u32 %s4905, 1
    %s4907 = sadd.s32 32767, %s4906
    %s4908 = sadd.s32 %s4902, %s4907
    %s4909 = sand.u32 %s4908, 4294901760
    %s4910 = scalar_select %p4904, 2143289344, %s4909
    %s4912 = sshrl.u32 %s4910, 16
    %s4913 = sshll.u32 %s4912, 16
    %s4914 = sor.u32 %s4912, %s4913
    %v4915 = vstv %s4914
    %v4917 = vadd.bf16 %v4896, %v4915
    %v4918 = vadd.bf16 %v4897, %v4915
    %v4919 = vadd.bf16 %v4898, %v4915
    %v4920 = vadd.bf16 %v4899, %v4915
    %v4921 = vadd.bf16 %v4900, %v4915
    %v4922 = vadd.bf16 %v4901, %v4915
    %v4923 = vmax.bf16 %v4917, 0
    %v4924 = vmax.bf16 %v4918, 0
    %v4925 = vmax.bf16 %v4919, 0
    %v4926 = vmax.bf16 %v4920, 0
    %v4927 = vmax.bf16 %v4921, 0
    %v4928 = vmax.bf16 %v4922, 0
    %s4929 = scalar_lea.vmem %s3, 1408
    %v4930 = vld [vmem:[%s4929] sm:$0xf]
    %v4931 = vld [vmem:[%s4929 + $0x4] sm:$0xf]
    %v4932 = vld [vmem:[%s4929 + $0x8] sm:$0xf]
    %v4933 = vld [vmem:[%s4929 + $0xc] sm:$0xf]
    %v4934 = vld [vmem:[%s4929 + $0x10] sm:$0xf]
    %v4935 = vld [vmem:[%s4929 + $0x14] sm:$0xf]
    %v4936 = vld [vmem:[%s4929 + $0x18] sm:$0xf]
    %v4937 = vld [vmem:[%s4929 + $0x1c] sm:$0xf]
    %v4938 = vld [vmem:[%s4929 + $0x20] sm:$0xf]
    %v4939 = vld [vmem:[%s4929 + $0x24] sm:$0xf]
    %v4940 = vld [vmem:[%s4929 + $0x28] sm:$0xf]
    %v4941 = vld [vmem:[%s4929 + $0x2c] sm:$0xf]
    %v4942 = vld [vmem:[%s4929 + $0x30] sm:$0xf]
    %v4943 = vld [vmem:[%s4929 + $0x34] sm:$0xf]
    %v4944 = vld [vmem:[%s4929 + $0x38] sm:$0xf]
    %v4945 = vld [vmem:[%s4929 + $0x3c] sm:$0xf]
    %v4946 = vld [vmem:[%s4929 + $0x40] sm:$0xf]
    %v4947 = vld [vmem:[%s4929 + $0x44] sm:$0xf]
    %v4948 = vld [vmem:[%s4929 + $0x48] sm:$0xf]
    %v4949 = vld [vmem:[%s4929 + $0x4c] sm:$0xf]
    %v4950 = vld [vmem:[%s4929 + $0x50] sm:$0xf]
    %v4951 = vld [vmem:[%s4929 + $0x54] sm:$0xf]
    %v4952 = vld [vmem:[%s4929 + $0x58] sm:$0xf]
    %v4953 = vld [vmem:[%s4929 + $0x5c] sm:$0xf]
    %v4954 = vld [vmem:[%s4929 + $0x60] sm:$0xf]
    %v4955 = vld [vmem:[%s4929 + $0x64] sm:$0xf]
    %v4956 = vld [vmem:[%s4929 + $0x68] sm:$0xf]
    %v4957 = vld [vmem:[%s4929 + $0x6c] sm:$0xf]
    %v4958 = vld [vmem:[%s4929 + $0x70] sm:$0xf]
    %v4959 = vld [vmem:[%s4929 + $0x74] sm:$0xf]
    %v4960 = vld [vmem:[%s4929 + $0x78] sm:$0xf]
    %v4961 = vld [vmem:[%s4929 + $0x7c] sm:$0xf]
    %v4962 = vld [vmem:[%s4929 + $0x80] sm:$0xf]
    %v4963 = vld [vmem:[%s4929 + $0x84] sm:$0xf]
    %v4964 = vld [vmem:[%s4929 + $0x88] sm:$0xf]
    %v4965 = vld [vmem:[%s4929 + $0x8c] sm:$0xf]
    %v4966 = vld [vmem:[%s4929 + $0x90] sm:$0xf]
    %v4967 = vld [vmem:[%s4929 + $0x94] sm:$0xf]
    %v4968 = vld [vmem:[%s4929 + $0x98] sm:$0xf]
    %v4969 = vld [vmem:[%s4929 + $0x9c] sm:$0xf]
    %v4970 = vld [vmem:[%s4929 + $0xa0] sm:$0xf]
    %v4971 = vld [vmem:[%s4929 + $0xa4] sm:$0xf]
    %v4972 = vld [vmem:[%s4929 + $0xa8] sm:$0xf]
    %v4973 = vld [vmem:[%s4929 + $0xac] sm:$0xf]
    %v4974 = vld [vmem:[%s4929 + $0xb0] sm:$0xf]
    %v4975 = vld [vmem:[%s4929 + $0xb4] sm:$0xf]
    %v4976 = vld [vmem:[%s4929 + $0xb8] sm:$0xf]
    %v4977 = vld [vmem:[%s4929 + $0xbc] sm:$0xf]
    %v4978 = vld [vmem:[%s4929 + $0xc0] sm:$0xf]
    %v4979 = vld [vmem:[%s4929 + $0xc4] sm:$0xf]
    %v4980 = vld [vmem:[%s4929 + $0xc8] sm:$0xf]
    %v4981 = vld [vmem:[%s4929 + $0xcc] sm:$0xf]
    %v4982 = vld [vmem:[%s4929 + $0xd0] sm:$0xf]
    %v4983 = vld [vmem:[%s4929 + $0xd4] sm:$0xf]
    %v4984 = vld [vmem:[%s4929 + $0xd8] sm:$0xf]
    %v4985 = vld [vmem:[%s4929 + $0xdc] sm:$0xf]
    %v4986 = vld [vmem:[%s4929 + $0xe0] sm:$0xf]
    %v4987 = vld [vmem:[%s4929 + $0xe4] sm:$0xf]
    %v4988 = vld [vmem:[%s4929 + $0xe8] sm:$0xf]
    %v4989 = vld [vmem:[%s4929 + $0xec] sm:$0xf]
    %v4990 = vld [vmem:[%s4929 + $0xf0] sm:$0xf]
    %v4991 = vld [vmem:[%s4929 + $0xf4] sm:$0xf]
    %v4992 = vld [vmem:[%s4929 + $0xf8] sm:$0xf]
    %v4993 = vld [vmem:[%s4929 + $0xfc] sm:$0xf]
    %v4994 = vld [vmem:[%s4929 + $0x100] sm:$0xf]
    %v4995 = vld [vmem:[%s4929 + $0x104] sm:$0xf]
    %v4996 = vld [vmem:[%s4929 + $0x108] sm:$0xf]
    %v4997 = vld [vmem:[%s4929 + $0x10c] sm:$0xf]
    %v4998 = vld [vmem:[%s4929 + $0x110] sm:$0xf]
    %v4999 = vld [vmem:[%s4929 + $0x114] sm:$0xf]
    %v5000 = vld [vmem:[%s4929 + $0x118] sm:$0xf]
    %v5001 = vld [vmem:[%s4929 + $0x11c] sm:$0xf]
    %v5002 = vld [vmem:[%s4929 + $0x120] sm:$0xf]
    %v5003 = vld [vmem:[%s4929 + $0x124] sm:$0xf]
    %v5004 = vld [vmem:[%s4929 + $0x128] sm:$0xf]
    %v5005 = vld [vmem:[%s4929 + $0x12c] sm:$0xf]
    %v5006 = vld [vmem:[%s4929 + $0x130] sm:$0xf]
    %v5007 = vld [vmem:[%s4929 + $0x134] sm:$0xf]
    %v5008 = vld [vmem:[%s4929 + $0x138] sm:$0xf]
    %v5009 = vld [vmem:[%s4929 + $0x13c] sm:$0xf]
    %v5010 = vld [vmem:[%s4929 + $0x140] sm:$0xf]
    %v5011 = vld [vmem:[%s4929 + $0x144] sm:$0xf]
    %v5012 = vld [vmem:[%s4929 + $0x148] sm:$0xf]
    %v5013 = vld [vmem:[%s4929 + $0x14c] sm:$0xf]
    %v5014 = vld [vmem:[%s4929 + $0x150] sm:$0xf]
    %v5015 = vld [vmem:[%s4929 + $0x154] sm:$0xf]
    %v5016 = vld [vmem:[%s4929 + $0x158] sm:$0xf]
    %v5017 = vld [vmem:[%s4929 + $0x15c] sm:$0x1]
    %v5106 = vunpack.c.l.b16 %v4930
    %v5107 = vunpack.c.l.b16 %v4931
    %v5108 = vunpack.c.l.b16 %v4932
    %v5109 = vunpack.c.l.b16 %v4933
    %v5110 = vunpack.c.l.b16 %v4934
    %v5111 = vunpack.c.l.b16 %v4935
    %v5112 = vunpack.c.l.b16 %v4936
    %v5113 = vunpack.c.l.b16 %v4937
    %v5114 = vunpack.c.l.b16 %v4938
    %v5115 = vunpack.c.l.b16 %v4939
    %v5116 = vunpack.c.l.b16 %v4940
    %v5117 = vunpack.c.l.b16 %v4941
    %v5118 = vunpack.c.l.b16 %v4942
    %v5119 = vunpack.c.l.b16 %v4943
    %v5120 = vunpack.c.l.b16 %v4944
    %v5121 = vunpack.c.l.b16 %v4945
    %v5122 = vunpack.c.l.b16 %v4946
    %v5123 = vunpack.c.l.b16 %v4947
    %v5124 = vunpack.c.l.b16 %v4948
    %v5125 = vunpack.c.l.b16 %v4949
    %v5126 = vunpack.c.l.b16 %v4950
    %v5127 = vunpack.c.l.b16 %v4951
    %v5128 = vunpack.c.l.b16 %v4952
    %v5129 = vunpack.c.l.b16 %v4953
    %v5130 = vunpack.c.l.b16 %v4954
    %v5131 = vunpack.c.l.b16 %v4955
    %v5132 = vunpack.c.l.b16 %v4956
    %v5133 = vunpack.c.l.b16 %v4957
    %v5134 = vunpack.c.l.b16 %v4958
    %v5135 = vunpack.c.l.b16 %v4959
    %v5136 = vunpack.c.l.b16 %v4960
    %v5137 = vunpack.c.l.b16 %v4961
    %v5138 = vunpack.c.l.b16 %v4962
    %v5139 = vunpack.c.l.b16 %v4963
    %v5140 = vunpack.c.l.b16 %v4964
    %v5141 = vunpack.c.l.b16 %v4965
    %v5142 = vunpack.c.l.b16 %v4966
    %v5143 = vunpack.c.l.b16 %v4967
    %v5144 = vunpack.c.l.b16 %v4968
    %v5145 = vunpack.c.l.b16 %v4969
    %v5146 = vunpack.c.l.b16 %v4970
    %v5147 = vunpack.c.l.b16 %v4971
    %v5148 = vunpack.c.l.b16 %v4972
    %v5149 = vunpack.c.l.b16 %v4973
    %v5150 = vunpack.c.l.b16 %v4974
    %v5151 = vunpack.c.l.b16 %v4975
    %v5152 = vunpack.c.l.b16 %v4976
    %v5153 = vunpack.c.l.b16 %v4977
    %v5154 = vunpack.c.l.b16 %v4978
    %v5155 = vunpack.c.l.b16 %v4979
    %v5156 = vunpack.c.l.b16 %v4980
    %v5157 = vunpack.c.l.b16 %v4981
    %v5158 = vunpack.c.l.b16 %v4982
    %v5159 = vunpack.c.l.b16 %v4983
    %v5160 = vunpack.c.l.b16 %v4984
    %v5161 = vunpack.c.l.b16 %v4985
    %v5162 = vunpack.c.l.b16 %v4986
    %v5163 = vunpack.c.l.b16 %v4987
    %v5164 = vunpack.c.l.b16 %v4988
    %v5165 = vunpack.c.l.b16 %v4989
    %v5166 = vunpack.c.l.b16 %v4990
    %v5167 = vunpack.c.l.b16 %v4991
    %v5168 = vunpack.c.l.b16 %v4992
    %v5169 = vunpack.c.l.b16 %v4993
    %v5170 = vunpack.c.l.b16 %v4994
    %v5171 = vunpack.c.l.b16 %v4995
    %v5172 = vunpack.c.l.b16 %v4996
    %v5173 = vunpack.c.l.b16 %v4997
    %v5174 = vunpack.c.l.b16 %v4998
    %v5175 = vunpack.c.l.b16 %v4999
    %v5176 = vunpack.c.l.b16 %v5000
    %v5177 = vunpack.c.l.b16 %v5001
    %v5178 = vunpack.c.l.b16 %v5002
    %v5179 = vunpack.c.l.b16 %v5003
    %v5180 = vunpack.c.l.b16 %v5004
    %v5181 = vunpack.c.l.b16 %v5005
    %v5182 = vunpack.c.l.b16 %v5006
    %v5183 = vunpack.c.l.b16 %v5007
    %v5184 = vunpack.c.l.b16 %v5008
    %v5185 = vunpack.c.l.b16 %v5009
    %v5186 = vunpack.c.l.b16 %v5010
    %v5187 = vunpack.c.l.b16 %v5011
    %v5188 = vunpack.c.l.b16 %v5012
    %v5189 = vunpack.c.l.b16 %v5013
    %v5190 = vunpack.c.l.b16 %v5014
    %v5191 = vunpack.c.l.b16 %v5015
    %v5192 = vunpack.c.l.b16 %v5016
    %v5193 = vunpack.c.l.b16 %v5017
    %v5194 = vpack.c.b16 %v5107, %v5106
    %v5195 = vpack.c.b16 %v5109, %v5108
    %v5196 = vpack.c.b16 %v5111, %v5110
    %v5197 = vpack.c.b16 %v5113, %v5112
    %v5198 = vpack.c.b16 %v5115, %v5114
    %v5199 = vpack.c.b16 %v5117, %v5116
    %v5200 = vpack.c.b16 %v5119, %v5118
    %v5201 = vpack.c.b16 %v5121, %v5120
    %v5202 = vpack.c.b16 %v5123, %v5122
    %v5203 = vpack.c.b16 %v5125, %v5124
    %v5204 = vpack.c.b16 %v5127, %v5126
    %v5205 = vpack.c.b16 %v5129, %v5128
    %v5206 = vpack.c.b16 %v5131, %v5130
    %v5207 = vpack.c.b16 %v5133, %v5132
    %v5208 = vpack.c.b16 %v5135, %v5134
    %v5209 = vpack.c.b16 %v5137, %v5136
    %v5210 = vpack.c.b16 %v5139, %v5138
    %v5211 = vpack.c.b16 %v5141, %v5140
    %v5212 = vpack.c.b16 %v5143, %v5142
    %v5213 = vpack.c.b16 %v5145, %v5144
    %v5214 = vpack.c.b16 %v5147, %v5146
    %v5215 = vpack.c.b16 %v5149, %v5148
    %v5216 = vpack.c.b16 %v5151, %v5150
    %v5217 = vpack.c.b16 %v5153, %v5152
    %v5218 = vpack.c.b16 %v5155, %v5154
    %v5219 = vpack.c.b16 %v5157, %v5156
    %v5220 = vpack.c.b16 %v5159, %v5158
    %v5221 = vpack.c.b16 %v5161, %v5160
    %v5222 = vpack.c.b16 %v5163, %v5162
    %v5223 = vpack.c.b16 %v5165, %v5164
    %v5224 = vpack.c.b16 %v5167, %v5166
    %v5225 = vpack.c.b16 %v5169, %v5168
    %v5226 = vpack.c.b16 %v5171, %v5170
    %v5227 = vpack.c.b16 %v5173, %v5172
    %v5228 = vpack.c.b16 %v5175, %v5174
    %v5229 = vpack.c.b16 %v5177, %v5176
    %v5230 = vpack.c.b16 %v5179, %v5178
    %v5231 = vpack.c.b16 %v5181, %v5180
    %v5232 = vpack.c.b16 %v5183, %v5182
    %v5233 = vpack.c.b16 %v5185, %v5184
    %v5234 = vpack.c.b16 %v5187, %v5186
    %v5235 = vpack.c.b16 %v5189, %v5188
    %v5236 = vpack.c.b16 %v5191, %v5190
    %v5237 = vpack.c.b16 %v5193, %v5192
    %v5282 = vsel %vm1708, %v4928, 0
    %v5285 = vand.u32 %v5237, %v1715
    %5287 = vmatprep.subr.bf16.mxu0 0
    %5288 = vmatpush1.bf16.msra.mxu0 %v5201
    %5289 = vmatprep.subr.bf16.mxu0 0
    %5290 = vmatpush1.bf16.msra.mxu0 %v5200
    %5291 = vmatprep.subr.bf16.mxu0 0
    %5292 = vmatpush1.bf16.msra.mxu0 %v5199
    %5293 = vmatprep.subr.bf16.mxu0 0
    %5294 = vmatpush1.bf16.msra.mxu0 %v5198
    %5295 = vmatprep.subr.bf16.mxu0 0
    %5296 = vmatpush1.bf16.msra.mxu0 %v5197
    %5297 = vmatprep.subr.bf16.mxu0 0
    %5298 = vmatpush1.bf16.msra.mxu0 %v5196
    %5299 = vmatprep.subr.bf16.mxu0 0
    %5300 = vmatpush1.bf16.msra.mxu0 %v5195
    %5301 = vmatprep.subr.bf16.mxu0 0
    %5302 = vmatpush1.bf16.msra.mxu0 %v5194
    %5303 = vmatprep.subr.bf16.mxu0 0
    %5304 = vmatpush2.bf16.msra.mxu0 %v5209
    %5305 = vmatprep.subr.bf16.mxu0 0
    %5306 = vmatpush2.bf16.msra.mxu0 %v5208
    %5307 = vmatprep.subr.bf16.mxu0 0
    %5308 = vmatpush2.bf16.msra.mxu0 %v5207
    %5309 = vmatprep.subr.bf16.mxu0 0
    %5310 = vmatpush2.bf16.msra.mxu0 %v5206
    %5311 = vmatprep.subr.bf16.mxu0 0
    %5312 = vmatpush2.bf16.msra.mxu0 %v5205
    %5313 = vmatprep.subr.bf16.mxu0 0
    %5314 = vmatpush2.bf16.msra.mxu0 %v5204
    %5315 = vmatprep.subr.bf16.mxu0 0
    %5316 = vmatpush2.bf16.msra.mxu0 %v5203
    %5317 = vmatprep.subr.bf16.mxu0 0
    %5318 = vmatpush2.bf16.msra.mxu0 %v5202
    %5319 = vmatprep.mubr.bf16.mxu0 %v4924
    %5320 = vmatmul.mubr.bf16.gmra.mxu0 %v4923
    %v5321 = vpop.f32.mrf.mxu0
    %v5322 = vadd.f32 0.0, %v5321
    %v5323 = vpop.f32.mrf.mxu0
    %v5324 = vpop.f32.mrf.mxu0
    %v5325 = vpop.f32.mrf.mxu0
    %5326 = vdwg.mxu0
    %5327 = vmatprep.subr.bf16.mxu0 0
    %5328 = vmatpush1.bf16.msra.mxu0 %v5217
    %5329 = vmatprep.subr.bf16.mxu0 0
    %5330 = vmatpush1.bf16.msra.mxu0 %v5216
    %5331 = vmatprep.subr.bf16.mxu0 0
    %5332 = vmatpush1.bf16.msra.mxu0 %v5215
    %5333 = vmatprep.subr.bf16.mxu0 0
    %5334 = vmatpush1.bf16.msra.mxu0 %v5214
    %5335 = vmatprep.subr.bf16.mxu0 0
    %5336 = vmatpush1.bf16.msra.mxu0 %v5213
    %5337 = vmatprep.subr.bf16.mxu0 0
    %5338 = vmatpush1.bf16.msra.mxu0 %v5212
    %5339 = vmatprep.subr.bf16.mxu0 0
    %5340 = vmatpush1.bf16.msra.mxu0 %v5211
    %5341 = vmatprep.subr.bf16.mxu0 0
    %5342 = vmatpush1.bf16.msra.mxu0 %v5210
    %5343 = vmatprep.subr.bf16.mxu0 0
    %5344 = vmatpush2.bf16.msra.mxu0 %v5225
    %5345 = vmatprep.subr.bf16.mxu0 0
    %5346 = vmatpush2.bf16.msra.mxu0 %v5224
    %5347 = vmatprep.subr.bf16.mxu0 0
    %5348 = vmatpush2.bf16.msra.mxu0 %v5223
    %5349 = vmatprep.subr.bf16.mxu0 0
    %5350 = vmatpush2.bf16.msra.mxu0 %v5222
    %5351 = vmatprep.subr.bf16.mxu0 0
    %5352 = vmatpush2.bf16.msra.mxu0 %v5221
    %5353 = vmatprep.subr.bf16.mxu0 0
    %5354 = vmatpush2.bf16.msra.mxu0 %v5220
    %5355 = vmatprep.subr.bf16.mxu0 0
    %5356 = vmatpush2.bf16.msra.mxu0 %v5219
    %5357 = vmatprep.subr.bf16.mxu0 0
    %5358 = vmatpush2.bf16.msra.mxu0 %v5218
    %5359 = vmatprep.mubr.bf16.mxu0 %v4926
    %5360 = vmatmul.mubr.bf16.gmra.mxu0 %v4925
    %v5361 = vpop.f32.mrf.mxu0
    %v5362 = vadd.f32 %v5322, %v5361
    %v5363 = vpop.f32.mrf.mxu0
    %v5364 = vpop.f32.mrf.mxu0
    %v5365 = vpop.f32.mrf.mxu0
    %5366 = vdwg.mxu0
    %5367 = vmatprep.subr.bf16.mxu0 0
    %5368 = vmatpush1.bf16.msra.mxu0 %v5233
    %5369 = vmatprep.subr.bf16.mxu0 0
    %5370 = vmatpush1.bf16.msra.mxu0 %v5232
    %5371 = vmatprep.subr.bf16.mxu0 0
    %5372 = vmatpush1.bf16.msra.mxu0 %v5231
    %5373 = vmatprep.subr.bf16.mxu0 0
    %5374 = vmatpush1.bf16.msra.mxu0 %v5230
    %5375 = vmatprep.subr.bf16.mxu0 0
    %5376 = vmatpush1.bf16.msra.mxu0 %v5229
    %5377 = vmatprep.subr.bf16.mxu0 0
    %5378 = vmatpush1.bf16.msra.mxu0 %v5228
    %5379 = vmatprep.subr.bf16.mxu0 0
    %5380 = vmatpush1.bf16.msra.mxu0 %v5227
    %5381 = vmatprep.subr.bf16.mxu0 0
    %5382 = vmatpush1.bf16.msra.mxu0 %v5226
    %5383 = vmatprep.subr.bf16.mxu0 0
    %5384 = vmatpush2.bf16.msra.mxu0 0
    %5385 = vmatprep.subr.bf16.mxu0 0
    %5386 = vmatpush2.bf16.msra.mxu0 0
    %5387 = vmatprep.subr.bf16.mxu0 0
    %5388 = vmatpush2.bf16.msra.mxu0 0
    %5389 = vmatprep.subr.bf16.mxu0 0
    %5390 = vmatpush2.bf16.msra.mxu0 0
    %5391 = vmatprep.subr.bf16.mxu0 0
    %5392 = vmatpush2.bf16.msra.mxu0 %v5285
    %5393 = vmatprep.subr.bf16.mxu0 0
    %5394 = vmatpush2.bf16.msra.mxu0 %v5236
    %5395 = vmatprep.subr.bf16.mxu0 0
    %5396 = vmatpush2.bf16.msra.mxu0 %v5235
    %5397 = vmatprep.subr.bf16.mxu0 0
    %5398 = vmatpush2.bf16.msra.mxu0 %v5234
    %5399 = vmatprep.mubr.bf16.mxu0 %v5282
    %5400 = vmatmul.mubr.bf16.gmra.mxu0 %v4927
    %v5401 = vpop.f32.mrf.mxu0
    %v5402 = vadd.f32 %v5362, %v5401
    %v5403 = vpop.f32.mrf.mxu0
    %v5404 = vpop.f32.mrf.mxu0
    %v5405 = vpop.f32.mrf.mxu0
    %5406 = vdwg.mxu0
    %v5407 = vadd.f32 %v4347, %v5402
    %s5408 = sld [smem:[#allocation2 + $0x2d]]
    %p5410 = scmp.ne.f32.partialorder %s5408, %s5408
    %s5411 = sshrl.u32 %s5408, 16
    %s5412 = sand.u32 %s5411, 1
    %s5413 = sadd.s32 32767, %s5412
    %s5414 = sadd.s32 %s5408, %s5413
    %s5415 = sand.u32 %s5414, 4294901760
    %s5416 = scalar_select %p5410, 2143289344, %s5415
    %s5418 = sshrl.u32 %s5416, 16
    %s5419 = sld [smem:[#allocation2 + $0x2e]]
    %p5421 = scmp.ne.f32.partialorder %s5419, %s5419
    %s5422 = sshrl.u32 %s5419, 16
    %s5423 = sand.u32 %s5422, 1
    %s5424 = sadd.s32 32767, %s5423
    %s5425 = sadd.s32 %s5419, %s5424
    %s5426 = sand.u32 %s5425, 4294901760
    %s5427 = scalar_select %p5421, 2143289344, %s5426
    %s5429 = sshrl.u32 %s5427, 16
    %s5430 = sld [smem:[#allocation2 + $0x2f]]
    %p5432 = scmp.ne.f32.partialorder %s5430, %s5430
    %s5433 = sshrl.u32 %s5430, 16
    %s5434 = sand.u32 %s5433, 1
    %s5435 = sadd.s32 32767, %s5434
    %s5436 = sadd.s32 %s5430, %s5435
    %s5437 = sand.u32 %s5436, 4294901760
    %s5438 = scalar_select %p5432, 2143289344, %s5437
    %s5440 = sshrl.u32 %s5438, 16
    %s5441 = sld [smem:[#allocation2 + $0x30]]
    %p5443 = scmp.ne.f32.partialorder %s5441, %s5441
    %s5444 = sshrl.u32 %s5441, 16
    %s5445 = sand.u32 %s5444, 1
    %s5446 = sadd.s32 32767, %s5445
    %s5447 = sadd.s32 %s5441, %s5446
    %s5448 = sand.u32 %s5447, 4294901760
    %s5449 = scalar_select %p5443, 2143289344, %s5448
    %s5451 = sshrl.u32 %s5449, 16
    %s5452 = sld [smem:[#allocation2 + $0x31]]
    %p5454 = scmp.ne.f32.partialorder %s5452, %s5452
    %s5455 = sshrl.u32 %s5452, 16
    %s5456 = sand.u32 %s5455, 1
    %s5457 = sadd.s32 32767, %s5456
    %s5458 = sadd.s32 %s5452, %s5457
    %s5459 = sand.u32 %s5458, 4294901760
    %s5460 = scalar_select %p5454, 2143289344, %s5459
    %s5462 = sshrl.u32 %s5460, 16
    %s5463 = sld [smem:[#allocation2 + $0x32]]
    %p5465 = scmp.ne.f32.partialorder %s5463, %s5463
    %s5466 = sshrl.u32 %s5463, 16
    %s5467 = sand.u32 %s5466, 1
    %s5468 = sadd.s32 32767, %s5467
    %s5469 = sadd.s32 %s5463, %s5468
    %s5470 = sand.u32 %s5469, 4294901760
    %s5471 = scalar_select %p5465, 2143289344, %s5470
    %s5473 = sshrl.u32 %s5471, 16
    %s5474 = sld [smem:[#allocation2 + $0x33]]
    %p5476 = scmp.ne.f32.partialorder %s5474, %s5474
    %s5477 = sshrl.u32 %s5474, 16
    %s5478 = sand.u32 %s5477, 1
    %s5479 = sadd.s32 32767, %s5478
    %s5480 = sadd.s32 %s5474, %s5479
    %s5481 = sand.u32 %s5480, 4294901760
    %s5482 = scalar_select %p5476, 2143289344, %s5481
    %s5484 = sshrl.u32 %s5482, 16
    %s5485 = sld [smem:[#allocation2 + $0x34]]
    %p5487 = scmp.ne.f32.partialorder %s5485, %s5485
    %s5488 = sshrl.u32 %s5485, 16
    %s5489 = sand.u32 %s5488, 1
    %s5490 = sadd.s32 32767, %s5489
    %s5491 = sadd.s32 %s5485, %s5490
    %s5492 = sand.u32 %s5491, 4294901760
    %s5493 = scalar_select %p5487, 2143289344, %s5492
    %s5495 = sshrl.u32 %s5493, 16
    %s5496 = sld [smem:[#allocation2 + $0x35]]
    %p5498 = scmp.ne.f32.partialorder %s5496, %s5496
    %s5499 = sshrl.u32 %s5496, 16
    %s5500 = sand.u32 %s5499, 1
    %s5501 = sadd.s32 32767, %s5500
    %s5502 = sadd.s32 %s5496, %s5501
    %s5503 = sand.u32 %s5502, 4294901760
    %s5504 = scalar_select %p5498, 2143289344, %s5503
    %s5506 = sshrl.u32 %s5504, 16
    %s5507 = sshll.u32 %s5418, 16
    %s5508 = sor.u32 %s5418, %s5507
    %v5509 = vstv %s5508
    %v5511 = vmul.bf16 %v91, %v5509
    %v5512 = vmul.bf16 %v92, %v5509
    %v5513 = vmul.bf16 %v93, %v5509
    %v5514 = vmul.bf16 %v94, %v5509
    %v5515 = vmul.bf16 %v95, %v5509
    %v5516 = vmul.bf16 %v96, %v5509
    %s5517 = sshll.u32 %s5429, 16
    %s5518 = sor.u32 %s5429, %s5517
    %v5519 = vstv %s5518
    %v5521 = vmul.bf16 %v91, %v5519
    %v5522 = vmul.bf16 %v92, %v5519
    %v5523 = vmul.bf16 %v93, %v5519
    %v5524 = vmul.bf16 %v94, %v5519
    %v5525 = vmul.bf16 %v95, %v5519
    %v5526 = vmul.bf16 %v96, %v5519
    %5533 = vrot.lane.b32.xlu0 %v5521, 127
    %v5534 = vpop.permute.xlu0 %5533
    %5535 = vrot.lane.b32.xlu0 %v5522, 127
    %v5536 = vpop.permute.xlu0 %5535
    %5537 = vrot.lane.b32.xlu0 %v5523, 127
    %v5538 = vpop.permute.xlu0 %5537
    %5539 = vrot.lane.b32.xlu0 %v5524, 127
    %v5540 = vpop.permute.xlu0 %5539
    %5541 = vrot.lane.b32.xlu0 %v5525, 127
    %v5542 = vpop.permute.xlu0 %5541
    %5543 = vrot.lane.b32.xlu0 %v5526, 127
    %v5544 = vpop.permute.xlu0 %5543
    %v5545 = vsel %vm235, %v5534, %v5536
    %v5546 = vsel %vm235, %v5536, %v5538
    %v5547 = vsel %vm235, %v5538, %v5540
    %v5548 = vsel %vm235, %v5540, %v5542
    %v5549 = vsel %vm235, %v5542, %v5544
    %v5556 = vadd.bf16 %v5511, %v5545
    %v5557 = vadd.bf16 %v5512, %v5546
    %v5558 = vadd.bf16 %v5513, %v5547
    %v5559 = vadd.bf16 %v5514, %v5548
    %v5560 = vadd.bf16 %v5515, %v5549
    %v5561 = vadd.bf16 %v5516, %v5544
    %s5562 = sshll.u32 %s5440, 16
    %s5563 = sor.u32 %s5440, %s5562
    %v5564 = vstv %s5563
    %v5566 = vmul.bf16 %v91, %v5564
    %v5567 = vmul.bf16 %v92, %v5564
    %v5568 = vmul.bf16 %v93, %v5564
    %v5569 = vmul.bf16 %v94, %v5564
    %v5570 = vmul.bf16 %v95, %v5564
    %v5571 = vmul.bf16 %v96, %v5564
    %5578 = vrot.lane.b32.xlu0 %v5566, 126
    %v5579 = vpop.permute.xlu0 %5578
    %5580 = vrot.lane.b32.xlu0 %v5567, 126
    %v5581 = vpop.permute.xlu0 %5580
    %5582 = vrot.lane.b32.xlu0 %v5568, 126
    %v5583 = vpop.permute.xlu0 %5582
    %5584 = vrot.lane.b32.xlu0 %v5569, 126
    %v5585 = vpop.permute.xlu0 %5584
    %5586 = vrot.lane.b32.xlu0 %v5570, 126
    %v5587 = vpop.permute.xlu0 %5586
    %5588 = vrot.lane.b32.xlu0 %v5571, 126
    %v5589 = vpop.permute.xlu0 %5588
    %v5590 = vsel %vm281, %v5579, %v5581
    %v5591 = vsel %vm281, %v5581, %v5583
    %v5592 = vsel %vm281, %v5583, %v5585
    %v5593 = vsel %vm281, %v5585, %v5587
    %v5594 = vsel %vm281, %v5587, %v5589
    %v5601 = vadd.bf16 %v5556, %v5590
    %v5602 = vadd.bf16 %v5557, %v5591
    %v5603 = vadd.bf16 %v5558, %v5592
    %v5604 = vadd.bf16 %v5559, %v5593
    %v5605 = vadd.bf16 %v5560, %v5594
    %v5606 = vadd.bf16 %v5561, %v5589
    %s5607 = sshll.u32 %s5451, 16
    %s5608 = sor.u32 %s5451, %s5607
    %v5609 = vstv %s5608
    %v5611 = vmul.bf16 %v91, %v5609
    %v5612 = vmul.bf16 %v92, %v5609
    %v5613 = vmul.bf16 %v93, %v5609
    %v5614 = vmul.bf16 %v94, %v5609
    %v5615 = vmul.bf16 %v95, %v5609
    %v5616 = vmul.bf16 %v96, %v5609
    %5623 = vrot.lane.b32.xlu0 %v5611, 100
    %v5624 = vpop.permute.xlu0 %5623
    %5625 = vrot.lane.b32.xlu0 %v5612, 100
    %v5626 = vpop.permute.xlu0 %5625
    %5627 = vrot.lane.b32.xlu0 %v5613, 100
    %v5628 = vpop.permute.xlu0 %5627
    %5629 = vrot.lane.b32.xlu0 %v5614, 100
    %v5630 = vpop.permute.xlu0 %5629
    %5631 = vrot.lane.b32.xlu0 %v5615, 100
    %v5632 = vpop.permute.xlu0 %5631
    %5633 = vrot.lane.b32.xlu0 %v5616, 100
    %v5634 = vpop.permute.xlu0 %5633
    %v5635 = vsel %vm327, %v5624, %v5626
    %v5636 = vsel %vm327, %v5626, %v5628
    %v5637 = vsel %vm327, %v5628, %v5630
    %v5638 = vsel %vm327, %v5630, %v5632
    %v5639 = vsel %vm327, %v5632, %v5634
    %v5646 = vadd.bf16 %v5601, %v5635
    %v5647 = vadd.bf16 %v5602, %v5636
    %v5648 = vadd.bf16 %v5603, %v5637
    %v5649 = vadd.bf16 %v5604, %v5638
    %v5650 = vadd.bf16 %v5605, %v5639
    %v5651 = vadd.bf16 %v5606, %v5634
    %s5652 = sshll.u32 %s5462, 16
    %s5653 = sor.u32 %s5462, %s5652
    %v5654 = vstv %s5653
    %v5656 = vmul.bf16 %v91, %v5654
    %v5657 = vmul.bf16 %v92, %v5654
    %v5658 = vmul.bf16 %v93, %v5654
    %v5659 = vmul.bf16 %v94, %v5654
    %v5660 = vmul.bf16 %v95, %v5654
    %v5661 = vmul.bf16 %v96, %v5654
    %5668 = vrot.lane.b32.xlu0 %v5656, 99
    %v5669 = vpop.permute.xlu0 %5668
    %5670 = vrot.lane.b32.xlu0 %v5657, 99
    %v5671 = vpop.permute.xlu0 %5670
    %5672 = vrot.lane.b32.xlu0 %v5658, 99
    %v5673 = vpop.permute.xlu0 %5672
    %5674 = vrot.lane.b32.xlu0 %v5659, 99
    %v5675 = vpop.permute.xlu0 %5674
    %5676 = vrot.lane.b32.xlu0 %v5660, 99
    %v5677 = vpop.permute.xlu0 %5676
    %5678 = vrot.lane.b32.xlu0 %v5661, 99
    %v5679 = vpop.permute.xlu0 %5678
    %v5680 = vsel %vm373, %v5669, %v5671
    %v5681 = vsel %vm373, %v5671, %v5673
    %v5682 = vsel %vm373, %v5673, %v5675
    %v5683 = vsel %vm373, %v5675, %v5677
    %v5684 = vsel %vm373, %v5677, %v5679
    %v5691 = vadd.bf16 %v5646, %v5680
    %v5692 = vadd.bf16 %v5647, %v5681
    %v5693 = vadd.bf16 %v5648, %v5682
    %v5694 = vadd.bf16 %v5649, %v5683
    %v5695 = vadd.bf16 %v5650, %v5684
    %v5696 = vadd.bf16 %v5651, %v5679
    %s5697 = sshll.u32 %s5473, 16
    %s5698 = sor.u32 %s5473, %s5697
    %v5699 = vstv %s5698
    %v5701 = vmul.bf16 %v91, %v5699
    %v5702 = vmul.bf16 %v92, %v5699
    %v5703 = vmul.bf16 %v93, %v5699
    %v5704 = vmul.bf16 %v94, %v5699
    %v5705 = vmul.bf16 %v95, %v5699
    %v5706 = vmul.bf16 %v96, %v5699
    %5713 = vrot.lane.b32.xlu0 %v5701, 98
    %v5714 = vpop.permute.xlu0 %5713
    %5715 = vrot.lane.b32.xlu0 %v5702, 98
    %v5716 = vpop.permute.xlu0 %5715
    %5717 = vrot.lane.b32.xlu0 %v5703, 98
    %v5718 = vpop.permute.xlu0 %5717
    %5719 = vrot.lane.b32.xlu0 %v5704, 98
    %v5720 = vpop.permute.xlu0 %5719
    %5721 = vrot.lane.b32.xlu0 %v5705, 98
    %v5722 = vpop.permute.xlu0 %5721
    %5723 = vrot.lane.b32.xlu0 %v5706, 98
    %v5724 = vpop.permute.xlu0 %5723
    %v5725 = vsel %vm419, %v5714, %v5716
    %v5726 = vsel %vm419, %v5716, %v5718
    %v5727 = vsel %vm419, %v5718, %v5720
    %v5728 = vsel %vm419, %v5720, %v5722
    %v5729 = vsel %vm419, %v5722, %v5724
    %v5736 = vadd.bf16 %v5691, %v5725
    %v5737 = vadd.bf16 %v5692, %v5726
    %v5738 = vadd.bf16 %v5693, %v5727
    %v5739 = vadd.bf16 %v5694, %v5728
    %v5740 = vadd.bf16 %v5695, %v5729
    %v5741 = vadd.bf16 %v5696, %v5724
    %s5742 = sshll.u32 %s5484, 16
    %s5743 = sor.u32 %s5484, %s5742
    %v5744 = vstv %s5743
    %v5746 = vmul.bf16 %v91, %v5744
    %v5747 = vmul.bf16 %v92, %v5744
    %v5748 = vmul.bf16 %v93, %v5744
    %v5749 = vmul.bf16 %v94, %v5744
    %v5750 = vmul.bf16 %v95, %v5744
    %v5751 = vmul.bf16 %v96, %v5744
    %v5752 = vmul.bf16 %v97, %v5744
    %5760 = vrot.lane.b32.xlu0 %v5746, 72
    %v5761 = vpop.permute.xlu0 %5760
    %5762 = vrot.lane.b32.xlu0 %v5747, 72
    %v5763 = vpop.permute.xlu0 %5762
    %5764 = vrot.lane.b32.xlu0 %v5748, 72
    %v5765 = vpop.permute.xlu0 %5764
    %5766 = vrot.lane.b32.xlu0 %v5749, 72
    %v5767 = vpop.permute.xlu0 %5766
    %5768 = vrot.lane.b32.xlu0 %v5750, 72
    %v5769 = vpop.permute.xlu0 %5768
    %5770 = vrot.lane.b32.xlu0 %v5751, 72
    %v5771 = vpop.permute.xlu0 %5770
    %5772 = vrot.lane.b32.xlu0 %v5752, 72
    %v5773 = vpop.permute.xlu0 %5772
    %v5774 = vsel %vm469, %v5761, %v5763
    %v5775 = vsel %vm469, %v5763, %v5765
    %v5776 = vsel %vm469, %v5765, %v5767
    %v5777 = vsel %vm469, %v5767, %v5769
    %v5778 = vsel %vm469, %v5769, %v5771
    %v5779 = vsel %vm469, %v5771, %v5773
    %v5786 = vadd.bf16 %v5736, %v5774
    %v5787 = vadd.bf16 %v5737, %v5775
    %v5788 = vadd.bf16 %v5738, %v5776
    %v5789 = vadd.bf16 %v5739, %v5777
    %v5790 = vadd.bf16 %v5740, %v5778
    %v5791 = vadd.bf16 %v5741, %v5779
    %s5792 = sshll.u32 %s5495, 16
    %s5793 = sor.u32 %s5495, %s5792
    %v5794 = vstv %s5793
    %v5796 = vmul.bf16 %v91, %v5794
    %v5797 = vmul.bf16 %v92, %v5794
    %v5798 = vmul.bf16 %v93, %v5794
    %v5799 = vmul.bf16 %v94, %v5794
    %v5800 = vmul.bf16 %v95, %v5794
    %v5801 = vmul.bf16 %v96, %v5794
    %v5802 = vmul.bf16 %v97, %v5794
    %5810 = vrot.lane.b32.xlu0 %v5796, 71
    %v5811 = vpop.permute.xlu0 %5810
    %5812 = vrot.lane.b32.xlu0 %v5797, 71
    %v5813 = vpop.permute.xlu0 %5812
    %5814 = vrot.lane.b32.xlu0 %v5798, 71
    %v5815 = vpop.permute.xlu0 %5814
    %5816 = vrot.lane.b32.xlu0 %v5799, 71
    %v5817 = vpop.permute.xlu0 %5816
    %5818 = vrot.lane.b32.xlu0 %v5800, 71
    %v5819 = vpop.permute.xlu0 %5818
    %5820 = vrot.lane.b32.xlu0 %v5801, 71
    %v5821 = vpop.permute.xlu0 %5820
    %5822 = vrot.lane.b32.xlu0 %v5802, 71
    %v5823 = vpop.permute.xlu0 %5822
    %v5824 = vsel %vm520, %v5811, %v5813
    %v5825 = vsel %vm520, %v5813, %v5815
    %v5826 = vsel %vm520, %v5815, %v5817
    %v5827 = vsel %vm520, %v5817, %v5819
    %v5828 = vsel %vm520, %v5819, %v5821
    %v5829 = vsel %vm520, %v5821, %v5823
    %v5836 = vadd.bf16 %v5786, %v5824
    %v5837 = vadd.bf16 %v5787, %v5825
    %v5838 = vadd.bf16 %v5788, %v5826
    %v5839 = vadd.bf16 %v5789, %v5827
    %v5840 = vadd.bf16 %v5790, %v5828
    %v5841 = vadd.bf16 %v5791, %v5829
    %s5842 = sshll.u32 %s5506, 16
    %s5843 = sor.u32 %s5506, %s5842
    %v5844 = vstv %s5843
    %v5846 = vmul.bf16 %v91, %v5844
    %v5847 = vmul.bf16 %v92, %v5844
    %v5848 = vmul.bf16 %v93, %v5844
    %v5849 = vmul.bf16 %v94, %v5844
    %v5850 = vmul.bf16 %v95, %v5844
    %v5851 = vmul.bf16 %v96, %v5844
    %v5852 = vmul.bf16 %v97, %v5844
    %5860 = vrot.lane.b32.xlu0 %v5846, 70
    %v5861 = vpop.permute.xlu0 %5860
    %5862 = vrot.lane.b32.xlu0 %v5847, 70
    %v5863 = vpop.permute.xlu0 %5862
    %5864 = vrot.lane.b32.xlu0 %v5848, 70
    %v5865 = vpop.permute.xlu0 %5864
    %5866 = vrot.lane.b32.xlu0 %v5849, 70
    %v5867 = vpop.permute.xlu0 %5866
    %5868 = vrot.lane.b32.xlu0 %v5850, 70
    %v5869 = vpop.permute.xlu0 %5868
    %5870 = vrot.lane.b32.xlu0 %v5851, 70
    %v5871 = vpop.permute.xlu0 %5870
    %5872 = vrot.lane.b32.xlu0 %v5852, 70
    %v5873 = vpop.permute.xlu0 %5872
    %v5874 = vsel %vm571, %v5861, %v5863
    %v5875 = vsel %vm571, %v5863, %v5865
    %v5876 = vsel %vm571, %v5865, %v5867
    %v5877 = vsel %vm571, %v5867, %v5869
    %v5878 = vsel %vm571, %v5869, %v5871
    %v5879 = vsel %vm571, %v5871, %v5873
    %v5886 = vadd.bf16 %v5836, %v5874
    %v5887 = vadd.bf16 %v5837, %v5875
    %v5888 = vadd.bf16 %v5838, %v5876
    %v5889 = vadd.bf16 %v5839, %v5877
    %v5890 = vadd.bf16 %v5840, %v5878
    %v5891 = vadd.bf16 %v5841, %v5879
    %5898 = vrot.lane.b32.xlu0 %v5886, 127
    %v5899 = vpop.permute.xlu0 %5898
    %5900 = vrot.lane.b32.xlu0 %v5887, 127
    %v5901 = vpop.permute.xlu0 %5900
    %5902 = vrot.lane.b32.xlu0 %v5888, 127
    %v5903 = vpop.permute.xlu0 %5902
    %5904 = vrot.lane.b32.xlu0 %v5889, 127
    %v5905 = vpop.permute.xlu0 %5904
    %5906 = vrot.lane.b32.xlu0 %v5890, 127
    %v5907 = vpop.permute.xlu0 %5906
    %5908 = vrot.lane.b32.xlu0 %v5891, 127
    %v5909 = vpop.permute.xlu0 %5908
    %v5910 = vsel %vm235, %v5899, %v5901
    %v5911 = vsel %vm235, %v5901, %v5903
    %v5912 = vsel %vm235, %v5903, %v5905
    %v5913 = vsel %vm235, %v5905, %v5907
    %v5914 = vsel %vm235, %v5907, %v5909
    %v5921 = vmax.bf16 %v5886, %v5910
    %v5922 = vmax.bf16 %v5887, %v5911
    %v5923 = vmax.bf16 %v5888, %v5912
    %v5924 = vmax.bf16 %v5889, %v5913
    %v5925 = vmax.bf16 %v5890, %v5914
    %v5926 = vmax.bf16 %v5891, %v5909
    %5933 = vrot.lane.b32.xlu0 %v5921, 100
    %v5934 = vpop.permute.xlu0 %5933
    %5935 = vrot.lane.b32.xlu0 %v5922, 100
    %v5936 = vpop.permute.xlu0 %5935
    %5937 = vrot.lane.b32.xlu0 %v5923, 100
    %v5938 = vpop.permute.xlu0 %5937
    %5939 = vrot.lane.b32.xlu0 %v5924, 100
    %v5940 = vpop.permute.xlu0 %5939
    %5941 = vrot.lane.b32.xlu0 %v5925, 100
    %v5942 = vpop.permute.xlu0 %5941
    %5943 = vrot.lane.b32.xlu0 %v5926, 100
    %v5944 = vpop.permute.xlu0 %5943
    %v5945 = vsel %vm327, %v5934, %v5936
    %v5946 = vsel %vm327, %v5936, %v5938
    %v5947 = vsel %vm327, %v5938, %v5940
    %v5948 = vsel %vm327, %v5940, %v5942
    %v5949 = vsel %vm327, %v5942, %v5944
    %v5956 = vmax.bf16 %v5921, %v5945
    %v5957 = vmax.bf16 %v5922, %v5946
    %v5958 = vmax.bf16 %v5923, %v5947
    %v5959 = vmax.bf16 %v5924, %v5948
    %v5960 = vmax.bf16 %v5925, %v5949
    %v5961 = vmax.bf16 %v5926, %v5944
    %s5962 = sld [smem:[#allocation5 + $0x5]]
    %p5964 = scmp.ne.f32.partialorder %s5962, %s5962
    %s5965 = sshrl.u32 %s5962, 16
    %s5966 = sand.u32 %s5965, 1
    %s5967 = sadd.s32 32767, %s5966
    %s5968 = sadd.s32 %s5962, %s5967
    %s5969 = sand.u32 %s5968, 4294901760
    %s5970 = scalar_select %p5964, 2143289344, %s5969
    %s5972 = sshrl.u32 %s5970, 16
    %s5973 = sshll.u32 %s5972, 16
    %s5974 = sor.u32 %s5972, %s5973
    %v5975 = vstv %s5974
    %v5977 = vadd.bf16 %v5956, %v5975
    %v5978 = vadd.bf16 %v5957, %v5975
    %v5979 = vadd.bf16 %v5958, %v5975
    %v5980 = vadd.bf16 %v5959, %v5975
    %v5981 = vadd.bf16 %v5960, %v5975
    %v5982 = vadd.bf16 %v5961, %v5975
    %v5983 = vmax.bf16 %v5977, 0
    %v5984 = vmax.bf16 %v5978, 0
    %v5985 = vmax.bf16 %v5979, 0
    %v5986 = vmax.bf16 %v5980, 0
    %v5987 = vmax.bf16 %v5981, 0
    %v5988 = vmax.bf16 %v5982, 0
    %s5989 = scalar_lea.vmem %s3, 1760
    %v5990 = vld [vmem:[%s5989] sm:$0xf]
    %v5991 = vld [vmem:[%s5989 + $0x4] sm:$0xf]
    %v5992 = vld [vmem:[%s5989 + $0x8] sm:$0xf]
    %v5993 = vld [vmem:[%s5989 + $0xc] sm:$0xf]
    %v5994 = vld [vmem:[%s5989 + $0x10] sm:$0xf]
    %v5995 = vld [vmem:[%s5989 + $0x14] sm:$0xf]
    %v5996 = vld [vmem:[%s5989 + $0x18] sm:$0xf]
    %v5997 = vld [vmem:[%s5989 + $0x1c] sm:$0xf]
    %v5998 = vld [vmem:[%s5989 + $0x20] sm:$0xf]
    %v5999 = vld [vmem:[%s5989 + $0x24] sm:$0xf]
    %v6000 = vld [vmem:[%s5989 + $0x28] sm:$0xf]
    %v6001 = vld [vmem:[%s5989 + $0x2c] sm:$0xf]
    %v6002 = vld [vmem:[%s5989 + $0x30] sm:$0xf]
    %v6003 = vld [vmem:[%s5989 + $0x34] sm:$0xf]
    %v6004 = vld [vmem:[%s5989 + $0x38] sm:$0xf]
    %v6005 = vld [vmem:[%s5989 + $0x3c] sm:$0xf]
    %v6006 = vld [vmem:[%s5989 + $0x40] sm:$0xf]
    %v6007 = vld [vmem:[%s5989 + $0x44] sm:$0xf]
    %v6008 = vld [vmem:[%s5989 + $0x48] sm:$0xf]
    %v6009 = vld [vmem:[%s5989 + $0x4c] sm:$0xf]
    %v6010 = vld [vmem:[%s5989 + $0x50] sm:$0xf]
    %v6011 = vld [vmem:[%s5989 + $0x54] sm:$0xf]
    %v6012 = vld [vmem:[%s5989 + $0x58] sm:$0xf]
    %v6013 = vld [vmem:[%s5989 + $0x5c] sm:$0xf]
    %v6014 = vld [vmem:[%s5989 + $0x60] sm:$0xf]
    %v6015 = vld [vmem:[%s5989 + $0x64] sm:$0xf]
    %v6016 = vld [vmem:[%s5989 + $0x68] sm:$0xf]
    %v6017 = vld [vmem:[%s5989 + $0x6c] sm:$0xf]
    %v6018 = vld [vmem:[%s5989 + $0x70] sm:$0xf]
    %v6019 = vld [vmem:[%s5989 + $0x74] sm:$0xf]
    %v6020 = vld [vmem:[%s5989 + $0x78] sm:$0xf]
    %v6021 = vld [vmem:[%s5989 + $0x7c] sm:$0xf]
    %v6022 = vld [vmem:[%s5989 + $0x80] sm:$0xf]
    %v6023 = vld [vmem:[%s5989 + $0x84] sm:$0xf]
    %v6024 = vld [vmem:[%s5989 + $0x88] sm:$0xf]
    %v6025 = vld [vmem:[%s5989 + $0x8c] sm:$0xf]
    %v6026 = vld [vmem:[%s5989 + $0x90] sm:$0xf]
    %v6027 = vld [vmem:[%s5989 + $0x94] sm:$0xf]
    %v6028 = vld [vmem:[%s5989 + $0x98] sm:$0xf]
    %v6029 = vld [vmem:[%s5989 + $0x9c] sm:$0xf]
    %v6030 = vld [vmem:[%s5989 + $0xa0] sm:$0xf]
    %v6031 = vld [vmem:[%s5989 + $0xa4] sm:$0xf]
    %v6032 = vld [vmem:[%s5989 + $0xa8] sm:$0xf]
    %v6033 = vld [vmem:[%s5989 + $0xac] sm:$0xf]
    %v6034 = vld [vmem:[%s5989 + $0xb0] sm:$0xf]
    %v6035 = vld [vmem:[%s5989 + $0xb4] sm:$0xf]
    %v6036 = vld [vmem:[%s5989 + $0xb8] sm:$0xf]
    %v6037 = vld [vmem:[%s5989 + $0xbc] sm:$0xf]
    %v6038 = vld [vmem:[%s5989 + $0xc0] sm:$0xf]
    %v6039 = vld [vmem:[%s5989 + $0xc4] sm:$0xf]
    %v6040 = vld [vmem:[%s5989 + $0xc8] sm:$0xf]
    %v6041 = vld [vmem:[%s5989 + $0xcc] sm:$0xf]
    %v6042 = vld [vmem:[%s5989 + $0xd0] sm:$0xf]
    %v6043 = vld [vmem:[%s5989 + $0xd4] sm:$0xf]
    %v6044 = vld [vmem:[%s5989 + $0xd8] sm:$0xf]
    %v6045 = vld [vmem:[%s5989 + $0xdc] sm:$0xf]
    %v6046 = vld [vmem:[%s5989 + $0xe0] sm:$0xf]
    %v6047 = vld [vmem:[%s5989 + $0xe4] sm:$0xf]
    %v6048 = vld [vmem:[%s5989 + $0xe8] sm:$0xf]
    %v6049 = vld [vmem:[%s5989 + $0xec] sm:$0xf]
    %v6050 = vld [vmem:[%s5989 + $0xf0] sm:$0xf]
    %v6051 = vld [vmem:[%s5989 + $0xf4] sm:$0xf]
    %v6052 = vld [vmem:[%s5989 + $0xf8] sm:$0xf]
    %v6053 = vld [vmem:[%s5989 + $0xfc] sm:$0xf]
    %v6054 = vld [vmem:[%s5989 + $0x100] sm:$0xf]
    %v6055 = vld [vmem:[%s5989 + $0x104] sm:$0xf]
    %v6056 = vld [vmem:[%s5989 + $0x108] sm:$0xf]
    %v6057 = vld [vmem:[%s5989 + $0x10c] sm:$0xf]
    %v6058 = vld [vmem:[%s5989 + $0x110] sm:$0xf]
    %v6059 = vld [vmem:[%s5989 + $0x114] sm:$0xf]
    %v6060 = vld [vmem:[%s5989 + $0x118] sm:$0xf]
    %v6061 = vld [vmem:[%s5989 + $0x11c] sm:$0xf]
    %v6062 = vld [vmem:[%s5989 + $0x120] sm:$0xf]
    %v6063 = vld [vmem:[%s5989 + $0x124] sm:$0xf]
    %v6064 = vld [vmem:[%s5989 + $0x128] sm:$0xf]
    %v6065 = vld [vmem:[%s5989 + $0x12c] sm:$0xf]
    %v6066 = vld [vmem:[%s5989 + $0x130] sm:$0xf]
    %v6067 = vld [vmem:[%s5989 + $0x134] sm:$0xf]
    %v6068 = vld [vmem:[%s5989 + $0x138] sm:$0xf]
    %v6069 = vld [vmem:[%s5989 + $0x13c] sm:$0xf]
    %v6070 = vld [vmem:[%s5989 + $0x140] sm:$0xf]
    %v6071 = vld [vmem:[%s5989 + $0x144] sm:$0xf]
    %v6072 = vld [vmem:[%s5989 + $0x148] sm:$0xf]
    %v6073 = vld [vmem:[%s5989 + $0x14c] sm:$0xf]
    %v6074 = vld [vmem:[%s5989 + $0x150] sm:$0xf]
    %v6075 = vld [vmem:[%s5989 + $0x154] sm:$0xf]
    %v6076 = vld [vmem:[%s5989 + $0x158] sm:$0xf]
    %v6077 = vld [vmem:[%s5989 + $0x15c] sm:$0x1]
    %v6166 = vunpack.c.l.b16 %v5990
    %v6167 = vunpack.c.l.b16 %v5991
    %v6168 = vunpack.c.l.b16 %v5992
    %v6169 = vunpack.c.l.b16 %v5993
    %v6170 = vunpack.c.l.b16 %v5994
    %v6171 = vunpack.c.l.b16 %v5995
    %v6172 = vunpack.c.l.b16 %v5996
    %v6173 = vunpack.c.l.b16 %v5997
    %v6174 = vunpack.c.l.b16 %v5998
    %v6175 = vunpack.c.l.b16 %v5999
    %v6176 = vunpack.c.l.b16 %v6000
    %v6177 = vunpack.c.l.b16 %v6001
    %v6178 = vunpack.c.l.b16 %v6002
    %v6179 = vunpack.c.l.b16 %v6003
    %v6180 = vunpack.c.l.b16 %v6004
    %v6181 = vunpack.c.l.b16 %v6005
    %v6182 = vunpack.c.l.b16 %v6006
    %v6183 = vunpack.c.l.b16 %v6007
    %v6184 = vunpack.c.l.b16 %v6008
    %v6185 = vunpack.c.l.b16 %v6009
    %v6186 = vunpack.c.l.b16 %v6010
    %v6187 = vunpack.c.l.b16 %v6011
    %v6188 = vunpack.c.l.b16 %v6012
    %v6189 = vunpack.c.l.b16 %v6013
    %v6190 = vunpack.c.l.b16 %v6014
    %v6191 = vunpack.c.l.b16 %v6015
    %v6192 = vunpack.c.l.b16 %v6016
    %v6193 = vunpack.c.l.b16 %v6017
    %v6194 = vunpack.c.l.b16 %v6018
    %v6195 = vunpack.c.l.b16 %v6019
    %v6196 = vunpack.c.l.b16 %v6020
    %v6197 = vunpack.c.l.b16 %v6021
    %v6198 = vunpack.c.l.b16 %v6022
    %v6199 = vunpack.c.l.b16 %v6023
    %v6200 = vunpack.c.l.b16 %v6024
    %v6201 = vunpack.c.l.b16 %v6025
    %v6202 = vunpack.c.l.b16 %v6026
    %v6203 = vunpack.c.l.b16 %v6027
    %v6204 = vunpack.c.l.b16 %v6028
    %v6205 = vunpack.c.l.b16 %v6029
    %v6206 = vunpack.c.l.b16 %v6030
    %v6207 = vunpack.c.l.b16 %v6031
    %v6208 = vunpack.c.l.b16 %v6032
    %v6209 = vunpack.c.l.b16 %v6033
    %v6210 = vunpack.c.l.b16 %v6034
    %v6211 = vunpack.c.l.b16 %v6035
    %v6212 = vunpack.c.l.b16 %v6036
    %v6213 = vunpack.c.l.b16 %v6037
    %v6214 = vunpack.c.l.b16 %v6038
    %v6215 = vunpack.c.l.b16 %v6039
    %v6216 = vunpack.c.l.b16 %v6040
    %v6217 = vunpack.c.l.b16 %v6041
    %v6218 = vunpack.c.l.b16 %v6042
    %v6219 = vunpack.c.l.b16 %v6043
    %v6220 = vunpack.c.l.b16 %v6044
    %v6221 = vunpack.c.l.b16 %v6045
    %v6222 = vunpack.c.l.b16 %v6046
    %v6223 = vunpack.c.l.b16 %v6047
    %v6224 = vunpack.c.l.b16 %v6048
    %v6225 = vunpack.c.l.b16 %v6049
    %v6226 = vunpack.c.l.b16 %v6050
    %v6227 = vunpack.c.l.b16 %v6051
    %v6228 = vunpack.c.l.b16 %v6052
    %v6229 = vunpack.c.l.b16 %v6053
    %v6230 = vunpack.c.l.b16 %v6054
    %v6231 = vunpack.c.l.b16 %v6055
    %v6232 = vunpack.c.l.b16 %v6056
    %v6233 = vunpack.c.l.b16 %v6057
    %v6234 = vunpack.c.l.b16 %v6058
    %v6235 = vunpack.c.l.b16 %v6059
    %v6236 = vunpack.c.l.b16 %v6060
    %v6237 = vunpack.c.l.b16 %v6061
    %v6238 = vunpack.c.l.b16 %v6062
    %v6239 = vunpack.c.l.b16 %v6063
    %v6240 = vunpack.c.l.b16 %v6064
    %v6241 = vunpack.c.l.b16 %v6065
    %v6242 = vunpack.c.l.b16 %v6066
    %v6243 = vunpack.c.l.b16 %v6067
    %v6244 = vunpack.c.l.b16 %v6068
    %v6245 = vunpack.c.l.b16 %v6069
    %v6246 = vunpack.c.l.b16 %v6070
    %v6247 = vunpack.c.l.b16 %v6071
    %v6248 = vunpack.c.l.b16 %v6072
    %v6249 = vunpack.c.l.b16 %v6073
    %v6250 = vunpack.c.l.b16 %v6074
    %v6251 = vunpack.c.l.b16 %v6075
    %v6252 = vunpack.c.l.b16 %v6076
    %v6253 = vunpack.c.l.b16 %v6077
    %v6254 = vpack.c.b16 %v6167, %v6166
    %v6255 = vpack.c.b16 %v6169, %v6168
    %v6256 = vpack.c.b16 %v6171, %v6170
    %v6257 = vpack.c.b16 %v6173, %v6172
    %v6258 = vpack.c.b16 %v6175, %v6174
    %v6259 = vpack.c.b16 %v6177, %v6176
    %v6260 = vpack.c.b16 %v6179, %v6178
    %v6261 = vpack.c.b16 %v6181, %v6180
    %v6262 = vpack.c.b16 %v6183, %v6182
    %v6263 = vpack.c.b16 %v6185, %v6184
    %v6264 = vpack.c.b16 %v6187, %v6186
    %v6265 = vpack.c.b16 %v6189, %v6188
    %v6266 = vpack.c.b16 %v6191, %v6190
    %v6267 = vpack.c.b16 %v6193, %v6192
    %v6268 = vpack.c.b16 %v6195, %v6194
    %v6269 = vpack.c.b16 %v6197, %v6196
    %v6270 = vpack.c.b16 %v6199, %v6198
    %v6271 = vpack.c.b16 %v6201, %v6200
    %v6272 = vpack.c.b16 %v6203, %v6202
    %v6273 = vpack.c.b16 %v6205, %v6204
    %v6274 = vpack.c.b16 %v6207, %v6206
    %v6275 = vpack.c.b16 %v6209, %v6208
    %v6276 = vpack.c.b16 %v6211, %v6210
    %v6277 = vpack.c.b16 %v6213, %v6212
    %v6278 = vpack.c.b16 %v6215, %v6214
    %v6279 = vpack.c.b16 %v6217, %v6216
    %v6280 = vpack.c.b16 %v6219, %v6218
    %v6281 = vpack.c.b16 %v6221, %v6220
    %v6282 = vpack.c.b16 %v6223, %v6222
    %v6283 = vpack.c.b16 %v6225, %v6224
    %v6284 = vpack.c.b16 %v6227, %v6226
    %v6285 = vpack.c.b16 %v6229, %v6228
    %v6286 = vpack.c.b16 %v6231, %v6230
    %v6287 = vpack.c.b16 %v6233, %v6232
    %v6288 = vpack.c.b16 %v6235, %v6234
    %v6289 = vpack.c.b16 %v6237, %v6236
    %v6290 = vpack.c.b16 %v6239, %v6238
    %v6291 = vpack.c.b16 %v6241, %v6240
    %v6292 = vpack.c.b16 %v6243, %v6242
    %v6293 = vpack.c.b16 %v6245, %v6244
    %v6294 = vpack.c.b16 %v6247, %v6246
    %v6295 = vpack.c.b16 %v6249, %v6248
    %v6296 = vpack.c.b16 %v6251, %v6250
    %v6297 = vpack.c.b16 %v6253, %v6252
    %v6342 = vsel %vm1708, %v5988, 0
    %v6345 = vand.u32 %v6297, %v1715
    %6347 = vmatprep.subr.bf16.mxu0 0
    %6348 = vmatpush1.bf16.msra.mxu0 %v6261
    %6349 = vmatprep.subr.bf16.mxu0 0
    %6350 = vmatpush1.bf16.msra.mxu0 %v6260
    %6351 = vmatprep.subr.bf16.mxu0 0
    %6352 = vmatpush1.bf16.msra.mxu0 %v6259
    %6353 = vmatprep.subr.bf16.mxu0 0
    %6354 = vmatpush1.bf16.msra.mxu0 %v6258
    %6355 = vmatprep.subr.bf16.mxu0 0
    %6356 = vmatpush1.bf16.msra.mxu0 %v6257
    %6357 = vmatprep.subr.bf16.mxu0 0
    %6358 = vmatpush1.bf16.msra.mxu0 %v6256
    %6359 = vmatprep.subr.bf16.mxu0 0
    %6360 = vmatpush1.bf16.msra.mxu0 %v6255
    %6361 = vmatprep.subr.bf16.mxu0 0
    %6362 = vmatpush1.bf16.msra.mxu0 %v6254
    %6363 = vmatprep.subr.bf16.mxu0 0
    %6364 = vmatpush2.bf16.msra.mxu0 %v6269
    %6365 = vmatprep.subr.bf16.mxu0 0
    %6366 = vmatpush2.bf16.msra.mxu0 %v6268
    %6367 = vmatprep.subr.bf16.mxu0 0
    %6368 = vmatpush2.bf16.msra.mxu0 %v6267
    %6369 = vmatprep.subr.bf16.mxu0 0
    %6370 = vmatpush2.bf16.msra.mxu0 %v6266
    %6371 = vmatprep.subr.bf16.mxu0 0
    %6372 = vmatpush2.bf16.msra.mxu0 %v6265
    %6373 = vmatprep.subr.bf16.mxu0 0
    %6374 = vmatpush2.bf16.msra.mxu0 %v6264
    %6375 = vmatprep.subr.bf16.mxu0 0
    %6376 = vmatpush2.bf16.msra.mxu0 %v6263
    %6377 = vmatprep.subr.bf16.mxu0 0
    %6378 = vmatpush2.bf16.msra.mxu0 %v6262
    %6379 = vmatprep.mubr.bf16.mxu0 %v5984
    %6380 = vmatmul.mubr.bf16.gmra.mxu0 %v5983
    %v6381 = vpop.f32.mrf.mxu0
    %v6382 = vadd.f32 0.0, %v6381
    %v6383 = vpop.f32.mrf.mxu0
    %v6384 = vpop.f32.mrf.mxu0
    %v6385 = vpop.f32.mrf.mxu0
    %6386 = vdwg.mxu0
    %6387 = vmatprep.subr.bf16.mxu0 0
    %6388 = vmatpush1.bf16.msra.mxu0 %v6277
    %6389 = vmatprep.subr.bf16.mxu0 0
    %6390 = vmatpush1.bf16.msra.mxu0 %v6276
    %6391 = vmatprep.subr.bf16.mxu0 0
    %6392 = vmatpush1.bf16.msra.mxu0 %v6275
    %6393 = vmatprep.subr.bf16.mxu0 0
    %6394 = vmatpush1.bf16.msra.mxu0 %v6274
    %6395 = vmatprep.subr.bf16.mxu0 0
    %6396 = vmatpush1.bf16.msra.mxu0 %v6273
    %6397 = vmatprep.subr.bf16.mxu0 0
    %6398 = vmatpush1.bf16.msra.mxu0 %v6272
    %6399 = vmatprep.subr.bf16.mxu0 0
    %6400 = vmatpush1.bf16.msra.mxu0 %v6271
    %6401 = vmatprep.subr.bf16.mxu0 0
    %6402 = vmatpush1.bf16.msra.mxu0 %v6270
    %6403 = vmatprep.subr.bf16.mxu0 0
    %6404 = vmatpush2.bf16.msra.mxu0 %v6285
    %6405 = vmatprep.subr.bf16.mxu0 0
    %6406 = vmatpush2.bf16.msra.mxu0 %v6284
    %6407 = vmatprep.subr.bf16.mxu0 0
    %6408 = vmatpush2.bf16.msra.mxu0 %v6283
    %6409 = vmatprep.subr.bf16.mxu0 0
    %6410 = vmatpush2.bf16.msra.mxu0 %v6282
    %6411 = vmatprep.subr.bf16.mxu0 0
    %6412 = vmatpush2.bf16.msra.mxu0 %v6281
    %6413 = vmatprep.subr.bf16.mxu0 0
    %6414 = vmatpush2.bf16.msra.mxu0 %v6280
    %6415 = vmatprep.subr.bf16.mxu0 0
    %6416 = vmatpush2.bf16.msra.mxu0 %v6279
    %6417 = vmatprep.subr.bf16.mxu0 0
    %6418 = vmatpush2.bf16.msra.mxu0 %v6278
    %6419 = vmatprep.mubr.bf16.mxu0 %v5986
    %6420 = vmatmul.mubr.bf16.gmra.mxu0 %v5985
    %v6421 = vpop.f32.mrf.mxu0
    %v6422 = vadd.f32 %v6382, %v6421
    %v6423 = vpop.f32.mrf.mxu0
    %v6424 = vpop.f32.mrf.mxu0
    %v6425 = vpop.f32.mrf.mxu0
    %6426 = vdwg.mxu0
    %6427 = vmatprep.subr.bf16.mxu0 0
    %6428 = vmatpush1.bf16.msra.mxu0 %v6293
    %6429 = vmatprep.subr.bf16.mxu0 0
    %6430 = vmatpush1.bf16.msra.mxu0 %v6292
    %6431 = vmatprep.subr.bf16.mxu0 0
    %6432 = vmatpush1.bf16.msra.mxu0 %v6291
    %6433 = vmatprep.subr.bf16.mxu0 0
    %6434 = vmatpush1.bf16.msra.mxu0 %v6290
    %6435 = vmatprep.subr.bf16.mxu0 0
    %6436 = vmatpush1.bf16.msra.mxu0 %v6289
    %6437 = vmatprep.subr.bf16.mxu0 0
    %6438 = vmatpush1.bf16.msra.mxu0 %v6288
    %6439 = vmatprep.subr.bf16.mxu0 0
    %6440 = vmatpush1.bf16.msra.mxu0 %v6287
    %6441 = vmatprep.subr.bf16.mxu0 0
    %6442 = vmatpush1.bf16.msra.mxu0 %v6286
    %6443 = vmatprep.subr.bf16.mxu0 0
    %6444 = vmatpush2.bf16.msra.mxu0 0
    %6445 = vmatprep.subr.bf16.mxu0 0
    %6446 = vmatpush2.bf16.msra.mxu0 0
    %6447 = vmatprep.subr.bf16.mxu0 0
    %6448 = vmatpush2.bf16.msra.mxu0 0
    %6449 = vmatprep.subr.bf16.mxu0 0
    %6450 = vmatpush2.bf16.msra.mxu0 0
    %6451 = vmatprep.subr.bf16.mxu0 0
    %6452 = vmatpush2.bf16.msra.mxu0 %v6345
    %6453 = vmatprep.subr.bf16.mxu0 0
    %6454 = vmatpush2.bf16.msra.mxu0 %v6296
    %6455 = vmatprep.subr.bf16.mxu0 0
    %6456 = vmatpush2.bf16.msra.mxu0 %v6295
    %6457 = vmatprep.subr.bf16.mxu0 0
    %6458 = vmatpush2.bf16.msra.mxu0 %v6294
    %6459 = vmatprep.mubr.bf16.mxu0 %v6342
    %6460 = vmatmul.mubr.bf16.gmra.mxu0 %v5987
    %v6461 = vpop.f32.mrf.mxu0
    %v6462 = vadd.f32 %v6422, %v6461
    %v6463 = vpop.f32.mrf.mxu0
    %v6464 = vpop.f32.mrf.mxu0
    %v6465 = vpop.f32.mrf.mxu0
    %6466 = vdwg.mxu0
    %v6467 = vadd.f32 %v5407, %v6462
    %v6468 = vld [vmem:[%s4] sm:$0x1]
    %v6470 = vlaneseq
    %v6471 = vshrl.u32 %v6470, 7
    %v6472 = vsub.s32 0, %v6471
    %v6473 = vrot.slane %v6468, %v6472
    %v6475 = vadd.f32 %v6467, %v6473
    %vm6476 = vcmask 74752
    %6477 = vst.msk [vmem:[#allocation7] sm:$0x3] %vm6476, %v6475
    // Predicated region
    $region30: #{annet_forward.1} parent=1 // pred_check
      _
    $region31: #{annet_forward.1} parent=1 // pred_check_branch
      %6479 = sbr.rel (0) target = $region33
    $region32: #{annet_forward.1} parent=1 // pred_region
      %s6481 = ssub.s32 32, 32
      %6482 = vsyncadd [#allocation3], %s6481
      %s6484 = sshll.u32 [#allocation7], 4
      %s6485 = int_to_ptr.vmem [resolvable:$true] %s6484
      %6487 = dma.vmem_to_hbm [thread:$0]  %s6485, 32, %s5, [#allocation3]
    $region33: #{annet_forward.1} parent=1 // pred_fallthru
      _
    // Predicated region
    $region34: #{annet_forward.1} parent=1 // pred_check
      _
    $region35: #{annet_forward.1} parent=1 // pred_check_branch
      %6489 = sbr.rel (0) target = $region37
    $region36: #{annet_forward.1} parent=1 // pred_region
      %6490 = dma.done [#allocation3], 32
    $region37: #{annet_forward.1} parent=1 // pred_fallthru
      _
    %6491 = vsyncpa [#allocation3], 1
    %6492 = vsyncpa [#allocation4], 1
    %6493 = vsyncpa [#allocation6], 1

</llo_original>
